<compile_context>
chip_gen: v7x
topology: tpu7x:2x2x1
jax: 0.10.0
libtpu: 0.0.40
codegen_flags: <defaults>
</compile_context>

<pallas_src>
import math

import jax
import jax.numpy as jnp
from jax import lax
from jax.experimental import pallas as pl
from jax.experimental.pallas import tpu as pltpu


def _round_up(x, m):
    return (x + m - 1) // m * m


# ---------------------------------------------------------------------------
# Pallas kernel
# ---------------------------------------------------------------------------
def _make_kernel(layers, hidden, nb_features, Bblk, T, compute_dtype):
    H = hidden
    F = nb_features
    G = 4 * H
    f32 = jnp.float32

    def kernel(*refs):
        it = iter(refs)
        x_ref = next(it)                                   # (T*Bblk, F) time-major
        e0_wih_ref, e0_whh_ref, e0_b_ref = next(it), next(it), next(it)
        enc_rest = [(next(it), next(it), next(it)) for _ in range(layers - 1)]
        d0_wih_ref, d0_whh_ref, d0_b_ref = next(it), next(it), next(it)
        dec_rest = [(next(it), next(it), next(it)) for _ in range(layers - 1)]
        w_out_ref, b_out_ref = next(it), next(it)
        out_ref = next(it)                                 # (T*Bblk, F)
        gx_ref = next(it)                                  # (T*Bblk, G) scratch
        dec_h_ref = next(it)                               # (T, Bblk, H) scratch

        # Hoist every weight/bias load and bias broadcast out of the recurrence
        # (JAX does not CSE these).
        e0_wih = e0_wih_ref[...]                           # (F, G)  bf16
        e0_whh = e0_whh_ref[...]                           # (H, G)  bf16
        e0_b = e0_b_ref[...]                               # (1, G)  f32
        enc_w = [(wih_ref[...], whh_ref[...],
                  jnp.broadcast_to(b_ref[...], (Bblk, G)))
                 for (wih_ref, whh_ref, b_ref) in enc_rest]
        d0_wih = d0_wih_ref[...]
        d0_whh = d0_whh_ref[...]
        d0_b = d0_b_ref[...]
        dec_w = [(wih_ref[...], whh_ref[...],
                  jnp.broadcast_to(b_ref[...], (Bblk, G)))
                 for (wih_ref, whh_ref, b_ref) in dec_rest]
        w_out = w_out_ref[...]                             # (H, F)  bf16
        b_out = b_out_ref[...]                             # (1, F)  f32

        def mm(a, w):
            # bf16 MXU operands, f32 accumulation; h/c state stays f32.
            return jnp.dot(a.astype(compute_dtype), w,
                           preferred_element_type=f32)

        def gate_act(gates, c):
            # Gate columns permuted to (i, f, o, g) wrapper-side:
            # one sigmoid over 3H + one tanh over H (was 4H + 4H).
            sig = jax.nn.sigmoid(gates[:, :3 * H])
            g = jnp.tanh(gates[:, 3 * H:])
            i = sig[:, 0 * H:1 * H]
            f = sig[:, 1 * H:2 * H]
            o = sig[:, 2 * H:3 * H]
            c_new = f * c + i * g
            h_new = o * jnp.tanh(c_new)
            return h_new, c_new

        # ------------------------------ encoder ------------------------------
        # Layer-0 input projection for ALL timesteps in one bulk bf16 matmul
        # (bias folded in); parked in VMEM and sliced per step with pl.ds.
        gx_ref[...] = mm(x_ref[...], e0_wih) + e0_b

        zeros = tuple(jnp.zeros((Bblk, H), f32) for _ in range(layers))

        def enc_step(t, carry):
            hs, cs = carry
            row = pl.multiple_of(t * Bblk, Bblk)
            gates = gx_ref[pl.ds(row, Bblk), :] + mm(hs[0], e0_whh)
            h_new, c_new = gate_act(gates, cs[0])
            new_h, new_c = [h_new], [c_new]
            for l in range(1, layers):
                wih, whh, b = enc_w[l - 1]
                # De-fused: h_below @ W_ih and h_self @ W_hh issue independently.
                gates = mm(new_h[l - 1], wih) + mm(hs[l], whh) + b
                h_new, c_new = gate_act(gates, cs[l])
                new_h.append(h_new)
                new_c.append(c_new)
            return tuple(new_h), tuple(new_c)

        hs, cs = lax.fori_loop(0, T, enc_step, (zeros, zeros),
                               unroll=min(T, 8))
        h_last, c_last = hs[-1], cs[-1]

        # ------------------------------ decoder ------------------------------
        # Decoder input is h_last at EVERY step and every decoder layer is seeded
        # with (h_last, c_last) (PyTorch .repeat over layers and over T).  The
        # layer-0 input projection is loop-invariant: compute it once.
        gdx0 = mm(h_last, d0_wih) + d0_b

        def dec_step(t, carry):
            hs, cs = carry
            gates = gdx0 + mm(hs[0], d0_whh)
            h_new, c_new = gate_act(gates, cs[0])
            new_h, new_c = [h_new], [c_new]
            for l in range(1, layers):
                wih, whh, b = dec_w[l - 1]
                gates = mm(new_h[l - 1], wih) + mm(hs[l], whh) + b
                h_new, c_new = gate_act(gates, cs[l])
                new_h.append(h_new)
                new_c.append(c_new)
            dec_h_ref[t] = new_h[-1]      # full (Bblk, H) row store, time-major
            return tuple(new_h), tuple(new_c)

        init = (tuple(h_last for _ in range(layers)),
                tuple(c_last for _ in range(layers)))
        lax.fori_loop(0, T, dec_step, init, unroll=min(T, 8))

        # Batched output head: ONE (T*Bblk, H) x (H, F) matmul and ONE bulk store.
        # Bblk is a multiple of 8, so this collapse is a tile-aligned reshape.
        h_all = dec_h_ref[...].reshape(T * Bblk, H)
        y = mm(h_all, w_out) + b_out
        out_ref[...] = y.astype(out_ref.dtype)
        # TODO(synk): for very long T / large Bblk, emit the output as a lane-dense
        # (T, Bblk*F) slab instead of (T*Bblk, F); F is tiny so kept simple here.

    return kernel


# ---------------------------------------------------------------------------
# Wrapper
# ---------------------------------------------------------------------------
def stacked_lstm_autoencoder(x, params, *, layers, hidden, nb_features,
                             batch_block=None, compute_dtype=jnp.bfloat16):
    B, T, F = x.shape
    H = hidden
    G = 4 * H
    assert F == nb_features

    # Pad the batch to a multiple of 8 sublanes so every per-step tile and the
    # final collapse are sublane-aligned (padded rows are sliced off at the end).
    if batch_block is None:
        Bp = _round_up(B, 8)
        # One block per chip on v5e/v6e (1 TensorCore).  On v7x (2 TCs) pass
        # batch_block = Bp // 2 so the "parallel" batch grid uses both cores.
        batch_block = Bp
    else:
        assert batch_block % 8 == 0
        Bp = _round_up(B, batch_block)
    nblk = Bp // batch_block

    x_p = x if Bp == B else jnp.pad(x, ((0, Bp - B), (0, 0), (0, 0)))
    # Pre-flattened, time-major-within-block input slab: the kernel consumes it
    # with zero in-kernel relayout reshapes (wrapper-side layout plumbing).
    x_flat = (x_p.reshape(nblk, batch_block, T, F)
              .transpose(0, 2, 1, 3)
              .reshape(nblk, T * batch_block, F))

    def permute_gates(a):
        # PyTorch gate order (i,f,g,o) -> (i,f,o,g): kernel runs one sigmoid over
        # the first 3H gate columns and one tanh over the last H.
        return jnp.concatenate(
            [a[..., :2 * H], a[..., 3 * H:4 * H], a[..., 2 * H:3 * H]], axis=-1)

    def prep_w(a):                       # matmul operands -> bf16 (MXU native)
        return permute_gates(a).astype(compute_dtype)

    def prep_b(a):                       # biases stay f32 (post-accumulation add)
        return permute_gates(a)

    args = [x_flat]
    specs = [pl.BlockSpec((None, T * batch_block, F), lambda b: (b, 0, 0))]

    def add_full(a):
        # Whole-array block, replicated across the batch grid.
        # TODO(synk): at production sizes on v7x (64 MiB VMEM) single-buffer these
        # constant weight specs (pipeline_mode=pl.Buffered(1)) to halve their VMEM.
        nd = a.ndim
        args.append(a)
        specs.append(pl.BlockSpec(a.shape, lambda b, _nd=nd: (0,) * _nd))

    add_full(prep_w(params["enc_wih_0"]))
    add_full(prep_w(params["enc_whh_0"]))
    add_full(prep_b(params["enc_b_0"]))
    for l in range(1, layers):
        add_full(prep_w(params[f"enc_wih_{l}"]))
        add_full(prep_w(params[f"enc_whh_{l}"]))
        add_full(prep_b(params[f"enc_b_{l}"]))
    add_full(prep_w(params["dec_wih_0"]))
    add_full(prep_w(params["dec_whh_0"]))
    add_full(prep_b(params["dec_b_0"]))
    for l in range(1, layers):
        add_full(prep_w(params[f"dec_wih_{l}"]))
        add_full(prep_w(params[f"dec_whh_{l}"]))
        add_full(prep_b(params[f"dec_b_{l}"]))
    add_full(params["w_out"].astype(compute_dtype))
    add_full(params["b_out"])

    kernel = _make_kernel(layers, hidden, nb_features, batch_block, T,
                          compute_dtype)
    out_flat = pl.pallas_call(
        kernel,
        out_shape=jax.ShapeDtypeStruct((nblk, T * batch_block, F), jnp.float32),
        grid=(nblk,),
        in_specs=specs,
        out_specs=pl.BlockSpec((None, T * batch_block, F), lambda b: (b, 0, 0)),
        scratch_shapes=[
            pltpu.VMEM((T * batch_block, G), jnp.float32),   # layer-0 pre-projection
            pltpu.VMEM((T, batch_block, H), jnp.float32),    # decoder h stash
        ],
        compiler_params=pltpu.CompilerParams(
            dimension_semantics=("parallel",),
            vmem_limit_bytes=64 * 1024 * 1024),
    )(*args)

    out = (out_flat.reshape(nblk, T, batch_block, F)
           .transpose(0, 2, 1, 3)
           .reshape(Bp, T, F))
    return out[:B]


# ---------------------------------------------------------------------------
# Deterministic parameter init (PyTorch-style U(-1/sqrt(H), 1/sqrt(H)))
# ---------------------------------------------------------------------------
def init_params(key, nb_features, hidden, layers):
    H = hidden
    k = 1.0 / math.sqrt(H)
    params = {}

    def uni(key, shape):
        return jax.random.uniform(key, shape, jnp.float32, minval=-k, maxval=k)

    n_keys = layers * 2 * 4 + 2
    keys = iter(jax.random.split(key, n_keys))

    for prefix in ("enc", "dec"):
        for l in range(layers):
            in_dim = nb_features if (prefix == "enc" and l == 0) else H
            w_ih = uni(next(keys), (4 * H, in_dim))
            w_hh = uni(next(keys), (4 * H, H))
            b_ih = uni(next(keys), (4 * H,))
            b_hh = uni(next(keys), (4 * H,))
            params[f"{prefix}_wih_{l}"] = w_ih.T                      # (in, 4H)
            params[f"{prefix}_whh_{l}"] = w_hh.T                      # (H, 4H)
            params[f"{prefix}_b_{l}"] = (b_ih + b_hh).reshape(1, 4 * H)
    w_lin = uni(next(keys), (nb_features, H))
    b_lin = uni(next(keys), (nb_features,))
    params["w_out"] = w_lin.T                                          # (H, F)
    params["b_out"] = b_lin.reshape(1, nb_features)                    # (1, F)
    return params


# ---------------------------------------------------------------------------
# Pure-JAX reference (same math, f32, unpermuted gates) for correctness check
# ---------------------------------------------------------------------------
def _ref_forward(x, params, *, layers, hidden, nb_features):
    B, T, F = x.shape
    H = hidden
    hi = jax.lax.Precision.HIGHEST

    def cell(inp, h, c, wih, whh, b):
        gates = (jnp.dot(inp, wih, precision=hi)
                 + jnp.dot(h, whh, precision=hi) + b)
        i = jax.nn.sigmoid(gates[:, 0 * H:1 * H])
        f = jax.nn.sigmoid(gates[:, 1 * H:2 * H])
        g = jnp.tanh(gates[:, 2 * H:3 * H])
        o = jax.nn.sigmoid(gates[:, 3 * H:4 * H])
        c = f * c + i * g
        h = o * jnp.tanh(c)
        return h, c

    hs = [jnp.zeros((B, H), jnp.float32) for _ in range(layers)]
    cs = [jnp.zeros((B, H), jnp.float32) for _ in range(layers)]
    for t in range(T):
        inp = x[:, t, :]
        for l in range(layers):
            hs[l], cs[l] = cell(inp, hs[l], cs[l],
                                params[f"enc_wih_{l}"], params[f"enc_whh_{l}"],
                                params[f"enc_b_{l}"])
            inp = hs[l]
    h_last, c_last = hs[-1], cs[-1]

    dhs = [h_last for _ in range(layers)]
    dcs = [c_last for _ in range(layers)]
    outs = []
    for t in range(T):
        inp = h_last
        for l in range(layers):
            dhs[l], dcs[l] = cell(inp, dhs[l], dcs[l],
                                  params[f"dec_wih_{l}"], params[f"dec_whh_{l}"],
                                  params[f"dec_b_{l}"])
            inp = dhs[l]
        outs.append(jnp.dot(inp, params["w_out"], precision=hi) + params["b_out"])
    return jnp.stack(outs, axis=1)


# ---------------------------------------------------------------------------
if __name__ == "__main__":
    nb_features = 4
    hidden_units = 32
    layers = 2
    batch = 2
    seq = 8

    key = jax.random.PRNGKey(0)
    kx, kp = jax.random.split(key)
    x = jax.random.normal(kx, (batch, seq, nb_features), jnp.float32)
    params = init_params(kp, nb_features, hidden_units, layers)

    out = stacked_lstm_autoencoder(
        x, params, layers=layers, hidden=hidden_units, nb_features=nb_features)
    out = jax.block_until_ready(out)

    ref = _ref_forward(
        x, params, layers=layers, hidden=hidden_units, nb_features=nb_features)
    ref = jax.block_until_ready(ref)

    assert out.shape == (batch, seq, nb_features)
    # Kernel uses bf16 MXU operands (f32 accumulation / f32 state), reference is
    # pure f32 HIGHEST -> tolerance loosened accordingly.
    assert jnp.allclose(out, ref, atol=5e-2, rtol=5e-2), "mismatch vs reference"
    print("KERNEL_OK")
</pallas_src>

<mosaic_0001>
module attributes {stable_mosaic.version = 11 : i64} {
  func.func @kernel(%arg0: i32, %arg1: memref<1x64x4xf32, #tpu.memory_space<vmem>>, %arg2: memref<4x128xbf16, #tpu.memory_space<vmem>>, %arg3: memref<32x128xbf16, #tpu.memory_space<vmem>>, %arg4: memref<1x128xf32, #tpu.memory_space<vmem>>, %arg5: memref<32x128xbf16, #tpu.memory_space<vmem>>, %arg6: memref<32x128xbf16, #tpu.memory_space<vmem>>, %arg7: memref<1x128xf32, #tpu.memory_space<vmem>>, %arg8: memref<32x128xbf16, #tpu.memory_space<vmem>>, %arg9: memref<32x128xbf16, #tpu.memory_space<vmem>>, %arg10: memref<1x128xf32, #tpu.memory_space<vmem>>, %arg11: memref<32x128xbf16, #tpu.memory_space<vmem>>, %arg12: memref<32x128xbf16, #tpu.memory_space<vmem>>, %arg13: memref<1x128xf32, #tpu.memory_space<vmem>>, %arg14: memref<32x4xbf16, #tpu.memory_space<vmem>>, %arg15: memref<1x4xf32, #tpu.memory_space<vmem>>, %arg16: memref<1x64x4xf32, #tpu.memory_space<vmem>>, %arg17: memref<64x128xf32, #tpu.memory_space<vmem>>, %arg18: memref<8x8x32xf32, #tpu.memory_space<vmem>>) attributes {dimension_semantics = [#tpu.dimension_semantics<parallel>], iteration_bounds = array<i64: 1>, scalar_prefetch = 0 : i64, scratch_operands = 2 : i64, tpu.core_type = #tpu.core_type<tc>, window_params = [{transform_indices = @transform_0, window_bounds = array<i64: 1, 64, 4>}, {pipeline_mode = #tpu.pipeline_mode<synchronous>, transform_indices = @transform_1, window_bounds = array<i64: 4, 128>}, {pipeline_mode = #tpu.pipeline_mode<synchronous>, transform_indices = @transform_2, window_bounds = array<i64: 32, 128>}, {pipeline_mode = #tpu.pipeline_mode<synchronous>, transform_indices = @transform_3, window_bounds = array<i64: 1, 128>}, {pipeline_mode = #tpu.pipeline_mode<synchronous>, transform_indices = @transform_4, window_bounds = array<i64: 32, 128>}, {pipeline_mode = #tpu.pipeline_mode<synchronous>, transform_indices = @transform_5, window_bounds = array<i64: 32, 128>}, {pipeline_mode = #tpu.pipeline_mode<synchronous>, transform_indices = @transform_6, window_bounds = array<i64: 1, 128>}, {pipeline_mode = #tpu.pipeline_mode<synchronous>, transform_indices = @transform_7, window_bounds = array<i64: 32, 128>}, {pipeline_mode = #tpu.pipeline_mode<synchronous>, transform_indices = @transform_8, window_bounds = array<i64: 32, 128>}, {pipeline_mode = #tpu.pipeline_mode<synchronous>, transform_indices = @transform_9, window_bounds = array<i64: 1, 128>}, {pipeline_mode = #tpu.pipeline_mode<synchronous>, transform_indices = @transform_10, window_bounds = array<i64: 32, 128>}, {pipeline_mode = #tpu.pipeline_mode<synchronous>, transform_indices = @transform_11, window_bounds = array<i64: 32, 128>}, {pipeline_mode = #tpu.pipeline_mode<synchronous>, transform_indices = @transform_12, window_bounds = array<i64: 1, 128>}, {pipeline_mode = #tpu.pipeline_mode<synchronous>, transform_indices = @transform_13, window_bounds = array<i64: 32, 4>}, {pipeline_mode = #tpu.pipeline_mode<synchronous>, transform_indices = @transform_14, window_bounds = array<i64: 1, 4>}, {transform_indices = @transform_15, window_bounds = array<i64: 1, 64, 4>}]} {
    %c0 = arith.constant 0 : index
    %c0_0 = arith.constant 0 : index
    %0 = vector.load %arg2[%c0, %c0_0] : memref<4x128xbf16, #tpu.memory_space<vmem>>, vector<4x128xbf16>
    %c0_1 = arith.constant 0 : index
    %c0_2 = arith.constant 0 : index
    %1 = vector.load %arg3[%c0_1, %c0_2] : memref<32x128xbf16, #tpu.memory_space<vmem>>, vector<32x128xbf16>
    %c0_3 = arith.constant 0 : index
    %c0_4 = arith.constant 0 : index
    %2 = vector.load %arg4[%c0_3, %c0_4] : memref<1x128xf32, #tpu.memory_space<vmem>>, vector<1x128xf32>
    %c0_5 = arith.constant 0 : index
    %c0_6 = arith.constant 0 : index
    %3 = vector.load %arg5[%c0_5, %c0_6] : memref<32x128xbf16, #tpu.memory_space<vmem>>, vector<32x128xbf16>
    %c0_7 = arith.constant 0 : index
    %c0_8 = arith.constant 0 : index
    %4 = vector.load %arg6[%c0_7, %c0_8] : memref<32x128xbf16, #tpu.memory_space<vmem>>, vector<32x128xbf16>
    %c0_9 = arith.constant 0 : index
    %c0_10 = arith.constant 0 : index
    %5 = vector.load %arg7[%c0_9, %c0_10] : memref<1x128xf32, #tpu.memory_space<vmem>>, vector<1x128xf32>
    %6 = vector.shape_cast %5 : vector<1x128xf32> to vector<1x128xf32>
    %7 = vector.broadcast %6 : vector<1x128xf32> to vector<8x128xf32>
    %c0_11 = arith.constant 0 : index
    %c0_12 = arith.constant 0 : index
    %8 = vector.load %arg8[%c0_11, %c0_12] : memref<32x128xbf16, #tpu.memory_space<vmem>>, vector<32x128xbf16>
    %c0_13 = arith.constant 0 : index
    %c0_14 = arith.constant 0 : index
    %9 = vector.load %arg9[%c0_13, %c0_14] : memref<32x128xbf16, #tpu.memory_space<vmem>>, vector<32x128xbf16>
    %c0_15 = arith.constant 0 : index
    %c0_16 = arith.constant 0 : index
    %10 = vector.load %arg10[%c0_15, %c0_16] : memref<1x128xf32, #tpu.memory_space<vmem>>, vector<1x128xf32>
    %c0_17 = arith.constant 0 : index
    %c0_18 = arith.constant 0 : index
    %11 = vector.load %arg11[%c0_17, %c0_18] : memref<32x128xbf16, #tpu.memory_space<vmem>>, vector<32x128xbf16>
    %c0_19 = arith.constant 0 : index
    %c0_20 = arith.constant 0 : index
    %12 = vector.load %arg12[%c0_19, %c0_20] : memref<32x128xbf16, #tpu.memory_space<vmem>>, vector<32x128xbf16>
    %c0_21 = arith.constant 0 : index
    %c0_22 = arith.constant 0 : index
    %13 = vector.load %arg13[%c0_21, %c0_22] : memref<1x128xf32, #tpu.memory_space<vmem>>, vector<1x128xf32>
    %14 = vector.shape_cast %13 : vector<1x128xf32> to vector<1x128xf32>
    %15 = vector.broadcast %14 : vector<1x128xf32> to vector<8x128xf32>
    %c0_23 = arith.constant 0 : index
    %c0_24 = arith.constant 0 : index
    %16 = vector.load %arg14[%c0_23, %c0_24] : memref<32x4xbf16, #tpu.memory_space<vmem>>, vector<32x4xbf16>
    %c0_25 = arith.constant 0 : index
    %c0_26 = arith.constant 0 : index
    %17 = vector.load %arg15[%c0_25, %c0_26] : memref<1x4xf32, #tpu.memory_space<vmem>>, vector<1x4xf32>
    %c0_27 = arith.constant 0 : index
    %c0_28 = arith.constant 0 : index
    %c0_29 = arith.constant 0 : index
    %18 = vector.load %arg1[%c0_27, %c0_28, %c0_29] : memref<1x64x4xf32, #tpu.memory_space<vmem>>, vector<1x64x4xf32>
    %19 = vector.shape_cast %18 : vector<1x64x4xf32> to vector<64x4xf32>
    %20 = arith.truncf %19 : vector<64x4xf32> to vector<64x4xbf16>
    %cst = arith.constant dense<0.000000e+00> : vector<64x128xf32>
    %21 = tpu.matmul %20, %0, %cst {dimension_numbers = #tpu.dot_dimension_numbers<[1], [0], [0], [1], [0, 0, 1, 1], [], []>} : vector<64x4xbf16>, vector<4x128xbf16>, vector<64x128xf32> -> vector<64x128xf32>
    %22 = vector.broadcast %2 : vector<1x128xf32> to vector<64x128xf32>
    %23 = arith.addf %21, %22 : vector<64x128xf32>
    %c0_30 = arith.constant 0 : index
    %c0_31 = arith.constant 0 : index
    %24 = vector.load %arg17[%c0_30, %c0_31] : memref<64x128xf32, #tpu.memory_space<vmem>>, vector<64x128xf32>
    tpu.vector_store %arg17[%c0_30, %c0_31], %23 {strides = array<i32>} : memref<64x128xf32, #tpu.memory_space<vmem>>, vector<64x128xf32>,
    %cst_32 = arith.constant 0.000000e+00 : f32
    %25 = vector.broadcast %cst_32 : f32 to vector<8x32xf32>
    %cst_33 = arith.constant 0.000000e+00 : f32
    %26 = vector.broadcast %cst_33 : f32 to vector<8x32xf32>
    %c0_i32 = arith.constant 0 : i32
    %c8_i32 = arith.constant 8 : i32
    %27 = arith.muli %c0_i32, %c8_i32 : i32
    %28 = tpu.assume_multiple %27, 8 : i32
    %29 = arith.index_cast %28 : i32 to index
    %c0_34 = arith.constant 0 : index
    %30 = vector.load %arg17[%29, %c0_34] : memref<64x128xf32, #tpu.memory_space<vmem>>, vector<8x128xf32>
    %31 = arith.truncf %25 : vector<8x32xf32> to vector<8x32xbf16>
    %cst_35 = arith.constant dense<0.000000e+00> : vector<8x128xf32>
    %32 = tpu.matmul %31, %1, %cst_35 {dimension_numbers = #tpu.dot_dimension_numbers<[1], [0], [0], [1], [0, 0, 1, 1], [], []>} : vector<8x32xbf16>, vector<32x128xbf16>, vector<8x128xf32> -> vector<8x128xf32>
    %33 = arith.addf %30, %32 : vector<8x128xf32>
    %34 = vector.extract_strided_slice %33 {offsets = [0, 0], sizes = [8, 96], strides = [1, 1]} : vector<8x128xf32> to vector<8x96xf32>
    %35 = arith.negf %34 : vector<8x96xf32>
    %36 = math.exp %35 : vector<8x96xf32>
    %cst_36 = arith.constant 1.000000e+00 : f32
    %37 = vector.broadcast %cst_36 : f32 to vector<8x96xf32>
    %38 = arith.addf %37, %36 : vector<8x96xf32>
    %39 = arith.divf %37, %38 : vector<8x96xf32>
    %40 = vector.extract_strided_slice %33 {offsets = [0, 96], sizes = [8, 32], strides = [1, 1]} : vector<8x128xf32> to vector<8x32xf32>
    %41 = math.tanh %40 : vector<8x32xf32>
    %42 = vector.extract_strided_slice %39 {offsets = [0, 0], sizes = [8, 32], strides = [1, 1]} : vector<8x96xf32> to vector<8x32xf32>
    %43 = vector.extract_strided_slice %39 {offsets = [0, 32], sizes = [8, 32], strides = [1, 1]} : vector<8x96xf32> to vector<8x32xf32>
    %44 = vector.extract_strided_slice %39 {offsets = [0, 64], sizes = [8, 32], strides = [1, 1]} : vector<8x96xf32> to vector<8x32xf32>
    %45 = arith.mulf %43, %25 : vector<8x32xf32>
    %46 = arith.mulf %42, %41 : vector<8x32xf32>
    %47 = arith.addf %45, %46 : vector<8x32xf32>
    %48 = math.tanh %47 : vector<8x32xf32>
    %49 = arith.mulf %44, %48 : vector<8x32xf32>
    %50 = arith.truncf %49 : vector<8x32xf32> to vector<8x32xbf16>
    %cst_37 = arith.constant dense<0.000000e+00> : vector<8x128xf32>
    %51 = tpu.matmul %50, %3, %cst_37 {dimension_numbers = #tpu.dot_dimension_numbers<[1], [0], [0], [1], [0, 0, 1, 1], [], []>} : vector<8x32xbf16>, vector<32x128xbf16>, vector<8x128xf32> -> vector<8x128xf32>
    %52 = arith.truncf %26 : vector<8x32xf32> to vector<8x32xbf16>
    %cst_38 = arith.constant dense<0.000000e+00> : vector<8x128xf32>
    %53 = tpu.matmul %52, %4, %cst_38 {dimension_numbers = #tpu.dot_dimension_numbers<[1], [0], [0], [1], [0, 0, 1, 1], [], []>} : vector<8x32xbf16>, vector<32x128xbf16>, vector<8x128xf32> -> vector<8x128xf32>
    %54 = arith.addf %51, %53 : vector<8x128xf32>
    %55 = arith.addf %54, %7 : vector<8x128xf32>
    %56 = vector.extract_strided_slice %55 {offsets = [0, 0], sizes = [8, 96], strides = [1, 1]} : vector<8x128xf32> to vector<8x96xf32>
    %57 = arith.negf %56 : vector<8x96xf32>
    %58 = math.exp %57 : vector<8x96xf32>
    %cst_39 = arith.constant 1.000000e+00 : f32
    %59 = vector.broadcast %cst_39 : f32 to vector<8x96xf32>
    %60 = arith.addf %59, %58 : vector<8x96xf32>
    %61 = arith.divf %59, %60 : vector<8x96xf32>
    %62 = vector.extract_strided_slice %55 {offsets = [0, 96], sizes = [8, 32], strides = [1, 1]} : vector<8x128xf32> to vector<8x32xf32>
    %63 = math.tanh %62 : vector<8x32xf32>
    %64 = vector.extract_strided_slice %61 {offsets = [0, 0], sizes = [8, 32], strides = [1, 1]} : vector<8x96xf32> to vector<8x32xf32>
    %65 = vector.extract_strided_slice %61 {offsets = [0, 32], sizes = [8, 32], strides = [1, 1]} : vector<8x96xf32> to vector<8x32xf32>
    %66 = vector.extract_strided_slice %61 {offsets = [0, 64], sizes = [8, 32], strides = [1, 1]} : vector<8x96xf32> to vector<8x32xf32>
    %67 = arith.mulf %65, %26 : vector<8x32xf32>
    %68 = arith.mulf %64, %63 : vector<8x32xf32>
    %69 = arith.addf %67, %68 : vector<8x32xf32>
    %70 = math.tanh %69 : vector<8x32xf32>
    %71 = arith.mulf %66, %70 : vector<8x32xf32>
    %c1_i32 = arith.constant 1 : i32
    %c8_i32_40 = arith.constant 8 : i32
    %72 = arith.muli %c1_i32, %c8_i32_40 : i32
    %73 = tpu.assume_multiple %72, 8 : i32
    %74 = arith.index_cast %73 : i32 to index
    %c0_41 = arith.constant 0 : index
    %75 = vector.load %arg17[%74, %c0_41] : memref<64x128xf32, #tpu.memory_space<vmem>>, vector<8x128xf32>
    %76 = arith.truncf %49 : vector<8x32xf32> to vector<8x32xbf16>
    %cst_42 = arith.constant dense<0.000000e+00> : vector<8x128xf32>
    %77 = tpu.matmul %76, %1, %cst_42 {dimension_numbers = #tpu.dot_dimension_numbers<[1], [0], [0], [1], [0, 0, 1, 1], [], []>} : vector<8x32xbf16>, vector<32x128xbf16>, vector<8x128xf32> -> vector<8x128xf32>
    %78 = arith.addf %75, %77 : vector<8x128xf32>
    %79 = vector.extract_strided_slice %78 {offsets = [0, 0], sizes = [8, 96], strides = [1, 1]} : vector<8x128xf32> to vector<8x96xf32>
    %80 = arith.negf %79 : vector<8x96xf32>
    %81 = math.exp %80 : vector<8x96xf32>
    %cst_43 = arith.constant 1.000000e+00 : f32
    %82 = vector.broadcast %cst_43 : f32 to vector<8x96xf32>
    %83 = arith.addf %82, %81 : vector<8x96xf32>
    %84 = arith.divf %82, %83 : vector<8x96xf32>
    %85 = vector.extract_strided_slice %78 {offsets = [0, 96], sizes = [8, 32], strides = [1, 1]} : vector<8x128xf32> to vector<8x32xf32>
    %86 = math.tanh %85 : vector<8x32xf32>
    %87 = vector.extract_strided_slice %84 {offsets = [0, 0], sizes = [8, 32], strides = [1, 1]} : vector<8x96xf32> to vector<8x32xf32>
    %88 = vector.extract_strided_slice %84 {offsets = [0, 32], sizes = [8, 32], strides = [1, 1]} : vector<8x96xf32> to vector<8x32xf32>
    %89 = vector.extract_strided_slice %84 {offsets = [0, 64], sizes = [8, 32], strides = [1, 1]} : vector<8x96xf32> to vector<8x32xf32>
    %90 = arith.mulf %88, %47 : vector<8x32xf32>
    %91 = arith.mulf %87, %86 : vector<8x32xf32>
    %92 = arith.addf %90, %91 : vector<8x32xf32>
    %93 = math.tanh %92 : vector<8x32xf32>
    %94 = arith.mulf %89, %93 : vector<8x32xf32>
    %95 = arith.truncf %94 : vector<8x32xf32> to vector<8x32xbf16>
    %cst_44 = arith.constant dense<0.000000e+00> : vector<8x128xf32>
    %96 = tpu.matmul %95, %3, %cst_44 {dimension_numbers = #tpu.dot_dimension_numbers<[1], [0], [0], [1], [0, 0, 1, 1], [], []>} : vector<8x32xbf16>, vector<32x128xbf16>, vector<8x128xf32> -> vector<8x128xf32>
    %97 = arith.truncf %71 : vector<8x32xf32> to vector<8x32xbf16>
    %cst_45 = arith.constant dense<0.000000e+00> : vector<8x128xf32>
    %98 = tpu.matmul %97, %4, %cst_45 {dimension_numbers = #tpu.dot_dimension_numbers<[1], [0], [0], [1], [0, 0, 1, 1], [], []>} : vector<8x32xbf16>, vector<32x128xbf16>, vector<8x128xf32> -> vector<8x128xf32>
    %99 = arith.addf %96, %98 : vector<8x128xf32>
    %100 = arith.addf %99, %7 : vector<8x128xf32>
    %101 = vector.extract_strided_slice %100 {offsets = [0, 0], sizes = [8, 96], strides = [1, 1]} : vector<8x128xf32> to vector<8x96xf32>
    %102 = arith.negf %101 : vector<8x96xf32>
    %103 = math.exp %102 : vector<8x96xf32>
    %cst_46 = arith.constant 1.000000e+00 : f32
    %104 = vector.broadcast %cst_46 : f32 to vector<8x96xf32>
    %105 = arith.addf %104, %103 : vector<8x96xf32>
    %106 = arith.divf %104, %105 : vector<8x96xf32>
    %107 = vector.extract_strided_slice %100 {offsets = [0, 96], sizes = [8, 32], strides = [1, 1]} : vector<8x128xf32> to vector<8x32xf32>
    %108 = math.tanh %107 : vector<8x32xf32>
    %109 = vector.extract_strided_slice %106 {offsets = [0, 0], sizes = [8, 32], strides = [1, 1]} : vector<8x96xf32> to vector<8x32xf32>
    %110 = vector.extract_strided_slice %106 {offsets = [0, 32], sizes = [8, 32], strides = [1, 1]} : vector<8x96xf32> to vector<8x32xf32>
    %111 = vector.extract_strided_slice %106 {offsets = [0, 64], sizes = [8, 32], strides = [1, 1]} : vector<8x96xf32> to vector<8x32xf32>
    %112 = arith.mulf %110, %69 : vector<8x32xf32>
    %113 = arith.mulf %109, %108 : vector<8x32xf32>
    %114 = arith.addf %112, %113 : vector<8x32xf32>
    %115 = math.tanh %114 : vector<8x32xf32>
    %116 = arith.mulf %111, %115 : vector<8x32xf32>
    %c2_i32 = arith.constant 2 : i32
    %c8_i32_47 = arith.constant 8 : i32
    %117 = arith.muli %c2_i32, %c8_i32_47 : i32
    %118 = tpu.assume_multiple %117, 8 : i32
    %119 = arith.index_cast %118 : i32 to index
    %c0_48 = arith.constant 0 : index
    %120 = vector.load %arg17[%119, %c0_48] : memref<64x128xf32, #tpu.memory_space<vmem>>, vector<8x128xf32>
    %121 = arith.truncf %94 : vector<8x32xf32> to vector<8x32xbf16>
    %cst_49 = arith.constant dense<0.000000e+00> : vector<8x128xf32>
    %122 = tpu.matmul %121, %1, %cst_49 {dimension_numbers = #tpu.dot_dimension_numbers<[1], [0], [0], [1], [0, 0, 1, 1], [], []>} : vector<8x32xbf16>, vector<32x128xbf16>, vector<8x128xf32> -> vector<8x128xf32>
    %123 = arith.addf %120, %122 : vector<8x128xf32>
    %124 = vector.extract_strided_slice %123 {offsets = [0, 0], sizes = [8, 96], strides = [1, 1]} : vector<8x128xf32> to vector<8x96xf32>
    %125 = arith.negf %124 : vector<8x96xf32>
    %126 = math.exp %125 : vector<8x96xf32>
    %cst_50 = arith.constant 1.000000e+00 : f32
    %127 = vector.broadcast %cst_50 : f32 to vector<8x96xf32>
    %128 = arith.addf %127, %126 : vector<8x96xf32>
    %129 = arith.divf %127, %128 : vector<8x96xf32>
    %130 = vector.extract_strided_slice %123 {offsets = [0, 96], sizes = [8, 32], strides = [1, 1]} : vector<8x128xf32> to vector<8x32xf32>
    %131 = math.tanh %130 : vector<8x32xf32>
    %132 = vector.extract_strided_slice %129 {offsets = [0, 0], sizes = [8, 32], strides = [1, 1]} : vector<8x96xf32> to vector<8x32xf32>
    %133 = vector.extract_strided_slice %129 {offsets = [0, 32], sizes = [8, 32], strides = [1, 1]} : vector<8x96xf32> to vector<8x32xf32>
    %134 = vector.extract_strided_slice %129 {offsets = [0, 64], sizes = [8, 32], strides = [1, 1]} : vector<8x96xf32> to vector<8x32xf32>
    %135 = arith.mulf %133, %92 : vector<8x32xf32>
    %136 = arith.mulf %132, %131 : vector<8x32xf32>
    %137 = arith.addf %135, %136 : vector<8x32xf32>
    %138 = math.tanh %137 : vector<8x32xf32>
    %139 = arith.mulf %134, %138 : vector<8x32xf32>
    %140 = arith.truncf %139 : vector<8x32xf32> to vector<8x32xbf16>
    %cst_51 = arith.constant dense<0.000000e+00> : vector<8x128xf32>
    %141 = tpu.matmul %140, %3, %cst_51 {dimension_numbers = #tpu.dot_dimension_numbers<[1], [0], [0], [1], [0, 0, 1, 1], [], []>} : vector<8x32xbf16>, vector<32x128xbf16>, vector<8x128xf32> -> vector<8x128xf32>
    %142 = arith.truncf %116 : vector<8x32xf32> to vector<8x32xbf16>
    %cst_52 = arith.constant dense<0.000000e+00> : vector<8x128xf32>
    %143 = tpu.matmul %142, %4, %cst_52 {dimension_numbers = #tpu.dot_dimension_numbers<[1], [0], [0], [1], [0, 0, 1, 1], [], []>} : vector<8x32xbf16>, vector<32x128xbf16>, vector<8x128xf32> -> vector<8x128xf32>
    %144 = arith.addf %141, %143 : vector<8x128xf32>
    %145 = arith.addf %144, %7 : vector<8x128xf32>
    %146 = vector.extract_strided_slice %145 {offsets = [0, 0], sizes = [8, 96], strides = [1, 1]} : vector<8x128xf32> to vector<8x96xf32>
    %147 = arith.negf %146 : vector<8x96xf32>
    %148 = math.exp %147 : vector<8x96xf32>
    %cst_53 = arith.constant 1.000000e+00 : f32
    %149 = vector.broadcast %cst_53 : f32 to vector<8x96xf32>
    %150 = arith.addf %149, %148 : vector<8x96xf32>
    %151 = arith.divf %149, %150 : vector<8x96xf32>
    %152 = vector.extract_strided_slice %145 {offsets = [0, 96], sizes = [8, 32], strides = [1, 1]} : vector<8x128xf32> to vector<8x32xf32>
    %153 = math.tanh %152 : vector<8x32xf32>
    %154 = vector.extract_strided_slice %151 {offsets = [0, 0], sizes = [8, 32], strides = [1, 1]} : vector<8x96xf32> to vector<8x32xf32>
    %155 = vector.extract_strided_slice %151 {offsets = [0, 32], sizes = [8, 32], strides = [1, 1]} : vector<8x96xf32> to vector<8x32xf32>
    %156 = vector.extract_strided_slice %151 {offsets = [0, 64], sizes = [8, 32], strides = [1, 1]} : vector<8x96xf32> to vector<8x32xf32>
    %157 = arith.mulf %155, %114 : vector<8x32xf32>
    %158 = arith.mulf %154, %153 : vector<8x32xf32>
    %159 = arith.addf %157, %158 : vector<8x32xf32>
    %160 = math.tanh %159 : vector<8x32xf32>
    %161 = arith.mulf %156, %160 : vector<8x32xf32>
    %c3_i32 = arith.constant 3 : i32
    %c8_i32_54 = arith.constant 8 : i32
    %162 = arith.muli %c3_i32, %c8_i32_54 : i32
    %163 = tpu.assume_multiple %162, 8 : i32
    %164 = arith.index_cast %163 : i32 to index
    %c0_55 = arith.constant 0 : index
    %165 = vector.load %arg17[%164, %c0_55] : memref<64x128xf32, #tpu.memory_space<vmem>>, vector<8x128xf32>
    %166 = arith.truncf %139 : vector<8x32xf32> to vector<8x32xbf16>
    %cst_56 = arith.constant dense<0.000000e+00> : vector<8x128xf32>
    %167 = tpu.matmul %166, %1, %cst_56 {dimension_numbers = #tpu.dot_dimension_numbers<[1], [0], [0], [1], [0, 0, 1, 1], [], []>} : vector<8x32xbf16>, vector<32x128xbf16>, vector<8x128xf32> -> vector<8x128xf32>
    %168 = arith.addf %165, %167 : vector<8x128xf32>
    %169 = vector.extract_strided_slice %168 {offsets = [0, 0], sizes = [8, 96], strides = [1, 1]} : vector<8x128xf32> to vector<8x96xf32>
    %170 = arith.negf %169 : vector<8x96xf32>
    %171 = math.exp %170 : vector<8x96xf32>
    %cst_57 = arith.constant 1.000000e+00 : f32
    %172 = vector.broadcast %cst_57 : f32 to vector<8x96xf32>
    %173 = arith.addf %172, %171 : vector<8x96xf32>
    %174 = arith.divf %172, %173 : vector<8x96xf32>
    %175 = vector.extract_strided_slice %168 {offsets = [0, 96], sizes = [8, 32], strides = [1, 1]} : vector<8x128xf32> to vector<8x32xf32>
    %176 = math.tanh %175 : vector<8x32xf32>
    %177 = vector.extract_strided_slice %174 {offsets = [0, 0], sizes = [8, 32], strides = [1, 1]} : vector<8x96xf32> to vector<8x32xf32>
    %178 = vector.extract_strided_slice %174 {offsets = [0, 32], sizes = [8, 32], strides = [1, 1]} : vector<8x96xf32> to vector<8x32xf32>
    %179 = vector.extract_strided_slice %174 {offsets = [0, 64], sizes = [8, 32], strides = [1, 1]} : vector<8x96xf32> to vector<8x32xf32>
    %180 = arith.mulf %178, %137 : vector<8x32xf32>
    %181 = arith.mulf %177, %176 : vector<8x32xf32>
    %182 = arith.addf %180, %181 : vector<8x32xf32>
    %183 = math.tanh %182 : vector<8x32xf32>
    %184 = arith.mulf %179, %183 : vector<8x32xf32>
    %185 = arith.truncf %184 : vector<8x32xf32> to vector<8x32xbf16>
    %cst_58 = arith.constant dense<0.000000e+00> : vector<8x128xf32>
    %186 = tpu.matmul %185, %3, %cst_58 {dimension_numbers = #tpu.dot_dimension_numbers<[1], [0], [0], [1], [0, 0, 1, 1], [], []>} : vector<8x32xbf16>, vector<32x128xbf16>, vector<8x128xf32> -> vector<8x128xf32>
    %187 = arith.truncf %161 : vector<8x32xf32> to vector<8x32xbf16>
    %cst_59 = arith.constant dense<0.000000e+00> : vector<8x128xf32>
    %188 = tpu.matmul %187, %4, %cst_59 {dimension_numbers = #tpu.dot_dimension_numbers<[1], [0], [0], [1], [0, 0, 1, 1], [], []>} : vector<8x32xbf16>, vector<32x128xbf16>, vector<8x128xf32> -> vector<8x128xf32>
    %189 = arith.addf %186, %188 : vector<8x128xf32>
    %190 = arith.addf %189, %7 : vector<8x128xf32>
    %191 = vector.extract_strided_slice %190 {offsets = [0, 0], sizes = [8, 96], strides = [1, 1]} : vector<8x128xf32> to vector<8x96xf32>
    %192 = arith.negf %191 : vector<8x96xf32>
    %193 = math.exp %192 : vector<8x96xf32>
    %cst_60 = arith.constant 1.000000e+00 : f32
    %194 = vector.broadcast %cst_60 : f32 to vector<8x96xf32>
    %195 = arith.addf %194, %193 : vector<8x96xf32>
    %196 = arith.divf %194, %195 : vector<8x96xf32>
    %197 = vector.extract_strided_slice %190 {offsets = [0, 96], sizes = [8, 32], strides = [1, 1]} : vector<8x128xf32> to vector<8x32xf32>
    %198 = math.tanh %197 : vector<8x32xf32>
    %199 = vector.extract_strided_slice %196 {offsets = [0, 0], sizes = [8, 32], strides = [1, 1]} : vector<8x96xf32> to vector<8x32xf32>
    %200 = vector.extract_strided_slice %196 {offsets = [0, 32], sizes = [8, 32], strides = [1, 1]} : vector<8x96xf32> to vector<8x32xf32>
    %201 = vector.extract_strided_slice %196 {offsets = [0, 64], sizes = [8, 32], strides = [1, 1]} : vector<8x96xf32> to vector<8x32xf32>
    %202 = arith.mulf %200, %159 : vector<8x32xf32>
    %203 = arith.mulf %199, %198 : vector<8x32xf32>
    %204 = arith.addf %202, %203 : vector<8x32xf32>
    %205 = math.tanh %204 : vector<8x32xf32>
    %206 = arith.mulf %201, %205 : vector<8x32xf32>
    %c4_i32 = arith.constant 4 : i32
    %c8_i32_61 = arith.constant 8 : i32
    %207 = arith.muli %c4_i32, %c8_i32_61 : i32
    %208 = tpu.assume_multiple %207, 8 : i32
    %209 = arith.index_cast %208 : i32 to index
    %c0_62 = arith.constant 0 : index
    %210 = vector.load %arg17[%209, %c0_62] : memref<64x128xf32, #tpu.memory_space<vmem>>, vector<8x128xf32>
    %211 = arith.truncf %184 : vector<8x32xf32> to vector<8x32xbf16>
    %cst_63 = arith.constant dense<0.000000e+00> : vector<8x128xf32>
    %212 = tpu.matmul %211, %1, %cst_63 {dimension_numbers = #tpu.dot_dimension_numbers<[1], [0], [0], [1], [0, 0, 1, 1], [], []>} : vector<8x32xbf16>, vector<32x128xbf16>, vector<8x128xf32> -> vector<8x128xf32>
    %213 = arith.addf %210, %212 : vector<8x128xf32>
    %214 = vector.extract_strided_slice %213 {offsets = [0, 0], sizes = [8, 96], strides = [1, 1]} : vector<8x128xf32> to vector<8x96xf32>
    %215 = arith.negf %214 : vector<8x96xf32>
    %216 = math.exp %215 : vector<8x96xf32>
    %cst_64 = arith.constant 1.000000e+00 : f32
    %217 = vector.broadcast %cst_64 : f32 to vector<8x96xf32>
    %218 = arith.addf %217, %216 : vector<8x96xf32>
    %219 = arith.divf %217, %218 : vector<8x96xf32>
    %220 = vector.extract_strided_slice %213 {offsets = [0, 96], sizes = [8, 32], strides = [1, 1]} : vector<8x128xf32> to vector<8x32xf32>
    %221 = math.tanh %220 : vector<8x32xf32>
    %222 = vector.extract_strided_slice %219 {offsets = [0, 0], sizes = [8, 32], strides = [1, 1]} : vector<8x96xf32> to vector<8x32xf32>
    %223 = vector.extract_strided_slice %219 {offsets = [0, 32], sizes = [8, 32], strides = [1, 1]} : vector<8x96xf32> to vector<8x32xf32>
    %224 = vector.extract_strided_slice %219 {offsets = [0, 64], sizes = [8, 32], strides = [1, 1]} : vector<8x96xf32> to vector<8x32xf32>
    %225 = arith.mulf %223, %182 : vector<8x32xf32>
    %226 = arith.mulf %222, %221 : vector<8x32xf32>
    %227 = arith.addf %225, %226 : vector<8x32xf32>
    %228 = math.tanh %227 : vector<8x32xf32>
    %229 = arith.mulf %224, %228 : vector<8x32xf32>
    %230 = arith.truncf %229 : vector<8x32xf32> to vector<8x32xbf16>
    %cst_65 = arith.constant dense<0.000000e+00> : vector<8x128xf32>
    %231 = tpu.matmul %230, %3, %cst_65 {dimension_numbers = #tpu.dot_dimension_numbers<[1], [0], [0], [1], [0, 0, 1, 1], [], []>} : vector<8x32xbf16>, vector<32x128xbf16>, vector<8x128xf32> -> vector<8x128xf32>
    %232 = arith.truncf %206 : vector<8x32xf32> to vector<8x32xbf16>
    %cst_66 = arith.constant dense<0.000000e+00> : vector<8x128xf32>
    %233 = tpu.matmul %232, %4, %cst_66 {dimension_numbers = #tpu.dot_dimension_numbers<[1], [0], [0], [1], [0, 0, 1, 1], [], []>} : vector<8x32xbf16>, vector<32x128xbf16>, vector<8x128xf32> -> vector<8x128xf32>
    %234 = arith.addf %231, %233 : vector<8x128xf32>
    %235 = arith.addf %234, %7 : vector<8x128xf32>
    %236 = vector.extract_strided_slice %235 {offsets = [0, 0], sizes = [8, 96], strides = [1, 1]} : vector<8x128xf32> to vector<8x96xf32>
    %237 = arith.negf %236 : vector<8x96xf32>
    %238 = math.exp %237 : vector<8x96xf32>
    %cst_67 = arith.constant 1.000000e+00 : f32
    %239 = vector.broadcast %cst_67 : f32 to vector<8x96xf32>
    %240 = arith.addf %239, %238 : vector<8x96xf32>
    %241 = arith.divf %239, %240 : vector<8x96xf32>
    %242 = vector.extract_strided_slice %235 {offsets = [0, 96], sizes = [8, 32], strides = [1, 1]} : vector<8x128xf32> to vector<8x32xf32>
    %243 = math.tanh %242 : vector<8x32xf32>
    %244 = vector.extract_strided_slice %241 {offsets = [0, 0], sizes = [8, 32], strides = [1, 1]} : vector<8x96xf32> to vector<8x32xf32>
    %245 = vector.extract_strided_slice %241 {offsets = [0, 32], sizes = [8, 32], strides = [1, 1]} : vector<8x96xf32> to vector<8x32xf32>
    %246 = vector.extract_strided_slice %241 {offsets = [0, 64], sizes = [8, 32], strides = [1, 1]} : vector<8x96xf32> to vector<8x32xf32>
    %247 = arith.mulf %245, %204 : vector<8x32xf32>
    %248 = arith.mulf %244, %243 : vector<8x32xf32>
    %249 = arith.addf %247, %248 : vector<8x32xf32>
    %250 = math.tanh %249 : vector<8x32xf32>
    %251 = arith.mulf %246, %250 : vector<8x32xf32>
    %c5_i32 = arith.constant 5 : i32
    %c8_i32_68 = arith.constant 8 : i32
    %252 = arith.muli %c5_i32, %c8_i32_68 : i32
    %253 = tpu.assume_multiple %252, 8 : i32
    %254 = arith.index_cast %253 : i32 to index
    %c0_69 = arith.constant 0 : index
    %255 = vector.load %arg17[%254, %c0_69] : memref<64x128xf32, #tpu.memory_space<vmem>>, vector<8x128xf32>
    %256 = arith.truncf %229 : vector<8x32xf32> to vector<8x32xbf16>
    %cst_70 = arith.constant dense<0.000000e+00> : vector<8x128xf32>
    %257 = tpu.matmul %256, %1, %cst_70 {dimension_numbers = #tpu.dot_dimension_numbers<[1], [0], [0], [1], [0, 0, 1, 1], [], []>} : vector<8x32xbf16>, vector<32x128xbf16>, vector<8x128xf32> -> vector<8x128xf32>
    %258 = arith.addf %255, %257 : vector<8x128xf32>
    %259 = vector.extract_strided_slice %258 {offsets = [0, 0], sizes = [8, 96], strides = [1, 1]} : vector<8x128xf32> to vector<8x96xf32>
    %260 = arith.negf %259 : vector<8x96xf32>
    %261 = math.exp %260 : vector<8x96xf32>
    %cst_71 = arith.constant 1.000000e+00 : f32
    %262 = vector.broadcast %cst_71 : f32 to vector<8x96xf32>
    %263 = arith.addf %262, %261 : vector<8x96xf32>
    %264 = arith.divf %262, %263 : vector<8x96xf32>
    %265 = vector.extract_strided_slice %258 {offsets = [0, 96], sizes = [8, 32], strides = [1, 1]} : vector<8x128xf32> to vector<8x32xf32>
    %266 = math.tanh %265 : vector<8x32xf32>
    %267 = vector.extract_strided_slice %264 {offsets = [0, 0], sizes = [8, 32], strides = [1, 1]} : vector<8x96xf32> to vector<8x32xf32>
    %268 = vector.extract_strided_slice %264 {offsets = [0, 32], sizes = [8, 32], strides = [1, 1]} : vector<8x96xf32> to vector<8x32xf32>
    %269 = vector.extract_strided_slice %264 {offsets = [0, 64], sizes = [8, 32], strides = [1, 1]} : vector<8x96xf32> to vector<8x32xf32>
    %270 = arith.mulf %268, %227 : vector<8x32xf32>
    %271 = arith.mulf %267, %266 : vector<8x32xf32>
    %272 = arith.addf %270, %271 : vector<8x32xf32>
    %273 = math.tanh %272 : vector<8x32xf32>
    %274 = arith.mulf %269, %273 : vector<8x32xf32>
    %275 = arith.truncf %274 : vector<8x32xf32> to vector<8x32xbf16>
    %cst_72 = arith.constant dense<0.000000e+00> : vector<8x128xf32>
    %276 = tpu.matmul %275, %3, %cst_72 {dimension_numbers = #tpu.dot_dimension_numbers<[1], [0], [0], [1], [0, 0, 1, 1], [], []>} : vector<8x32xbf16>, vector<32x128xbf16>, vector<8x128xf32> -> vector<8x128xf32>
    %277 = arith.truncf %251 : vector<8x32xf32> to vector<8x32xbf16>
    %cst_73 = arith.constant dense<0.000000e+00> : vector<8x128xf32>
    %278 = tpu.matmul %277, %4, %cst_73 {dimension_numbers = #tpu.dot_dimension_numbers<[1], [0], [0], [1], [0, 0, 1, 1], [], []>} : vector<8x32xbf16>, vector<32x128xbf16>, vector<8x128xf32> -> vector<8x128xf32>
    %279 = arith.addf %276, %278 : vector<8x128xf32>
    %280 = arith.addf %279, %7 : vector<8x128xf32>
    %281 = vector.extract_strided_slice %280 {offsets = [0, 0], sizes = [8, 96], strides = [1, 1]} : vector<8x128xf32> to vector<8x96xf32>
    %282 = arith.negf %281 : vector<8x96xf32>
    %283 = math.exp %282 : vector<8x96xf32>
    %cst_74 = arith.constant 1.000000e+00 : f32
    %284 = vector.broadcast %cst_74 : f32 to vector<8x96xf32>
    %285 = arith.addf %284, %283 : vector<8x96xf32>
    %286 = arith.divf %284, %285 : vector<8x96xf32>
    %287 = vector.extract_strided_slice %280 {offsets = [0, 96], sizes = [8, 32], strides = [1, 1]} : vector<8x128xf32> to vector<8x32xf32>
    %288 = math.tanh %287 : vector<8x32xf32>
    %289 = vector.extract_strided_slice %286 {offsets = [0, 0], sizes = [8, 32], strides = [1, 1]} : vector<8x96xf32> to vector<8x32xf32>
    %290 = vector.extract_strided_slice %286 {offsets = [0, 32], sizes = [8, 32], strides = [1, 1]} : vector<8x96xf32> to vector<8x32xf32>
    %291 = vector.extract_strided_slice %286 {offsets = [0, 64], sizes = [8, 32], strides = [1, 1]} : vector<8x96xf32> to vector<8x32xf32>
    %292 = arith.mulf %290, %249 : vector<8x32xf32>
    %293 = arith.mulf %289, %288 : vector<8x32xf32>
    %294 = arith.addf %292, %293 : vector<8x32xf32>
    %295 = math.tanh %294 : vector<8x32xf32>
    %296 = arith.mulf %291, %295 : vector<8x32xf32>
    %c6_i32 = arith.constant 6 : i32
    %c8_i32_75 = arith.constant 8 : i32
    %297 = arith.muli %c6_i32, %c8_i32_75 : i32
    %298 = tpu.assume_multiple %297, 8 : i32
    %299 = arith.index_cast %298 : i32 to index
    %c0_76 = arith.constant 0 : index
    %300 = vector.load %arg17[%299, %c0_76] : memref<64x128xf32, #tpu.memory_space<vmem>>, vector<8x128xf32>
    %301 = arith.truncf %274 : vector<8x32xf32> to vector<8x32xbf16>
    %cst_77 = arith.constant dense<0.000000e+00> : vector<8x128xf32>
    %302 = tpu.matmul %301, %1, %cst_77 {dimension_numbers = #tpu.dot_dimension_numbers<[1], [0], [0], [1], [0, 0, 1, 1], [], []>} : vector<8x32xbf16>, vector<32x128xbf16>, vector<8x128xf32> -> vector<8x128xf32>
    %303 = arith.addf %300, %302 : vector<8x128xf32>
    %304 = vector.extract_strided_slice %303 {offsets = [0, 0], sizes = [8, 96], strides = [1, 1]} : vector<8x128xf32> to vector<8x96xf32>
    %305 = arith.negf %304 : vector<8x96xf32>
    %306 = math.exp %305 : vector<8x96xf32>
    %cst_78 = arith.constant 1.000000e+00 : f32
    %307 = vector.broadcast %cst_78 : f32 to vector<8x96xf32>
    %308 = arith.addf %307, %306 : vector<8x96xf32>
    %309 = arith.divf %307, %308 : vector<8x96xf32>
    %310 = vector.extract_strided_slice %303 {offsets = [0, 96], sizes = [8, 32], strides = [1, 1]} : vector<8x128xf32> to vector<8x32xf32>
    %311 = math.tanh %310 : vector<8x32xf32>
    %312 = vector.extract_strided_slice %309 {offsets = [0, 0], sizes = [8, 32], strides = [1, 1]} : vector<8x96xf32> to vector<8x32xf32>
    %313 = vector.extract_strided_slice %309 {offsets = [0, 32], sizes = [8, 32], strides = [1, 1]} : vector<8x96xf32> to vector<8x32xf32>
    %314 = vector.extract_strided_slice %309 {offsets = [0, 64], sizes = [8, 32], strides = [1, 1]} : vector<8x96xf32> to vector<8x32xf32>
    %315 = arith.mulf %313, %272 : vector<8x32xf32>
    %316 = arith.mulf %312, %311 : vector<8x32xf32>
    %317 = arith.addf %315, %316 : vector<8x32xf32>
    %318 = math.tanh %317 : vector<8x32xf32>
    %319 = arith.mulf %314, %318 : vector<8x32xf32>
    %320 = arith.truncf %319 : vector<8x32xf32> to vector<8x32xbf16>
    %cst_79 = arith.constant dense<0.000000e+00> : vector<8x128xf32>
    %321 = tpu.matmul %320, %3, %cst_79 {dimension_numbers = #tpu.dot_dimension_numbers<[1], [0], [0], [1], [0, 0, 1, 1], [], []>} : vector<8x32xbf16>, vector<32x128xbf16>, vector<8x128xf32> -> vector<8x128xf32>
    %322 = arith.truncf %296 : vector<8x32xf32> to vector<8x32xbf16>
    %cst_80 = arith.constant dense<0.000000e+00> : vector<8x128xf32>
    %323 = tpu.matmul %322, %4, %cst_80 {dimension_numbers = #tpu.dot_dimension_numbers<[1], [0], [0], [1], [0, 0, 1, 1], [], []>} : vector<8x32xbf16>, vector<32x128xbf16>, vector<8x128xf32> -> vector<8x128xf32>
    %324 = arith.addf %321, %323 : vector<8x128xf32>
    %325 = arith.addf %324, %7 : vector<8x128xf32>
    %326 = vector.extract_strided_slice %325 {offsets = [0, 0], sizes = [8, 96], strides = [1, 1]} : vector<8x128xf32> to vector<8x96xf32>
    %327 = arith.negf %326 : vector<8x96xf32>
    %328 = math.exp %327 : vector<8x96xf32>
    %cst_81 = arith.constant 1.000000e+00 : f32
    %329 = vector.broadcast %cst_81 : f32 to vector<8x96xf32>
    %330 = arith.addf %329, %328 : vector<8x96xf32>
    %331 = arith.divf %329, %330 : vector<8x96xf32>
    %332 = vector.extract_strided_slice %325 {offsets = [0, 96], sizes = [8, 32], strides = [1, 1]} : vector<8x128xf32> to vector<8x32xf32>
    %333 = math.tanh %332 : vector<8x32xf32>
    %334 = vector.extract_strided_slice %331 {offsets = [0, 0], sizes = [8, 32], strides = [1, 1]} : vector<8x96xf32> to vector<8x32xf32>
    %335 = vector.extract_strided_slice %331 {offsets = [0, 32], sizes = [8, 32], strides = [1, 1]} : vector<8x96xf32> to vector<8x32xf32>
    %336 = vector.extract_strided_slice %331 {offsets = [0, 64], sizes = [8, 32], strides = [1, 1]} : vector<8x96xf32> to vector<8x32xf32>
    %337 = arith.mulf %335, %294 : vector<8x32xf32>
    %338 = arith.mulf %334, %333 : vector<8x32xf32>
    %339 = arith.addf %337, %338 : vector<8x32xf32>
    %340 = math.tanh %339 : vector<8x32xf32>
    %341 = arith.mulf %336, %340 : vector<8x32xf32>
    %c7_i32 = arith.constant 7 : i32
    %c8_i32_82 = arith.constant 8 : i32
    %342 = arith.muli %c7_i32, %c8_i32_82 : i32
    %343 = tpu.assume_multiple %342, 8 : i32
    %344 = arith.index_cast %343 : i32 to index
    %c0_83 = arith.constant 0 : index
    %345 = vector.load %arg17[%344, %c0_83] : memref<64x128xf32, #tpu.memory_space<vmem>>, vector<8x128xf32>
    %346 = arith.truncf %319 : vector<8x32xf32> to vector<8x32xbf16>
    %cst_84 = arith.constant dense<0.000000e+00> : vector<8x128xf32>
    %347 = tpu.matmul %346, %1, %cst_84 {dimension_numbers = #tpu.dot_dimension_numbers<[1], [0], [0], [1], [0, 0, 1, 1], [], []>} : vector<8x32xbf16>, vector<32x128xbf16>, vector<8x128xf32> -> vector<8x128xf32>
    %348 = arith.addf %345, %347 : vector<8x128xf32>
    %349 = vector.extract_strided_slice %348 {offsets = [0, 0], sizes = [8, 96], strides = [1, 1]} : vector<8x128xf32> to vector<8x96xf32>
    %350 = arith.negf %349 : vector<8x96xf32>
    %351 = math.exp %350 : vector<8x96xf32>
    %cst_85 = arith.constant 1.000000e+00 : f32
    %352 = vector.broadcast %cst_85 : f32 to vector<8x96xf32>
    %353 = arith.addf %352, %351 : vector<8x96xf32>
    %354 = arith.divf %352, %353 : vector<8x96xf32>
    %355 = vector.extract_strided_slice %348 {offsets = [0, 96], sizes = [8, 32], strides = [1, 1]} : vector<8x128xf32> to vector<8x32xf32>
    %356 = math.tanh %355 : vector<8x32xf32>
    %357 = vector.extract_strided_slice %354 {offsets = [0, 0], sizes = [8, 32], strides = [1, 1]} : vector<8x96xf32> to vector<8x32xf32>
    %358 = vector.extract_strided_slice %354 {offsets = [0, 32], sizes = [8, 32], strides = [1, 1]} : vector<8x96xf32> to vector<8x32xf32>
    %359 = vector.extract_strided_slice %354 {offsets = [0, 64], sizes = [8, 32], strides = [1, 1]} : vector<8x96xf32> to vector<8x32xf32>
    %360 = arith.mulf %358, %317 : vector<8x32xf32>
    %361 = arith.mulf %357, %356 : vector<8x32xf32>
    %362 = arith.addf %360, %361 : vector<8x32xf32>
    %363 = math.tanh %362 : vector<8x32xf32>
    %364 = arith.mulf %359, %363 : vector<8x32xf32>
    %365 = arith.truncf %364 : vector<8x32xf32> to vector<8x32xbf16>
    %cst_86 = arith.constant dense<0.000000e+00> : vector<8x128xf32>
    %366 = tpu.matmul %365, %3, %cst_86 {dimension_numbers = #tpu.dot_dimension_numbers<[1], [0], [0], [1], [0, 0, 1, 1], [], []>} : vector<8x32xbf16>, vector<32x128xbf16>, vector<8x128xf32> -> vector<8x128xf32>
    %367 = arith.truncf %341 : vector<8x32xf32> to vector<8x32xbf16>
    %cst_87 = arith.constant dense<0.000000e+00> : vector<8x128xf32>
    %368 = tpu.matmul %367, %4, %cst_87 {dimension_numbers = #tpu.dot_dimension_numbers<[1], [0], [0], [1], [0, 0, 1, 1], [], []>} : vector<8x32xbf16>, vector<32x128xbf16>, vector<8x128xf32> -> vector<8x128xf32>
    %369 = arith.addf %366, %368 : vector<8x128xf32>
    %370 = arith.addf %369, %7 : vector<8x128xf32>
    %371 = vector.extract_strided_slice %370 {offsets = [0, 0], sizes = [8, 96], strides = [1, 1]} : vector<8x128xf32> to vector<8x96xf32>
    %372 = arith.negf %371 : vector<8x96xf32>
    %373 = math.exp %372 : vector<8x96xf32>
    %cst_88 = arith.constant 1.000000e+00 : f32
    %374 = vector.broadcast %cst_88 : f32 to vector<8x96xf32>
    %375 = arith.addf %374, %373 : vector<8x96xf32>
    %376 = arith.divf %374, %375 : vector<8x96xf32>
    %377 = vector.extract_strided_slice %370 {offsets = [0, 96], sizes = [8, 32], strides = [1, 1]} : vector<8x128xf32> to vector<8x32xf32>
    %378 = math.tanh %377 : vector<8x32xf32>
    %379 = vector.extract_strided_slice %376 {offsets = [0, 0], sizes = [8, 32], strides = [1, 1]} : vector<8x96xf32> to vector<8x32xf32>
    %380 = vector.extract_strided_slice %376 {offsets = [0, 32], sizes = [8, 32], strides = [1, 1]} : vector<8x96xf32> to vector<8x32xf32>
    %381 = vector.extract_strided_slice %376 {offsets = [0, 64], sizes = [8, 32], strides = [1, 1]} : vector<8x96xf32> to vector<8x32xf32>
    %382 = arith.mulf %380, %339 : vector<8x32xf32>
    %383 = arith.mulf %379, %378 : vector<8x32xf32>
    %384 = arith.addf %382, %383 : vector<8x32xf32>
    %385 = math.tanh %384 : vector<8x32xf32>
    %386 = arith.mulf %381, %385 : vector<8x32xf32>
    %c8_i32_89 = arith.constant 8 : i32
    %387 = arith.truncf %386 : vector<8x32xf32> to vector<8x32xbf16>
    %cst_90 = arith.constant dense<0.000000e+00> : vector<8x128xf32>
    %388 = tpu.matmul %387, %8, %cst_90 {dimension_numbers = #tpu.dot_dimension_numbers<[1], [0], [0], [1], [0, 0, 1, 1], [], []>} : vector<8x32xbf16>, vector<32x128xbf16>, vector<8x128xf32> -> vector<8x128xf32>
    %389 = vector.broadcast %10 : vector<1x128xf32> to vector<8x128xf32>
    %390 = arith.addf %388, %389 : vector<8x128xf32>
    %c0_i32_91 = arith.constant 0 : i32
    %391 = arith.truncf %386 : vector<8x32xf32> to vector<8x32xbf16>
    %cst_92 = arith.constant dense<0.000000e+00> : vector<8x128xf32>
    %392 = tpu.matmul %391, %9, %cst_92 {dimension_numbers = #tpu.dot_dimension_numbers<[1], [0], [0], [1], [0, 0, 1, 1], [], []>} : vector<8x32xbf16>, vector<32x128xbf16>, vector<8x128xf32> -> vector<8x128xf32>
    %393 = arith.addf %390, %392 : vector<8x128xf32>
    %394 = vector.extract_strided_slice %393 {offsets = [0, 0], sizes = [8, 96], strides = [1, 1]} : vector<8x128xf32> to vector<8x96xf32>
    %395 = arith.negf %394 : vector<8x96xf32>
    %396 = math.exp %395 : vector<8x96xf32>
    %cst_93 = arith.constant 1.000000e+00 : f32
    %397 = vector.broadcast %cst_93 : f32 to vector<8x96xf32>
    %398 = arith.addf %397, %396 : vector<8x96xf32>
    %399 = arith.divf %397, %398 : vector<8x96xf32>
    %400 = vector.extract_strided_slice %393 {offsets = [0, 96], sizes = [8, 32], strides = [1, 1]} : vector<8x128xf32> to vector<8x32xf32>
    %401 = math.tanh %400 : vector<8x32xf32>
    %402 = vector.extract_strided_slice %399 {offsets = [0, 0], sizes = [8, 32], strides = [1, 1]} : vector<8x96xf32> to vector<8x32xf32>
    %403 = vector.extract_strided_slice %399 {offsets = [0, 32], sizes = [8, 32], strides = [1, 1]} : vector<8x96xf32> to vector<8x32xf32>
    %404 = vector.extract_strided_slice %399 {offsets = [0, 64], sizes = [8, 32], strides = [1, 1]} : vector<8x96xf32> to vector<8x32xf32>
    %405 = arith.mulf %403, %384 : vector<8x32xf32>
    %406 = arith.mulf %402, %401 : vector<8x32xf32>
    %407 = arith.addf %405, %406 : vector<8x32xf32>
    %408 = math.tanh %407 : vector<8x32xf32>
    %409 = arith.mulf %404, %408 : vector<8x32xf32>
    %410 = arith.truncf %409 : vector<8x32xf32> to vector<8x32xbf16>
    %cst_94 = arith.constant dense<0.000000e+00> : vector<8x128xf32>
    %411 = tpu.matmul %410, %11, %cst_94 {dimension_numbers = #tpu.dot_dimension_numbers<[1], [0], [0], [1], [0, 0, 1, 1], [], []>} : vector<8x32xbf16>, vector<32x128xbf16>, vector<8x128xf32> -> vector<8x128xf32>
    %412 = arith.truncf %386 : vector<8x32xf32> to vector<8x32xbf16>
    %cst_95 = arith.constant dense<0.000000e+00> : vector<8x128xf32>
    %413 = tpu.matmul %412, %12, %cst_95 {dimension_numbers = #tpu.dot_dimension_numbers<[1], [0], [0], [1], [0, 0, 1, 1], [], []>} : vector<8x32xbf16>, vector<32x128xbf16>, vector<8x128xf32> -> vector<8x128xf32>
    %414 = arith.addf %411, %413 : vector<8x128xf32>
    %415 = arith.addf %414, %15 : vector<8x128xf32>
    %416 = vector.extract_strided_slice %415 {offsets = [0, 0], sizes = [8, 96], strides = [1, 1]} : vector<8x128xf32> to vector<8x96xf32>
    %417 = arith.negf %416 : vector<8x96xf32>
    %418 = math.exp %417 : vector<8x96xf32>
    %cst_96 = arith.constant 1.000000e+00 : f32
    %419 = vector.broadcast %cst_96 : f32 to vector<8x96xf32>
    %420 = arith.addf %419, %418 : vector<8x96xf32>
    %421 = arith.divf %419, %420 : vector<8x96xf32>
    %422 = vector.extract_strided_slice %415 {offsets = [0, 96], sizes = [8, 32], strides = [1, 1]} : vector<8x128xf32> to vector<8x32xf32>
    %423 = math.tanh %422 : vector<8x32xf32>
    %424 = vector.extract_strided_slice %421 {offsets = [0, 0], sizes = [8, 32], strides = [1, 1]} : vector<8x96xf32> to vector<8x32xf32>
    %425 = vector.extract_strided_slice %421 {offsets = [0, 32], sizes = [8, 32], strides = [1, 1]} : vector<8x96xf32> to vector<8x32xf32>
    %426 = vector.extract_strided_slice %421 {offsets = [0, 64], sizes = [8, 32], strides = [1, 1]} : vector<8x96xf32> to vector<8x32xf32>
    %427 = arith.mulf %425, %384 : vector<8x32xf32>
    %428 = arith.mulf %424, %423 : vector<8x32xf32>
    %429 = arith.addf %427, %428 : vector<8x32xf32>
    %430 = math.tanh %429 : vector<8x32xf32>
    %431 = arith.mulf %426, %430 : vector<8x32xf32>
    %432 = arith.index_cast %c0_i32_91 : i32 to index
    %c0_97 = arith.constant 0 : index
    %c0_98 = arith.constant 0 : index
    %433 = vector.load %arg18[%432, %c0_97, %c0_98] : memref<8x8x32xf32, #tpu.memory_space<vmem>>, vector<1x8x32xf32>
    %434 = vector.shape_cast %433 : vector<1x8x32xf32> to vector<8x32xf32>
    %435 = vector.shape_cast %431 : vector<8x32xf32> to vector<1x8x32xf32>
    tpu.vector_store %arg18[%432, %c0_97, %c0_98], %435 {strides = array<i32>} : memref<8x8x32xf32, #tpu.memory_space<vmem>>, vector<1x8x32xf32>,
    %c1_i32_99 = arith.constant 1 : i32
    %436 = arith.truncf %409 : vector<8x32xf32> to vector<8x32xbf16>
    %cst_100 = arith.constant dense<0.000000e+00> : vector<8x128xf32>
    %437 = tpu.matmul %436, %9, %cst_100 {dimension_numbers = #tpu.dot_dimension_numbers<[1], [0], [0], [1], [0, 0, 1, 1], [], []>} : vector<8x32xbf16>, vector<32x128xbf16>, vector<8x128xf32> -> vector<8x128xf32>
    %438 = arith.addf %390, %437 : vector<8x128xf32>
    %439 = vector.extract_strided_slice %438 {offsets = [0, 0], sizes = [8, 96], strides = [1, 1]} : vector<8x128xf32> to vector<8x96xf32>
    %440 = arith.negf %439 : vector<8x96xf32>
    %441 = math.exp %440 : vector<8x96xf32>
    %cst_101 = arith.constant 1.000000e+00 : f32
    %442 = vector.broadcast %cst_101 : f32 to vector<8x96xf32>
    %443 = arith.addf %442, %441 : vector<8x96xf32>
    %444 = arith.divf %442, %443 : vector<8x96xf32>
    %445 = vector.extract_strided_slice %438 {offsets = [0, 96], sizes = [8, 32], strides = [1, 1]} : vector<8x128xf32> to vector<8x32xf32>
    %446 = math.tanh %445 : vector<8x32xf32>
    %447 = vector.extract_strided_slice %444 {offsets = [0, 0], sizes = [8, 32], strides = [1, 1]} : vector<8x96xf32> to vector<8x32xf32>
    %448 = vector.extract_strided_slice %444 {offsets = [0, 32], sizes = [8, 32], strides = [1, 1]} : vector<8x96xf32> to vector<8x32xf32>
    %449 = vector.extract_strided_slice %444 {offsets = [0, 64], sizes = [8, 32], strides = [1, 1]} : vector<8x96xf32> to vector<8x32xf32>
    %450 = arith.mulf %448, %407 : vector<8x32xf32>
    %451 = arith.mulf %447, %446 : vector<8x32xf32>
    %452 = arith.addf %450, %451 : vector<8x32xf32>
    %453 = math.tanh %452 : vector<8x32xf32>
    %454 = arith.mulf %449, %453 : vector<8x32xf32>
    %455 = arith.truncf %454 : vector<8x32xf32> to vector<8x32xbf16>
    %cst_102 = arith.constant dense<0.000000e+00> : vector<8x128xf32>
    %456 = tpu.matmul %455, %11, %cst_102 {dimension_numbers = #tpu.dot_dimension_numbers<[1], [0], [0], [1], [0, 0, 1, 1], [], []>} : vector<8x32xbf16>, vector<32x128xbf16>, vector<8x128xf32> -> vector<8x128xf32>
    %457 = arith.truncf %431 : vector<8x32xf32> to vector<8x32xbf16>
    %cst_103 = arith.constant dense<0.000000e+00> : vector<8x128xf32>
    %458 = tpu.matmul %457, %12, %cst_103 {dimension_numbers = #tpu.dot_dimension_numbers<[1], [0], [0], [1], [0, 0, 1, 1], [], []>} : vector<8x32xbf16>, vector<32x128xbf16>, vector<8x128xf32> -> vector<8x128xf32>
    %459 = arith.addf %456, %458 : vector<8x128xf32>
    %460 = arith.addf %459, %15 : vector<8x128xf32>
    %461 = vector.extract_strided_slice %460 {offsets = [0, 0], sizes = [8, 96], strides = [1, 1]} : vector<8x128xf32> to vector<8x96xf32>
    %462 = arith.negf %461 : vector<8x96xf32>
    %463 = math.exp %462 : vector<8x96xf32>
    %cst_104 = arith.constant 1.000000e+00 : f32
    %464 = vector.broadcast %cst_104 : f32 to vector<8x96xf32>
    %465 = arith.addf %464, %463 : vector<8x96xf32>
    %466 = arith.divf %464, %465 : vector<8x96xf32>
    %467 = vector.extract_strided_slice %460 {offsets = [0, 96], sizes = [8, 32], strides = [1, 1]} : vector<8x128xf32> to vector<8x32xf32>
    %468 = math.tanh %467 : vector<8x32xf32>
    %469 = vector.extract_strided_slice %466 {offsets = [0, 0], sizes = [8, 32], strides = [1, 1]} : vector<8x96xf32> to vector<8x32xf32>
    %470 = vector.extract_strided_slice %466 {offsets = [0, 32], sizes = [8, 32], strides = [1, 1]} : vector<8x96xf32> to vector<8x32xf32>
    %471 = vector.extract_strided_slice %466 {offsets = [0, 64], sizes = [8, 32], strides = [1, 1]} : vector<8x96xf32> to vector<8x32xf32>
    %472 = arith.mulf %470, %429 : vector<8x32xf32>
    %473 = arith.mulf %469, %468 : vector<8x32xf32>
    %474 = arith.addf %472, %473 : vector<8x32xf32>
    %475 = math.tanh %474 : vector<8x32xf32>
    %476 = arith.mulf %471, %475 : vector<8x32xf32>
    %477 = arith.index_cast %c1_i32_99 : i32 to index
    %c0_105 = arith.constant 0 : index
    %c0_106 = arith.constant 0 : index
    %478 = vector.load %arg18[%477, %c0_105, %c0_106] : memref<8x8x32xf32, #tpu.memory_space<vmem>>, vector<1x8x32xf32>
    %479 = vector.shape_cast %478 : vector<1x8x32xf32> to vector<8x32xf32>
    %480 = vector.shape_cast %476 : vector<8x32xf32> to vector<1x8x32xf32>
    tpu.vector_store %arg18[%477, %c0_105, %c0_106], %480 {strides = array<i32>} : memref<8x8x32xf32, #tpu.memory_space<vmem>>, vector<1x8x32xf32>,
    %c2_i32_107 = arith.constant 2 : i32
    %481 = arith.truncf %454 : vector<8x32xf32> to vector<8x32xbf16>
    %cst_108 = arith.constant dense<0.000000e+00> : vector<8x128xf32>
    %482 = tpu.matmul %481, %9, %cst_108 {dimension_numbers = #tpu.dot_dimension_numbers<[1], [0], [0], [1], [0, 0, 1, 1], [], []>} : vector<8x32xbf16>, vector<32x128xbf16>, vector<8x128xf32> -> vector<8x128xf32>
    %483 = arith.addf %390, %482 : vector<8x128xf32>
    %484 = vector.extract_strided_slice %483 {offsets = [0, 0], sizes = [8, 96], strides = [1, 1]} : vector<8x128xf32> to vector<8x96xf32>
    %485 = arith.negf %484 : vector<8x96xf32>
    %486 = math.exp %485 : vector<8x96xf32>
    %cst_109 = arith.constant 1.000000e+00 : f32
    %487 = vector.broadcast %cst_109 : f32 to vector<8x96xf32>
    %488 = arith.addf %487, %486 : vector<8x96xf32>
    %489 = arith.divf %487, %488 : vector<8x96xf32>
    %490 = vector.extract_strided_slice %483 {offsets = [0, 96], sizes = [8, 32], strides = [1, 1]} : vector<8x128xf32> to vector<8x32xf32>
    %491 = math.tanh %490 : vector<8x32xf32>
    %492 = vector.extract_strided_slice %489 {offsets = [0, 0], sizes = [8, 32], strides = [1, 1]} : vector<8x96xf32> to vector<8x32xf32>
    %493 = vector.extract_strided_slice %489 {offsets = [0, 32], sizes = [8, 32], strides = [1, 1]} : vector<8x96xf32> to vector<8x32xf32>
    %494 = vector.extract_strided_slice %489 {offsets = [0, 64], sizes = [8, 32], strides = [1, 1]} : vector<8x96xf32> to vector<8x32xf32>
    %495 = arith.mulf %493, %452 : vector<8x32xf32>
    %496 = arith.mulf %492, %491 : vector<8x32xf32>
    %497 = arith.addf %495, %496 : vector<8x32xf32>
    %498 = math.tanh %497 : vector<8x32xf32>
    %499 = arith.mulf %494, %498 : vector<8x32xf32>
    %500 = arith.truncf %499 : vector<8x32xf32> to vector<8x32xbf16>
    %cst_110 = arith.constant dense<0.000000e+00> : vector<8x128xf32>
    %501 = tpu.matmul %500, %11, %cst_110 {dimension_numbers = #tpu.dot_dimension_numbers<[1], [0], [0], [1], [0, 0, 1, 1], [], []>} : vector<8x32xbf16>, vector<32x128xbf16>, vector<8x128xf32> -> vector<8x128xf32>
    %502 = arith.truncf %476 : vector<8x32xf32> to vector<8x32xbf16>
    %cst_111 = arith.constant dense<0.000000e+00> : vector<8x128xf32>
    %503 = tpu.matmul %502, %12, %cst_111 {dimension_numbers = #tpu.dot_dimension_numbers<[1], [0], [0], [1], [0, 0, 1, 1], [], []>} : vector<8x32xbf16>, vector<32x128xbf16>, vector<8x128xf32> -> vector<8x128xf32>
    %504 = arith.addf %501, %503 : vector<8x128xf32>
    %505 = arith.addf %504, %15 : vector<8x128xf32>
    %506 = vector.extract_strided_slice %505 {offsets = [0, 0], sizes = [8, 96], strides = [1, 1]} : vector<8x128xf32> to vector<8x96xf32>
    %507 = arith.negf %506 : vector<8x96xf32>
    %508 = math.exp %507 : vector<8x96xf32>
    %cst_112 = arith.constant 1.000000e+00 : f32
    %509 = vector.broadcast %cst_112 : f32 to vector<8x96xf32>
    %510 = arith.addf %509, %508 : vector<8x96xf32>
    %511 = arith.divf %509, %510 : vector<8x96xf32>
    %512 = vector.extract_strided_slice %505 {offsets = [0, 96], sizes = [8, 32], strides = [1, 1]} : vector<8x128xf32> to vector<8x32xf32>
    %513 = math.tanh %512 : vector<8x32xf32>
    %514 = vector.extract_strided_slice %511 {offsets = [0, 0], sizes = [8, 32], strides = [1, 1]} : vector<8x96xf32> to vector<8x32xf32>
    %515 = vector.extract_strided_slice %511 {offsets = [0, 32], sizes = [8, 32], strides = [1, 1]} : vector<8x96xf32> to vector<8x32xf32>
    %516 = vector.extract_strided_slice %511 {offsets = [0, 64], sizes = [8, 32], strides = [1, 1]} : vector<8x96xf32> to vector<8x32xf32>
    %517 = arith.mulf %515, %474 : vector<8x32xf32>
    %518 = arith.mulf %514, %513 : vector<8x32xf32>
    %519 = arith.addf %517, %518 : vector<8x32xf32>
    %520 = math.tanh %519 : vector<8x32xf32>
    %521 = arith.mulf %516, %520 : vector<8x32xf32>
    %522 = arith.index_cast %c2_i32_107 : i32 to index
    %c0_113 = arith.constant 0 : index
    %c0_114 = arith.constant 0 : index
    %523 = vector.load %arg18[%522, %c0_113, %c0_114] : memref<8x8x32xf32, #tpu.memory_space<vmem>>, vector<1x8x32xf32>
    %524 = vector.shape_cast %523 : vector<1x8x32xf32> to vector<8x32xf32>
    %525 = vector.shape_cast %521 : vector<8x32xf32> to vector<1x8x32xf32>
    tpu.vector_store %arg18[%522, %c0_113, %c0_114], %525 {strides = array<i32>} : memref<8x8x32xf32, #tpu.memory_space<vmem>>, vector<1x8x32xf32>,
    %c3_i32_115 = arith.constant 3 : i32
    %526 = arith.truncf %499 : vector<8x32xf32> to vector<8x32xbf16>
    %cst_116 = arith.constant dense<0.000000e+00> : vector<8x128xf32>
    %527 = tpu.matmul %526, %9, %cst_116 {dimension_numbers = #tpu.dot_dimension_numbers<[1], [0], [0], [1], [0, 0, 1, 1], [], []>} : vector<8x32xbf16>, vector<32x128xbf16>, vector<8x128xf32> -> vector<8x128xf32>
    %528 = arith.addf %390, %527 : vector<8x128xf32>
    %529 = vector.extract_strided_slice %528 {offsets = [0, 0], sizes = [8, 96], strides = [1, 1]} : vector<8x128xf32> to vector<8x96xf32>
    %530 = arith.negf %529 : vector<8x96xf32>
    %531 = math.exp %530 : vector<8x96xf32>
    %cst_117 = arith.constant 1.000000e+00 : f32
    %532 = vector.broadcast %cst_117 : f32 to vector<8x96xf32>
    %533 = arith.addf %532, %531 : vector<8x96xf32>
    %534 = arith.divf %532, %533 : vector<8x96xf32>
    %535 = vector.extract_strided_slice %528 {offsets = [0, 96], sizes = [8, 32], strides = [1, 1]} : vector<8x128xf32> to vector<8x32xf32>
    %536 = math.tanh %535 : vector<8x32xf32>
    %537 = vector.extract_strided_slice %534 {offsets = [0, 0], sizes = [8, 32], strides = [1, 1]} : vector<8x96xf32> to vector<8x32xf32>
    %538 = vector.extract_strided_slice %534 {offsets = [0, 32], sizes = [8, 32], strides = [1, 1]} : vector<8x96xf32> to vector<8x32xf32>
    %539 = vector.extract_strided_slice %534 {offsets = [0, 64], sizes = [8, 32], strides = [1, 1]} : vector<8x96xf32> to vector<8x32xf32>
    %540 = arith.mulf %538, %497 : vector<8x32xf32>
    %541 = arith.mulf %537, %536 : vector<8x32xf32>
    %542 = arith.addf %540, %541 : vector<8x32xf32>
    %543 = math.tanh %542 : vector<8x32xf32>
    %544 = arith.mulf %539, %543 : vector<8x32xf32>
    %545 = arith.truncf %544 : vector<8x32xf32> to vector<8x32xbf16>
    %cst_118 = arith.constant dense<0.000000e+00> : vector<8x128xf32>
    %546 = tpu.matmul %545, %11, %cst_118 {dimension_numbers = #tpu.dot_dimension_numbers<[1], [0], [0], [1], [0, 0, 1, 1], [], []>} : vector<8x32xbf16>, vector<32x128xbf16>, vector<8x128xf32> -> vector<8x128xf32>
    %547 = arith.truncf %521 : vector<8x32xf32> to vector<8x32xbf16>
    %cst_119 = arith.constant dense<0.000000e+00> : vector<8x128xf32>
    %548 = tpu.matmul %547, %12, %cst_119 {dimension_numbers = #tpu.dot_dimension_numbers<[1], [0], [0], [1], [0, 0, 1, 1], [], []>} : vector<8x32xbf16>, vector<32x128xbf16>, vector<8x128xf32> -> vector<8x128xf32>
    %549 = arith.addf %546, %548 : vector<8x128xf32>
    %550 = arith.addf %549, %15 : vector<8x128xf32>
    %551 = vector.extract_strided_slice %550 {offsets = [0, 0], sizes = [8, 96], strides = [1, 1]} : vector<8x128xf32> to vector<8x96xf32>
    %552 = arith.negf %551 : vector<8x96xf32>
    %553 = math.exp %552 : vector<8x96xf32>
    %cst_120 = arith.constant 1.000000e+00 : f32
    %554 = vector.broadcast %cst_120 : f32 to vector<8x96xf32>
    %555 = arith.addf %554, %553 : vector<8x96xf32>
    %556 = arith.divf %554, %555 : vector<8x96xf32>
    %557 = vector.extract_strided_slice %550 {offsets = [0, 96], sizes = [8, 32], strides = [1, 1]} : vector<8x128xf32> to vector<8x32xf32>
    %558 = math.tanh %557 : vector<8x32xf32>
    %559 = vector.extract_strided_slice %556 {offsets = [0, 0], sizes = [8, 32], strides = [1, 1]} : vector<8x96xf32> to vector<8x32xf32>
    %560 = vector.extract_strided_slice %556 {offsets = [0, 32], sizes = [8, 32], strides = [1, 1]} : vector<8x96xf32> to vector<8x32xf32>
    %561 = vector.extract_strided_slice %556 {offsets = [0, 64], sizes = [8, 32], strides = [1, 1]} : vector<8x96xf32> to vector<8x32xf32>
    %562 = arith.mulf %560, %519 : vector<8x32xf32>
    %563 = arith.mulf %559, %558 : vector<8x32xf32>
    %564 = arith.addf %562, %563 : vector<8x32xf32>
    %565 = math.tanh %564 : vector<8x32xf32>
    %566 = arith.mulf %561, %565 : vector<8x32xf32>
    %567 = arith.index_cast %c3_i32_115 : i32 to index
    %c0_121 = arith.constant 0 : index
    %c0_122 = arith.constant 0 : index
    %568 = vector.load %arg18[%567, %c0_121, %c0_122] : memref<8x8x32xf32, #tpu.memory_space<vmem>>, vector<1x8x32xf32>
    %569 = vector.shape_cast %568 : vector<1x8x32xf32> to vector<8x32xf32>
    %570 = vector.shape_cast %566 : vector<8x32xf32> to vector<1x8x32xf32>
    tpu.vector_store %arg18[%567, %c0_121, %c0_122], %570 {strides = array<i32>} : memref<8x8x32xf32, #tpu.memory_space<vmem>>, vector<1x8x32xf32>,
    %c4_i32_123 = arith.constant 4 : i32
    %571 = arith.truncf %544 : vector<8x32xf32> to vector<8x32xbf16>
    %cst_124 = arith.constant dense<0.000000e+00> : vector<8x128xf32>
    %572 = tpu.matmul %571, %9, %cst_124 {dimension_numbers = #tpu.dot_dimension_numbers<[1], [0], [0], [1], [0, 0, 1, 1], [], []>} : vector<8x32xbf16>, vector<32x128xbf16>, vector<8x128xf32> -> vector<8x128xf32>
    %573 = arith.addf %390, %572 : vector<8x128xf32>
    %574 = vector.extract_strided_slice %573 {offsets = [0, 0], sizes = [8, 96], strides = [1, 1]} : vector<8x128xf32> to vector<8x96xf32>
    %575 = arith.negf %574 : vector<8x96xf32>
    %576 = math.exp %575 : vector<8x96xf32>
    %cst_125 = arith.constant 1.000000e+00 : f32
    %577 = vector.broadcast %cst_125 : f32 to vector<8x96xf32>
    %578 = arith.addf %577, %576 : vector<8x96xf32>
    %579 = arith.divf %577, %578 : vector<8x96xf32>
    %580 = vector.extract_strided_slice %573 {offsets = [0, 96], sizes = [8, 32], strides = [1, 1]} : vector<8x128xf32> to vector<8x32xf32>
    %581 = math.tanh %580 : vector<8x32xf32>
    %582 = vector.extract_strided_slice %579 {offsets = [0, 0], sizes = [8, 32], strides = [1, 1]} : vector<8x96xf32> to vector<8x32xf32>
    %583 = vector.extract_strided_slice %579 {offsets = [0, 32], sizes = [8, 32], strides = [1, 1]} : vector<8x96xf32> to vector<8x32xf32>
    %584 = vector.extract_strided_slice %579 {offsets = [0, 64], sizes = [8, 32], strides = [1, 1]} : vector<8x96xf32> to vector<8x32xf32>
    %585 = arith.mulf %583, %542 : vector<8x32xf32>
    %586 = arith.mulf %582, %581 : vector<8x32xf32>
    %587 = arith.addf %585, %586 : vector<8x32xf32>
    %588 = math.tanh %587 : vector<8x32xf32>
    %589 = arith.mulf %584, %588 : vector<8x32xf32>
    %590 = arith.truncf %589 : vector<8x32xf32> to vector<8x32xbf16>
    %cst_126 = arith.constant dense<0.000000e+00> : vector<8x128xf32>
    %591 = tpu.matmul %590, %11, %cst_126 {dimension_numbers = #tpu.dot_dimension_numbers<[1], [0], [0], [1], [0, 0, 1, 1], [], []>} : vector<8x32xbf16>, vector<32x128xbf16>, vector<8x128xf32> -> vector<8x128xf32>
    %592 = arith.truncf %566 : vector<8x32xf32> to vector<8x32xbf16>
    %cst_127 = arith.constant dense<0.000000e+00> : vector<8x128xf32>
    %593 = tpu.matmul %592, %12, %cst_127 {dimension_numbers = #tpu.dot_dimension_numbers<[1], [0], [0], [1], [0, 0, 1, 1], [], []>} : vector<8x32xbf16>, vector<32x128xbf16>, vector<8x128xf32> -> vector<8x128xf32>
    %594 = arith.addf %591, %593 : vector<8x128xf32>
    %595 = arith.addf %594, %15 : vector<8x128xf32>
    %596 = vector.extract_strided_slice %595 {offsets = [0, 0], sizes = [8, 96], strides = [1, 1]} : vector<8x128xf32> to vector<8x96xf32>
    %597 = arith.negf %596 : vector<8x96xf32>
    %598 = math.exp %597 : vector<8x96xf32>
    %cst_128 = arith.constant 1.000000e+00 : f32
    %599 = vector.broadcast %cst_128 : f32 to vector<8x96xf32>
    %600 = arith.addf %599, %598 : vector<8x96xf32>
    %601 = arith.divf %599, %600 : vector<8x96xf32>
    %602 = vector.extract_strided_slice %595 {offsets = [0, 96], sizes = [8, 32], strides = [1, 1]} : vector<8x128xf32> to vector<8x32xf32>
    %603 = math.tanh %602 : vector<8x32xf32>
    %604 = vector.extract_strided_slice %601 {offsets = [0, 0], sizes = [8, 32], strides = [1, 1]} : vector<8x96xf32> to vector<8x32xf32>
    %605 = vector.extract_strided_slice %601 {offsets = [0, 32], sizes = [8, 32], strides = [1, 1]} : vector<8x96xf32> to vector<8x32xf32>
    %606 = vector.extract_strided_slice %601 {offsets = [0, 64], sizes = [8, 32], strides = [1, 1]} : vector<8x96xf32> to vector<8x32xf32>
    %607 = arith.mulf %605, %564 : vector<8x32xf32>
    %608 = arith.mulf %604, %603 : vector<8x32xf32>
    %609 = arith.addf %607, %608 : vector<8x32xf32>
    %610 = math.tanh %609 : vector<8x32xf32>
    %611 = arith.mulf %606, %610 : vector<8x32xf32>
    %612 = arith.index_cast %c4_i32_123 : i32 to index
    %c0_129 = arith.constant 0 : index
    %c0_130 = arith.constant 0 : index
    %613 = vector.load %arg18[%612, %c0_129, %c0_130] : memref<8x8x32xf32, #tpu.memory_space<vmem>>, vector<1x8x32xf32>
    %614 = vector.shape_cast %613 : vector<1x8x32xf32> to vector<8x32xf32>
    %615 = vector.shape_cast %611 : vector<8x32xf32> to vector<1x8x32xf32>
    tpu.vector_store %arg18[%612, %c0_129, %c0_130], %615 {strides = array<i32>} : memref<8x8x32xf32, #tpu.memory_space<vmem>>, vector<1x8x32xf32>,
    %c5_i32_131 = arith.constant 5 : i32
    %616 = arith.truncf %589 : vector<8x32xf32> to vector<8x32xbf16>
    %cst_132 = arith.constant dense<0.000000e+00> : vector<8x128xf32>
    %617 = tpu.matmul %616, %9, %cst_132 {dimension_numbers = #tpu.dot_dimension_numbers<[1], [0], [0], [1], [0, 0, 1, 1], [], []>} : vector<8x32xbf16>, vector<32x128xbf16>, vector<8x128xf32> -> vector<8x128xf32>
    %618 = arith.addf %390, %617 : vector<8x128xf32>
    %619 = vector.extract_strided_slice %618 {offsets = [0, 0], sizes = [8, 96], strides = [1, 1]} : vector<8x128xf32> to vector<8x96xf32>
    %620 = arith.negf %619 : vector<8x96xf32>
    %621 = math.exp %620 : vector<8x96xf32>
    %cst_133 = arith.constant 1.000000e+00 : f32
    %622 = vector.broadcast %cst_133 : f32 to vector<8x96xf32>
    %623 = arith.addf %622, %621 : vector<8x96xf32>
    %624 = arith.divf %622, %623 : vector<8x96xf32>
    %625 = vector.extract_strided_slice %618 {offsets = [0, 96], sizes = [8, 32], strides = [1, 1]} : vector<8x128xf32> to vector<8x32xf32>
    %626 = math.tanh %625 : vector<8x32xf32>
    %627 = vector.extract_strided_slice %624 {offsets = [0, 0], sizes = [8, 32], strides = [1, 1]} : vector<8x96xf32> to vector<8x32xf32>
    %628 = vector.extract_strided_slice %624 {offsets = [0, 32], sizes = [8, 32], strides = [1, 1]} : vector<8x96xf32> to vector<8x32xf32>
    %629 = vector.extract_strided_slice %624 {offsets = [0, 64], sizes = [8, 32], strides = [1, 1]} : vector<8x96xf32> to vector<8x32xf32>
    %630 = arith.mulf %628, %587 : vector<8x32xf32>
    %631 = arith.mulf %627, %626 : vector<8x32xf32>
    %632 = arith.addf %630, %631 : vector<8x32xf32>
    %633 = math.tanh %632 : vector<8x32xf32>
    %634 = arith.mulf %629, %633 : vector<8x32xf32>
    %635 = arith.truncf %634 : vector<8x32xf32> to vector<8x32xbf16>
    %cst_134 = arith.constant dense<0.000000e+00> : vector<8x128xf32>
    %636 = tpu.matmul %635, %11, %cst_134 {dimension_numbers = #tpu.dot_dimension_numbers<[1], [0], [0], [1], [0, 0, 1, 1], [], []>} : vector<8x32xbf16>, vector<32x128xbf16>, vector<8x128xf32> -> vector<8x128xf32>
    %637 = arith.truncf %611 : vector<8x32xf32> to vector<8x32xbf16>
    %cst_135 = arith.constant dense<0.000000e+00> : vector<8x128xf32>
    %638 = tpu.matmul %637, %12, %cst_135 {dimension_numbers = #tpu.dot_dimension_numbers<[1], [0], [0], [1], [0, 0, 1, 1], [], []>} : vector<8x32xbf16>, vector<32x128xbf16>, vector<8x128xf32> -> vector<8x128xf32>
    %639 = arith.addf %636, %638 : vector<8x128xf32>
    %640 = arith.addf %639, %15 : vector<8x128xf32>
    %641 = vector.extract_strided_slice %640 {offsets = [0, 0], sizes = [8, 96], strides = [1, 1]} : vector<8x128xf32> to vector<8x96xf32>
    %642 = arith.negf %641 : vector<8x96xf32>
    %643 = math.exp %642 : vector<8x96xf32>
    %cst_136 = arith.constant 1.000000e+00 : f32
    %644 = vector.broadcast %cst_136 : f32 to vector<8x96xf32>
    %645 = arith.addf %644, %643 : vector<8x96xf32>
    %646 = arith.divf %644, %645 : vector<8x96xf32>
    %647 = vector.extract_strided_slice %640 {offsets = [0, 96], sizes = [8, 32], strides = [1, 1]} : vector<8x128xf32> to vector<8x32xf32>
    %648 = math.tanh %647 : vector<8x32xf32>
    %649 = vector.extract_strided_slice %646 {offsets = [0, 0], sizes = [8, 32], strides = [1, 1]} : vector<8x96xf32> to vector<8x32xf32>
    %650 = vector.extract_strided_slice %646 {offsets = [0, 32], sizes = [8, 32], strides = [1, 1]} : vector<8x96xf32> to vector<8x32xf32>
    %651 = vector.extract_strided_slice %646 {offsets = [0, 64], sizes = [8, 32], strides = [1, 1]} : vector<8x96xf32> to vector<8x32xf32>
    %652 = arith.mulf %650, %609 : vector<8x32xf32>
    %653 = arith.mulf %649, %648 : vector<8x32xf32>
    %654 = arith.addf %652, %653 : vector<8x32xf32>
    %655 = math.tanh %654 : vector<8x32xf32>
    %656 = arith.mulf %651, %655 : vector<8x32xf32>
    %657 = arith.index_cast %c5_i32_131 : i32 to index
    %c0_137 = arith.constant 0 : index
    %c0_138 = arith.constant 0 : index
    %658 = vector.load %arg18[%657, %c0_137, %c0_138] : memref<8x8x32xf32, #tpu.memory_space<vmem>>, vector<1x8x32xf32>
    %659 = vector.shape_cast %658 : vector<1x8x32xf32> to vector<8x32xf32>
    %660 = vector.shape_cast %656 : vector<8x32xf32> to vector<1x8x32xf32>
    tpu.vector_store %arg18[%657, %c0_137, %c0_138], %660 {strides = array<i32>} : memref<8x8x32xf32, #tpu.memory_space<vmem>>, vector<1x8x32xf32>,
    %c6_i32_139 = arith.constant 6 : i32
    %661 = arith.truncf %634 : vector<8x32xf32> to vector<8x32xbf16>
    %cst_140 = arith.constant dense<0.000000e+00> : vector<8x128xf32>
    %662 = tpu.matmul %661, %9, %cst_140 {dimension_numbers = #tpu.dot_dimension_numbers<[1], [0], [0], [1], [0, 0, 1, 1], [], []>} : vector<8x32xbf16>, vector<32x128xbf16>, vector<8x128xf32> -> vector<8x128xf32>
    %663 = arith.addf %390, %662 : vector<8x128xf32>
    %664 = vector.extract_strided_slice %663 {offsets = [0, 0], sizes = [8, 96], strides = [1, 1]} : vector<8x128xf32> to vector<8x96xf32>
    %665 = arith.negf %664 : vector<8x96xf32>
    %666 = math.exp %665 : vector<8x96xf32>
    %cst_141 = arith.constant 1.000000e+00 : f32
    %667 = vector.broadcast %cst_141 : f32 to vector<8x96xf32>
    %668 = arith.addf %667, %666 : vector<8x96xf32>
    %669 = arith.divf %667, %668 : vector<8x96xf32>
    %670 = vector.extract_strided_slice %663 {offsets = [0, 96], sizes = [8, 32], strides = [1, 1]} : vector<8x128xf32> to vector<8x32xf32>
    %671 = math.tanh %670 : vector<8x32xf32>
    %672 = vector.extract_strided_slice %669 {offsets = [0, 0], sizes = [8, 32], strides = [1, 1]} : vector<8x96xf32> to vector<8x32xf32>
    %673 = vector.extract_strided_slice %669 {offsets = [0, 32], sizes = [8, 32], strides = [1, 1]} : vector<8x96xf32> to vector<8x32xf32>
    %674 = vector.extract_strided_slice %669 {offsets = [0, 64], sizes = [8, 32], strides = [1, 1]} : vector<8x96xf32> to vector<8x32xf32>
    %675 = arith.mulf %673, %632 : vector<8x32xf32>
    %676 = arith.mulf %672, %671 : vector<8x32xf32>
    %677 = arith.addf %675, %676 : vector<8x32xf32>
    %678 = math.tanh %677 : vector<8x32xf32>
    %679 = arith.mulf %674, %678 : vector<8x32xf32>
    %680 = arith.truncf %679 : vector<8x32xf32> to vector<8x32xbf16>
    %cst_142 = arith.constant dense<0.000000e+00> : vector<8x128xf32>
    %681 = tpu.matmul %680, %11, %cst_142 {dimension_numbers = #tpu.dot_dimension_numbers<[1], [0], [0], [1], [0, 0, 1, 1], [], []>} : vector<8x32xbf16>, vector<32x128xbf16>, vector<8x128xf32> -> vector<8x128xf32>
    %682 = arith.truncf %656 : vector<8x32xf32> to vector<8x32xbf16>
    %cst_143 = arith.constant dense<0.000000e+00> : vector<8x128xf32>
    %683 = tpu.matmul %682, %12, %cst_143 {dimension_numbers = #tpu.dot_dimension_numbers<[1], [0], [0], [1], [0, 0, 1, 1], [], []>} : vector<8x32xbf16>, vector<32x128xbf16>, vector<8x128xf32> -> vector<8x128xf32>
    %684 = arith.addf %681, %683 : vector<8x128xf32>
    %685 = arith.addf %684, %15 : vector<8x128xf32>
    %686 = vector.extract_strided_slice %685 {offsets = [0, 0], sizes = [8, 96], strides = [1, 1]} : vector<8x128xf32> to vector<8x96xf32>
    %687 = arith.negf %686 : vector<8x96xf32>
    %688 = math.exp %687 : vector<8x96xf32>
    %cst_144 = arith.constant 1.000000e+00 : f32
    %689 = vector.broadcast %cst_144 : f32 to vector<8x96xf32>
    %690 = arith.addf %689, %688 : vector<8x96xf32>
    %691 = arith.divf %689, %690 : vector<8x96xf32>
    %692 = vector.extract_strided_slice %685 {offsets = [0, 96], sizes = [8, 32], strides = [1, 1]} : vector<8x128xf32> to vector<8x32xf32>
    %693 = math.tanh %692 : vector<8x32xf32>
    %694 = vector.extract_strided_slice %691 {offsets = [0, 0], sizes = [8, 32], strides = [1, 1]} : vector<8x96xf32> to vector<8x32xf32>
    %695 = vector.extract_strided_slice %691 {offsets = [0, 32], sizes = [8, 32], strides = [1, 1]} : vector<8x96xf32> to vector<8x32xf32>
    %696 = vector.extract_strided_slice %691 {offsets = [0, 64], sizes = [8, 32], strides = [1, 1]} : vector<8x96xf32> to vector<8x32xf32>
    %697 = arith.mulf %695, %654 : vector<8x32xf32>
    %698 = arith.mulf %694, %693 : vector<8x32xf32>
    %699 = arith.addf %697, %698 : vector<8x32xf32>
    %700 = math.tanh %699 : vector<8x32xf32>
    %701 = arith.mulf %696, %700 : vector<8x32xf32>
    %702 = arith.index_cast %c6_i32_139 : i32 to index
    %c0_145 = arith.constant 0 : index
    %c0_146 = arith.constant 0 : index
    %703 = vector.load %arg18[%702, %c0_145, %c0_146] : memref<8x8x32xf32, #tpu.memory_space<vmem>>, vector<1x8x32xf32>
    %704 = vector.shape_cast %703 : vector<1x8x32xf32> to vector<8x32xf32>
    %705 = vector.shape_cast %701 : vector<8x32xf32> to vector<1x8x32xf32>
    tpu.vector_store %arg18[%702, %c0_145, %c0_146], %705 {strides = array<i32>} : memref<8x8x32xf32, #tpu.memory_space<vmem>>, vector<1x8x32xf32>,
    %c7_i32_147 = arith.constant 7 : i32
    %706 = arith.truncf %679 : vector<8x32xf32> to vector<8x32xbf16>
    %cst_148 = arith.constant dense<0.000000e+00> : vector<8x128xf32>
    %707 = tpu.matmul %706, %9, %cst_148 {dimension_numbers = #tpu.dot_dimension_numbers<[1], [0], [0], [1], [0, 0, 1, 1], [], []>} : vector<8x32xbf16>, vector<32x128xbf16>, vector<8x128xf32> -> vector<8x128xf32>
    %708 = arith.addf %390, %707 : vector<8x128xf32>
    %709 = vector.extract_strided_slice %708 {offsets = [0, 0], sizes = [8, 96], strides = [1, 1]} : vector<8x128xf32> to vector<8x96xf32>
    %710 = arith.negf %709 : vector<8x96xf32>
    %711 = math.exp %710 : vector<8x96xf32>
    %cst_149 = arith.constant 1.000000e+00 : f32
    %712 = vector.broadcast %cst_149 : f32 to vector<8x96xf32>
    %713 = arith.addf %712, %711 : vector<8x96xf32>
    %714 = arith.divf %712, %713 : vector<8x96xf32>
    %715 = vector.extract_strided_slice %708 {offsets = [0, 96], sizes = [8, 32], strides = [1, 1]} : vector<8x128xf32> to vector<8x32xf32>
    %716 = math.tanh %715 : vector<8x32xf32>
    %717 = vector.extract_strided_slice %714 {offsets = [0, 0], sizes = [8, 32], strides = [1, 1]} : vector<8x96xf32> to vector<8x32xf32>
    %718 = vector.extract_strided_slice %714 {offsets = [0, 32], sizes = [8, 32], strides = [1, 1]} : vector<8x96xf32> to vector<8x32xf32>
    %719 = vector.extract_strided_slice %714 {offsets = [0, 64], sizes = [8, 32], strides = [1, 1]} : vector<8x96xf32> to vector<8x32xf32>
    %720 = arith.mulf %718, %677 : vector<8x32xf32>
    %721 = arith.mulf %717, %716 : vector<8x32xf32>
    %722 = arith.addf %720, %721 : vector<8x32xf32>
    %723 = math.tanh %722 : vector<8x32xf32>
    %724 = arith.mulf %719, %723 : vector<8x32xf32>
    %725 = arith.truncf %724 : vector<8x32xf32> to vector<8x32xbf16>
    %cst_150 = arith.constant dense<0.000000e+00> : vector<8x128xf32>
    %726 = tpu.matmul %725, %11, %cst_150 {dimension_numbers = #tpu.dot_dimension_numbers<[1], [0], [0], [1], [0, 0, 1, 1], [], []>} : vector<8x32xbf16>, vector<32x128xbf16>, vector<8x128xf32> -> vector<8x128xf32>
    %727 = arith.truncf %701 : vector<8x32xf32> to vector<8x32xbf16>
    %cst_151 = arith.constant dense<0.000000e+00> : vector<8x128xf32>
    %728 = tpu.matmul %727, %12, %cst_151 {dimension_numbers = #tpu.dot_dimension_numbers<[1], [0], [0], [1], [0, 0, 1, 1], [], []>} : vector<8x32xbf16>, vector<32x128xbf16>, vector<8x128xf32> -> vector<8x128xf32>
    %729 = arith.addf %726, %728 : vector<8x128xf32>
    %730 = arith.addf %729, %15 : vector<8x128xf32>
    %731 = vector.extract_strided_slice %730 {offsets = [0, 0], sizes = [8, 96], strides = [1, 1]} : vector<8x128xf32> to vector<8x96xf32>
    %732 = arith.negf %731 : vector<8x96xf32>
    %733 = math.exp %732 : vector<8x96xf32>
    %cst_152 = arith.constant 1.000000e+00 : f32
    %734 = vector.broadcast %cst_152 : f32 to vector<8x96xf32>
    %735 = arith.addf %734, %733 : vector<8x96xf32>
    %736 = arith.divf %734, %735 : vector<8x96xf32>
    %737 = vector.extract_strided_slice %730 {offsets = [0, 96], sizes = [8, 32], strides = [1, 1]} : vector<8x128xf32> to vector<8x32xf32>
    %738 = math.tanh %737 : vector<8x32xf32>
    %739 = vector.extract_strided_slice %736 {offsets = [0, 0], sizes = [8, 32], strides = [1, 1]} : vector<8x96xf32> to vector<8x32xf32>
    %740 = vector.extract_strided_slice %736 {offsets = [0, 32], sizes = [8, 32], strides = [1, 1]} : vector<8x96xf32> to vector<8x32xf32>
    %741 = vector.extract_strided_slice %736 {offsets = [0, 64], sizes = [8, 32], strides = [1, 1]} : vector<8x96xf32> to vector<8x32xf32>
    %742 = arith.mulf %740, %699 : vector<8x32xf32>
    %743 = arith.mulf %739, %738 : vector<8x32xf32>
    %744 = arith.addf %742, %743 : vector<8x32xf32>
    %745 = math.tanh %744 : vector<8x32xf32>
    %746 = arith.mulf %741, %745 : vector<8x32xf32>
    %747 = arith.index_cast %c7_i32_147 : i32 to index
    %c0_153 = arith.constant 0 : index
    %c0_154 = arith.constant 0 : index
    %748 = vector.load %arg18[%747, %c0_153, %c0_154] : memref<8x8x32xf32, #tpu.memory_space<vmem>>, vector<1x8x32xf32>
    %749 = vector.shape_cast %748 : vector<1x8x32xf32> to vector<8x32xf32>
    %750 = vector.shape_cast %746 : vector<8x32xf32> to vector<1x8x32xf32>
    tpu.vector_store %arg18[%747, %c0_153, %c0_154], %750 {strides = array<i32>} : memref<8x8x32xf32, #tpu.memory_space<vmem>>, vector<1x8x32xf32>,
    %c8_i32_155 = arith.constant 8 : i32
    %c0_156 = arith.constant 0 : index
    %c0_157 = arith.constant 0 : index
    %c0_158 = arith.constant 0 : index
    %751 = vector.load %arg18[%c0_156, %c0_157, %c0_158] : memref<8x8x32xf32, #tpu.memory_space<vmem>>, vector<8x8x32xf32>
    %752 = vector.shape_cast %751 : vector<8x8x32xf32> to vector<64x32xf32>
    %753 = arith.truncf %752 : vector<64x32xf32> to vector<64x32xbf16>
    %cst_159 = arith.constant dense<0.000000e+00> : vector<64x4xf32>
    %754 = tpu.matmul %753, %16, %cst_159 {dimension_numbers = #tpu.dot_dimension_numbers<[1], [0], [0], [1], [0, 0, 1, 1], [], []>} : vector<64x32xbf16>, vector<32x4xbf16>, vector<64x4xf32> -> vector<64x4xf32>
    %755 = vector.broadcast %17 : vector<1x4xf32> to vector<64x4xf32>
    %756 = arith.addf %754, %755 : vector<64x4xf32>
    %c0_160 = arith.constant 0 : index
    %c0_161 = arith.constant 0 : index
    %c0_162 = arith.constant 0 : index
    %757 = vector.load %arg16[%c0_160, %c0_161, %c0_162] : memref<1x64x4xf32, #tpu.memory_space<vmem>>, vector<1x64x4xf32>
    %758 = vector.shape_cast %757 : vector<1x64x4xf32> to vector<64x4xf32>
    %759 = vector.shape_cast %756 : vector<64x4xf32> to vector<1x64x4xf32>
    tpu.vector_store %arg16[%c0_160, %c0_161, %c0_162], %759 {strides = array<i32>} : memref<1x64x4xf32, #tpu.memory_space<vmem>>, vector<1x64x4xf32>,
    return
  }
  func.func @transform_0(%arg0: i32) -> (i32, i32, i32) {
    %c0_i32 = arith.constant 0 : i32
    %c0_i32_0 = arith.constant 0 : i32
    %c0_i32_1 = arith.constant 0 : i32
    return %arg0, %c0_i32, %c0_i32_0 : i32, i32, i32
  }
  func.func @transform_1(%arg0: i32) -> (i32, i32) {
    %c0_i32 = arith.constant 0 : i32
    %c0_i32_0 = arith.constant 0 : i32
    %c0_i32_1 = arith.constant 0 : i32
    return %c0_i32, %c0_i32_0 : i32, i32
  }
  func.func @transform_2(%arg0: i32) -> (i32, i32) {
    %c0_i32 = arith.constant 0 : i32
    %c0_i32_0 = arith.constant 0 : i32
    %c0_i32_1 = arith.constant 0 : i32
    return %c0_i32, %c0_i32_0 : i32, i32
  }
  func.func @transform_3(%arg0: i32) -> (i32, i32) {
    %c0_i32 = arith.constant 0 : i32
    %c0_i32_0 = arith.constant 0 : i32
    %c0_i32_1 = arith.constant 0 : i32
    return %c0_i32, %c0_i32_0 : i32, i32
  }
  func.func @transform_4(%arg0: i32) -> (i32, i32) {
    %c0_i32 = arith.constant 0 : i32
    %c0_i32_0 = arith.constant 0 : i32
    %c0_i32_1 = arith.constant 0 : i32
    return %c0_i32, %c0_i32_0 : i32, i32
  }
  func.func @transform_5(%arg0: i32) -> (i32, i32) {
    %c0_i32 = arith.constant 0 : i32
    %c0_i32_0 = arith.constant 0 : i32
    %c0_i32_1 = arith.constant 0 : i32
    return %c0_i32, %c0_i32_0 : i32, i32
  }
  func.func @transform_6(%arg0: i32) -> (i32, i32) {
    %c0_i32 = arith.constant 0 : i32
    %c0_i32_0 = arith.constant 0 : i32
    %c0_i32_1 = arith.constant 0 : i32
    return %c0_i32, %c0_i32_0 : i32, i32
  }
  func.func @transform_7(%arg0: i32) -> (i32, i32) {
    %c0_i32 = arith.constant 0 : i32
    %c0_i32_0 = arith.constant 0 : i32
    %c0_i32_1 = arith.constant 0 : i32
    return %c0_i32, %c0_i32_0 : i32, i32
  }
  func.func @transform_8(%arg0: i32) -> (i32, i32) {
    %c0_i32 = arith.constant 0 : i32
    %c0_i32_0 = arith.constant 0 : i32
    %c0_i32_1 = arith.constant 0 : i32
    return %c0_i32, %c0_i32_0 : i32, i32
  }
  func.func @transform_9(%arg0: i32) -> (i32, i32) {
    %c0_i32 = arith.constant 0 : i32
    %c0_i32_0 = arith.constant 0 : i32
    %c0_i32_1 = arith.constant 0 : i32
    return %c0_i32, %c0_i32_0 : i32, i32
  }
  func.func @transform_10(%arg0: i32) -> (i32, i32) {
    %c0_i32 = arith.constant 0 : i32
    %c0_i32_0 = arith.constant 0 : i32
    %c0_i32_1 = arith.constant 0 : i32
    return %c0_i32, %c0_i32_0 : i32, i32
  }
  func.func @transform_11(%arg0: i32) -> (i32, i32) {
    %c0_i32 = arith.constant 0 : i32
    %c0_i32_0 = arith.constant 0 : i32
    %c0_i32_1 = arith.constant 0 : i32
    return %c0_i32, %c0_i32_0 : i32, i32
  }
  func.func @transform_12(%arg0: i32) -> (i32, i32) {
    %c0_i32 = arith.constant 0 : i32
    %c0_i32_0 = arith.constant 0 : i32
    %c0_i32_1 = arith.constant 0 : i32
    return %c0_i32, %c0_i32_0 : i32, i32
  }
  func.func @transform_13(%arg0: i32) -> (i32, i32) {
    %c0_i32 = arith.constant 0 : i32
    %c0_i32_0 = arith.constant 0 : i32
    %c0_i32_1 = arith.constant 0 : i32
    return %c0_i32, %c0_i32_0 : i32, i32
  }
  func.func @transform_14(%arg0: i32) -> (i32, i32) {
    %c0_i32 = arith.constant 0 : i32
    %c0_i32_0 = arith.constant 0 : i32
    %c0_i32_1 = arith.constant 0 : i32
    return %c0_i32, %c0_i32_0 : i32, i32
  }
  func.func @transform_15(%arg0: i32) -> (i32, i32, i32) {
    %c0_i32 = arith.constant 0 : i32
    %c0_i32_0 = arith.constant 0 : i32
    %c0_i32_1 = arith.constant 0 : i32
    return %arg0, %c0_i32, %c0_i32_0 : i32, i32, i32
  }
}

</mosaic_0001>

<llo_original>
// kernel: tpu_custom_call.1
$region0: #{tpu_custom_call.1}
  #allocation0 [shape = 'u32[]', space=smem, size = 0x4, offset = 0x4, fixed_abs, tag = 'smem constant byte address 0x4 - core index']
  #allocation1 [shape = 'u32[144,128]{1,0:T(1,128)}', space=vmem, size = 0x12000, scoped, tag = 'internal scratch']
  #allocation2 [shape = 'f32[64,128]{1,0:T(8,128)}', space=vmem, size = 0x8000, scoped, tag = 'scratch operand']
  #allocation3 [shape = 'f32[8,8,32]{2,1,0:T(8,128)}', space=vmem, size = 0x8000, scoped, tag = 'scratch operand']
  %s0 = inlined_call_operand.hbm [shape: f32[1,64,4], index: 0, kind: input, shape index: {}]
  %s1 = inlined_call_operand.hbm [shape: bf16[4,128], index: 1, kind: input, shape index: {}]
  %s2 = inlined_call_operand.hbm [shape: bf16[32,128], index: 2, kind: input, shape index: {}]
  %s3 = inlined_call_operand.hbm [shape: f32[1,128], index: 3, kind: input, shape index: {}]
  %s4 = inlined_call_operand.hbm [shape: bf16[32,128], index: 4, kind: input, shape index: {}]
  %s5 = inlined_call_operand.hbm [shape: bf16[32,128], index: 5, kind: input, shape index: {}]
  %s6 = inlined_call_operand.hbm [shape: f32[1,128], index: 6, kind: input, shape index: {}]
  %s7 = inlined_call_operand.hbm [shape: bf16[32,128], index: 7, kind: input, shape index: {}]
  %s8 = inlined_call_operand.hbm [shape: bf16[32,128], index: 8, kind: input, shape index: {}]
  %s9 = inlined_call_operand.hbm [shape: f32[1,128], index: 9, kind: input, shape index: {}]
  %s10 = inlined_call_operand.hbm [shape: bf16[32,128], index: 10, kind: input, shape index: {}]
  %s11 = inlined_call_operand.hbm [shape: bf16[32,128], index: 11, kind: input, shape index: {}]
  %s12 = inlined_call_operand.hbm [shape: f32[1,128], index: 12, kind: input, shape index: {}]
  %s13 = inlined_call_operand.hbm [shape: bf16[32,4], index: 13, kind: input, shape index: {}]
  %s14 = inlined_call_operand.hbm [shape: f32[1,4], index: 14, kind: input, shape index: {}]
  %s15 = inlined_call_operand.hbm [shape: f32[1,64,4], index: 15, kind: output, shape index: {}]
  %s16 = sld [smem:[#allocation0]]
  $region130: #{tpu_custom_call.1} parent=0
    _
  %s18 = ssub.s32 1, %s16
  %s19 = scalar_select 0, %s18, %s16
  $region1: #{tpu_custom_call.1} parent=0
    #allocation4 [shape = 'u8[32768]{0}', space=vmem, size = 0x8000, scoped, tag = 'input window, operand 0, single buffered']
    #allocation5 [shape = 's32[1]{0}', space=sflag, size = 0x4, scoped, tag = 'scoped memory for tpu_custom_call.1']
    #allocation6 [shape = 's32[1]{0}', space=sflag, size = 0x4, scoped, tag = 'scoped memory for tpu_custom_call.1']
    #allocation7 [shape = 'u8[1024]{0}', space=vmem, size = 0x400, scoped, tag = 'input window, operand 1, single buffered']
    #allocation8 [shape = 's32[1]{0}', space=sflag, size = 0x4, scoped, tag = 'scoped memory for tpu_custom_call.1']
    #allocation9 [shape = 'u8[8192]{0}', space=vmem, size = 0x2000, scoped, tag = 'input window, operand 2, single buffered']
    #allocation10 [shape = 'u8[512]{0}', space=vmem, size = 0x400, scoped, tag = 'input window, operand 3, single buffered']
    #allocation11 [shape = 's32[1]{0}', space=sflag, size = 0x4, scoped, tag = 'scoped memory for tpu_custom_call.1']
    #allocation12 [shape = 'u8[8192]{0}', space=vmem, size = 0x2000, scoped, tag = 'input window, operand 4, single buffered']
    #allocation13 [shape = 'u8[8192]{0}', space=vmem, size = 0x2000, scoped, tag = 'input window, operand 5, single buffered']
    #allocation14 [shape = 's32[1]{0}', space=sflag, size = 0x4, scoped, tag = 'scoped memory for tpu_custom_call.1']
    #allocation15 [shape = 'u8[512]{0}', space=vmem, size = 0x400, scoped, tag = 'input window, operand 6, single buffered']
    #allocation16 [shape = 'u8[8192]{0}', space=vmem, size = 0x2000, scoped, tag = 'input window, operand 7, single buffered']
    #allocation17 [shape = 's32[1]{0}', space=sflag, size = 0x4, scoped, tag = 'scoped memory for tpu_custom_call.1']
    #allocation18 [shape = 'u8[8192]{0}', space=vmem, size = 0x2000, scoped, tag = 'input window, operand 8, single buffered']
    #allocation19 [shape = 'u8[512]{0}', space=vmem, size = 0x400, scoped, tag = 'input window, operand 9, single buffered']
    #allocation20 [shape = 's32[1]{0}', space=sflag, size = 0x4, scoped, tag = 'scoped memory for tpu_custom_call.1']
    #allocation21 [shape = 'u8[8192]{0}', space=vmem, size = 0x2000, scoped, tag = 'input window, operand 10, single buffered']
    #allocation22 [shape = 'u8[8192]{0}', space=vmem, size = 0x2000, scoped, tag = 'input window, operand 11, single buffered']
    #allocation23 [shape = 's32[1]{0}', space=sflag, size = 0x4, scoped, tag = 'scoped memory for tpu_custom_call.1']
    #allocation24 [shape = 'u8[512]{0}', space=vmem, size = 0x400, scoped, tag = 'input window, operand 12, single buffered']
    #allocation25 [shape = 'u8[8192]{0}', space=vmem, size = 0x2000, scoped, tag = 'input window, operand 13, single buffered']
    #allocation26 [shape = 's32[1]{0}', space=sflag, size = 0x4, scoped, tag = 'scoped memory for tpu_custom_call.1']
    #allocation27 [shape = 'u8[512]{0}', space=vmem, size = 0x400, scoped, tag = 'input window, operand 14, single buffered']
    #allocation28 [shape = 'u8[32768]{0}', space=vmem, size = 0x8000, scoped, tag = 'output window, operand 0, single buffered']
    %20 = vsyncpa [#allocation5], 0
    %21 = vsyncpa [#allocation8], 0
    %22 = vsyncpa [#allocation11], 0
    %23 = vsyncpa [#allocation14], 0
    %24 = vsyncpa [#allocation17], 0
    %25 = vsyncpa [#allocation20], 0
    %26 = vsyncpa [#allocation23], 0
    %27 = vsyncpa [#allocation26], 0
    %28 = vsyncpa [#allocation6], 0
    // Predicated region
    $region2: #{tpu_custom_call.1} parent=1 // pred_check
      _
    $region3: #{tpu_custom_call.1} parent=1 // pred_check_branch
      %30 = sbr.rel (0) target = $region5
    $region4: #{tpu_custom_call.1} parent=1 // pred_region
      %s32 = ssub.s32 1024, 1024
      %33 = vsyncadd [#allocation5], %s32
      %s34 = sshll.u32 [#allocation4], 4
      %s35 = int_to_ptr.vmem [resolvable:$true] %s34
      %40 = dma.hbm_to_vmem [thread:$0]  %s0, 1024, %s35, [#allocation5], 128, 128, 8
    $region5: #{tpu_custom_call.1} parent=1 // pred_fallthru
      _
    // Predicated region
    $region6: #{tpu_custom_call.1} parent=1 // pred_check
      _
    $region7: #{tpu_custom_call.1} parent=1 // pred_check_branch
      %42 = sbr.rel (0) target = $region9
    $region8: #{tpu_custom_call.1} parent=1 // pred_region
      %s44 = ssub.s32 32, 32
      %45 = vsyncadd [#allocation8], %s44
      %s47 = sshll.u32 [#allocation7], 4
      %s48 = int_to_ptr.vmem [resolvable:$true] %s47
      %50 = dma.hbm_to_vmem [thread:$0]  %s1, 32, %s48, [#allocation8]
    $region9: #{tpu_custom_call.1} parent=1 // pred_fallthru
      _
    // Predicated region
    $region10: #{tpu_custom_call.1} parent=1 // pred_check
      _
    $region11: #{tpu_custom_call.1} parent=1 // pred_check_branch
      %52 = sbr.rel (0) target = $region13
    $region12: #{tpu_custom_call.1} parent=1 // pred_region
      %s54 = ssub.s32 256, 256
      %55 = vsyncadd [#allocation8], %s54
      %s56 = sshll.u32 [#allocation9], 4
      %s57 = int_to_ptr.vmem [resolvable:$true] %s56
      %62 = dma.hbm_to_vmem [thread:$0]  %s2, 256, %s57, [#allocation8], 64, 64, 4
    $region13: #{tpu_custom_call.1} parent=1 // pred_fallthru
      _
    // Predicated region
    $region14: #{tpu_custom_call.1} parent=1 // pred_check
      _
    $region15: #{tpu_custom_call.1} parent=1 // pred_check_branch
      %64 = sbr.rel (0) target = $region17
    $region16: #{tpu_custom_call.1} parent=1 // pred_region
      %s66 = ssub.s32 16, 16
      %67 = vsyncadd [#allocation11], %s66
      %s69 = sshll.u32 [#allocation10], 4
      %s70 = int_to_ptr.vmem [resolvable:$true] %s69
      %72 = dma.hbm_to_vmem [thread:$0]  %s3, 16, %s70, [#allocation11]
    $region17: #{tpu_custom_call.1} parent=1 // pred_fallthru
      _
    // Predicated region
    $region18: #{tpu_custom_call.1} parent=1 // pred_check
      _
    $region19: #{tpu_custom_call.1} parent=1 // pred_check_branch
      %74 = sbr.rel (0) target = $region21
    $region20: #{tpu_custom_call.1} parent=1 // pred_region
      %s76 = ssub.s32 256, 256
      %77 = vsyncadd [#allocation11], %s76
      %s78 = sshll.u32 [#allocation12], 4
      %s79 = int_to_ptr.vmem [resolvable:$true] %s78
      %84 = dma.hbm_to_vmem [thread:$0]  %s4, 256, %s79, [#allocation11], 64, 64, 4
    $region21: #{tpu_custom_call.1} parent=1 // pred_fallthru
      _
    // Predicated region
    $region22: #{tpu_custom_call.1} parent=1 // pred_check
      _
    $region23: #{tpu_custom_call.1} parent=1 // pred_check_branch
      %86 = sbr.rel (0) target = $region25
    $region24: #{tpu_custom_call.1} parent=1 // pred_region
      %s88 = ssub.s32 256, 256
      %89 = vsyncadd [#allocation14], %s88
      %s90 = sshll.u32 [#allocation13], 4
      %s91 = int_to_ptr.vmem [resolvable:$true] %s90
      %96 = dma.hbm_to_vmem [thread:$0]  %s5, 256, %s91, [#allocation14], 64, 64, 4
    $region25: #{tpu_custom_call.1} parent=1 // pred_fallthru
      _
    // Predicated region
    $region26: #{tpu_custom_call.1} parent=1 // pred_check
      _
    $region27: #{tpu_custom_call.1} parent=1 // pred_check_branch
      %98 = sbr.rel (0) target = $region29
    $region28: #{tpu_custom_call.1} parent=1 // pred_region
      %s100 = ssub.s32 16, 16
      %101 = vsyncadd [#allocation14], %s100
      %s103 = sshll.u32 [#allocation15], 4
      %s104 = int_to_ptr.vmem [resolvable:$true] %s103
      %106 = dma.hbm_to_vmem [thread:$0]  %s6, 16, %s104, [#allocation14]
    $region29: #{tpu_custom_call.1} parent=1 // pred_fallthru
      _
    // Predicated region
    $region30: #{tpu_custom_call.1} parent=1 // pred_check
      _
    $region31: #{tpu_custom_call.1} parent=1 // pred_check_branch
      %108 = sbr.rel (0) target = $region33
    $region32: #{tpu_custom_call.1} parent=1 // pred_region
      %s110 = ssub.s32 256, 256
      %111 = vsyncadd [#allocation17], %s110
      %s112 = sshll.u32 [#allocation16], 4
      %s113 = int_to_ptr.vmem [resolvable:$true] %s112
      %118 = dma.hbm_to_vmem [thread:$0]  %s7, 256, %s113, [#allocation17], 64, 64, 4
    $region33: #{tpu_custom_call.1} parent=1 // pred_fallthru
      _
    // Predicated region
    $region34: #{tpu_custom_call.1} parent=1 // pred_check
      _
    $region35: #{tpu_custom_call.1} parent=1 // pred_check_branch
      %120 = sbr.rel (0) target = $region37
    $region36: #{tpu_custom_call.1} parent=1 // pred_region
      %s122 = ssub.s32 256, 256
      %123 = vsyncadd [#allocation17], %s122
      %s124 = sshll.u32 [#allocation18], 4
      %s125 = int_to_ptr.vmem [resolvable:$true] %s124
      %130 = dma.hbm_to_vmem [thread:$0]  %s8, 256, %s125, [#allocation17], 64, 64, 4
    $region37: #{tpu_custom_call.1} parent=1 // pred_fallthru
      _
    // Predicated region
    $region38: #{tpu_custom_call.1} parent=1 // pred_check
      _
    $region39: #{tpu_custom_call.1} parent=1 // pred_check_branch
      %132 = sbr.rel (0) target = $region41
    $region40: #{tpu_custom_call.1} parent=1 // pred_region
      %s134 = ssub.s32 16, 16
      %135 = vsyncadd [#allocation20], %s134
      %s137 = sshll.u32 [#allocation19], 4
      %s138 = int_to_ptr.vmem [resolvable:$true] %s137
      %140 = dma.hbm_to_vmem [thread:$0]  %s9, 16, %s138, [#allocation20]
    $region41: #{tpu_custom_call.1} parent=1 // pred_fallthru
      _
    // Predicated region
    $region42: #{tpu_custom_call.1} parent=1 // pred_check
      _
    $region43: #{tpu_custom_call.1} parent=1 // pred_check_branch
      %142 = sbr.rel (0) target = $region45
    $region44: #{tpu_custom_call.1} parent=1 // pred_region
      %s144 = ssub.s32 256, 256
      %145 = vsyncadd [#allocation20], %s144
      %s146 = sshll.u32 [#allocation21], 4
      %s147 = int_to_ptr.vmem [resolvable:$true] %s146
      %152 = dma.hbm_to_vmem [thread:$0]  %s10, 256, %s147, [#allocation20], 64, 64, 4
    $region45: #{tpu_custom_call.1} parent=1 // pred_fallthru
      _
    // Predicated region
    $region46: #{tpu_custom_call.1} parent=1 // pred_check
      _
    $region47: #{tpu_custom_call.1} parent=1 // pred_check_branch
      %154 = sbr.rel (0) target = $region49
    $region48: #{tpu_custom_call.1} parent=1 // pred_region
      %s156 = ssub.s32 256, 256
      %157 = vsyncadd [#allocation23], %s156
      %s158 = sshll.u32 [#allocation22], 4
      %s159 = int_to_ptr.vmem [resolvable:$true] %s158
      %164 = dma.hbm_to_vmem [thread:$0]  %s11, 256, %s159, [#allocation23], 64, 64, 4
    $region49: #{tpu_custom_call.1} parent=1 // pred_fallthru
      _
    // Predicated region
    $region50: #{tpu_custom_call.1} parent=1 // pred_check
      _
    $region51: #{tpu_custom_call.1} parent=1 // pred_check_branch
      %166 = sbr.rel (0) target = $region53
    $region52: #{tpu_custom_call.1} parent=1 // pred_region
      %s168 = ssub.s32 16, 16
      %169 = vsyncadd [#allocation23], %s168
      %s171 = sshll.u32 [#allocation24], 4
      %s172 = int_to_ptr.vmem [resolvable:$true] %s171
      %174 = dma.hbm_to_vmem [thread:$0]  %s12, 16, %s172, [#allocation23]
    $region53: #{tpu_custom_call.1} parent=1 // pred_fallthru
      _
    // Predicated region
    $region54: #{tpu_custom_call.1} parent=1 // pred_check
      _
    $region55: #{tpu_custom_call.1} parent=1 // pred_check_branch
      %176 = sbr.rel (0) target = $region57
    $region56: #{tpu_custom_call.1} parent=1 // pred_region
      %s178 = ssub.s32 256, 256
      %179 = vsyncadd [#allocation26], %s178
      %s180 = sshll.u32 [#allocation25], 4
      %s181 = int_to_ptr.vmem [resolvable:$true] %s180
      %186 = dma.hbm_to_vmem [thread:$0]  %s13, 256, %s181, [#allocation26], 64, 64, 4
    $region57: #{tpu_custom_call.1} parent=1 // pred_fallthru
      _
    // Predicated region
    $region58: #{tpu_custom_call.1} parent=1 // pred_check
      _
    $region59: #{tpu_custom_call.1} parent=1 // pred_check_branch
      %188 = sbr.rel (0) target = $region61
    $region60: #{tpu_custom_call.1} parent=1 // pred_region
      %s190 = ssub.s32 16, 16
      %191 = vsyncadd [#allocation26], %s190
      %s193 = sshll.u32 [#allocation27], 4
      %s194 = int_to_ptr.vmem [resolvable:$true] %s193
      %196 = dma.hbm_to_vmem [thread:$0]  %s14, 16, %s194, [#allocation26]
    $region61: #{tpu_custom_call.1} parent=1 // pred_fallthru
      _
    // Predicated region
    $region62: #{tpu_custom_call.1} parent=1 // pred_check
      _
    $region63: #{tpu_custom_call.1} parent=1 // pred_check_branch
      %198 = sbr.rel (0) target = $region65
    $region64: #{tpu_custom_call.1} parent=1 // pred_region
      %199 = dma.done [#allocation5], 1024
    $region65: #{tpu_custom_call.1} parent=1 // pred_fallthru
      _
    // Predicated region
    $region66: #{tpu_custom_call.1} parent=1 // pred_check
      _
    $region67: #{tpu_custom_call.1} parent=1 // pred_check_branch
      %201 = sbr.rel (0) target = $region69
    $region68: #{tpu_custom_call.1} parent=1 // pred_region
      %202 = dma.done [#allocation8], 32
    $region69: #{tpu_custom_call.1} parent=1 // pred_fallthru
      _
    // Predicated region
    $region70: #{tpu_custom_call.1} parent=1 // pred_check
      _
    $region71: #{tpu_custom_call.1} parent=1 // pred_check_branch
      %204 = sbr.rel (0) target = $region73
    $region72: #{tpu_custom_call.1} parent=1 // pred_region
      %205 = dma.done [#allocation8], 256
    $region73: #{tpu_custom_call.1} parent=1 // pred_fallthru
      _
    // Predicated region
    $region74: #{tpu_custom_call.1} parent=1 // pred_check
      _
    $region75: #{tpu_custom_call.1} parent=1 // pred_check_branch
      %207 = sbr.rel (0) target = $region77
    $region76: #{tpu_custom_call.1} parent=1 // pred_region
      %208 = dma.done [#allocation11], 16
    $region77: #{tpu_custom_call.1} parent=1 // pred_fallthru
      _
    // Predicated region
    $region78: #{tpu_custom_call.1} parent=1 // pred_check
      _
    $region79: #{tpu_custom_call.1} parent=1 // pred_check_branch
      %210 = sbr.rel (0) target = $region81
    $region80: #{tpu_custom_call.1} parent=1 // pred_region
      %211 = dma.done [#allocation11], 256
    $region81: #{tpu_custom_call.1} parent=1 // pred_fallthru
      _
    // Predicated region
    $region82: #{tpu_custom_call.1} parent=1 // pred_check
      _
    $region83: #{tpu_custom_call.1} parent=1 // pred_check_branch
      %213 = sbr.rel (0) target = $region85
    $region84: #{tpu_custom_call.1} parent=1 // pred_region
      %214 = dma.done [#allocation14], 256
    $region85: #{tpu_custom_call.1} parent=1 // pred_fallthru
      _
    // Predicated region
    $region86: #{tpu_custom_call.1} parent=1 // pred_check
      _
    $region87: #{tpu_custom_call.1} parent=1 // pred_check_branch
      %216 = sbr.rel (0) target = $region89
    $region88: #{tpu_custom_call.1} parent=1 // pred_region
      %217 = dma.done [#allocation14], 16
    $region89: #{tpu_custom_call.1} parent=1 // pred_fallthru
      _
    // Predicated region
    $region90: #{tpu_custom_call.1} parent=1 // pred_check
      _
    $region91: #{tpu_custom_call.1} parent=1 // pred_check_branch
      %219 = sbr.rel (0) target = $region93
    $region92: #{tpu_custom_call.1} parent=1 // pred_region
      %220 = dma.done [#allocation17], 256
    $region93: #{tpu_custom_call.1} parent=1 // pred_fallthru
      _
    // Predicated region
    $region94: #{tpu_custom_call.1} parent=1 // pred_check
      _
    $region95: #{tpu_custom_call.1} parent=1 // pred_check_branch
      %222 = sbr.rel (0) target = $region97
    $region96: #{tpu_custom_call.1} parent=1 // pred_region
      %223 = dma.done [#allocation17], 256
    $region97: #{tpu_custom_call.1} parent=1 // pred_fallthru
      _
    // Predicated region
    $region98: #{tpu_custom_call.1} parent=1 // pred_check
      _
    $region99: #{tpu_custom_call.1} parent=1 // pred_check_branch
      %225 = sbr.rel (0) target = $region101
    $region100: #{tpu_custom_call.1} parent=1 // pred_region
      %226 = dma.done [#allocation20], 16
    $region101: #{tpu_custom_call.1} parent=1 // pred_fallthru
      _
    // Predicated region
    $region102: #{tpu_custom_call.1} parent=1 // pred_check
      _
    $region103: #{tpu_custom_call.1} parent=1 // pred_check_branch
      %228 = sbr.rel (0) target = $region105
    $region104: #{tpu_custom_call.1} parent=1 // pred_region
      %229 = dma.done [#allocation20], 256
    $region105: #{tpu_custom_call.1} parent=1 // pred_fallthru
      _
    // Predicated region
    $region106: #{tpu_custom_call.1} parent=1 // pred_check
      _
    $region107: #{tpu_custom_call.1} parent=1 // pred_check_branch
      %231 = sbr.rel (0) target = $region109
    $region108: #{tpu_custom_call.1} parent=1 // pred_region
      %232 = dma.done [#allocation23], 256
    $region109: #{tpu_custom_call.1} parent=1 // pred_fallthru
      _
    // Predicated region
    $region110: #{tpu_custom_call.1} parent=1 // pred_check
      _
    $region111: #{tpu_custom_call.1} parent=1 // pred_check_branch
      %234 = sbr.rel (0) target = $region113
    $region112: #{tpu_custom_call.1} parent=1 // pred_region
      %235 = dma.done [#allocation23], 16
    $region113: #{tpu_custom_call.1} parent=1 // pred_fallthru
      _
    // Predicated region
    $region114: #{tpu_custom_call.1} parent=1 // pred_check
      _
    $region115: #{tpu_custom_call.1} parent=1 // pred_check_branch
      %237 = sbr.rel (0) target = $region117
    $region116: #{tpu_custom_call.1} parent=1 // pred_region
      %238 = dma.done [#allocation26], 256
    $region117: #{tpu_custom_call.1} parent=1 // pred_fallthru
      _
    // Predicated region
    $region118: #{tpu_custom_call.1} parent=1 // pred_check
      _
    $region119: #{tpu_custom_call.1} parent=1 // pred_check_branch
      %240 = sbr.rel (0) target = $region121
    $region120: #{tpu_custom_call.1} parent=1 // pred_region
      %241 = dma.done [#allocation26], 16
    $region121: #{tpu_custom_call.1} parent=1 // pred_fallthru
      _
    %v243 = vld [vmem:[#allocation7] sm:$0x3]
    %v244 = vld [vmem:[#allocation9] sm:$0xf]
    %v245 = vld [vmem:[#allocation9 + $0x4] sm:$0xf]
    %v246 = vld [vmem:[#allocation9 + $0x8] sm:$0xf]
    %v247 = vld [vmem:[#allocation9 + $0xc] sm:$0xf]
    %v248 = vld [vmem:[#allocation10] sm:$0x1]
    %v249 = vld [vmem:[#allocation12] sm:$0xf]
    %v250 = vld [vmem:[#allocation12 + $0x4] sm:$0xf]
    %v251 = vld [vmem:[#allocation12 + $0x8] sm:$0xf]
    %v252 = vld [vmem:[#allocation12 + $0xc] sm:$0xf]
    %v253 = vld [vmem:[#allocation13] sm:$0xf]
    %v254 = vld [vmem:[#allocation13 + $0x4] sm:$0xf]
    %v255 = vld [vmem:[#allocation13 + $0x8] sm:$0xf]
    %v256 = vld [vmem:[#allocation13 + $0xc] sm:$0xf]
    %v257 = vld [vmem:[#allocation15] sm:$0x1]
    %v259 = vlaneseq
    %v260 = vshrl.u32 %v259, 7
    %v261 = vsub.s32 0, %v260
    %v262 = vrot.slane %v257, %v261
    %v264 = vld [vmem:[#allocation16] sm:$0xf]
    %v265 = vld [vmem:[#allocation16 + $0x4] sm:$0xf]
    %v266 = vld [vmem:[#allocation16 + $0x8] sm:$0xf]
    %v267 = vld [vmem:[#allocation16 + $0xc] sm:$0xf]
    %v268 = vld [vmem:[#allocation18] sm:$0xf]
    %v269 = vld [vmem:[#allocation18 + $0x4] sm:$0xf]
    %v270 = vld [vmem:[#allocation18 + $0x8] sm:$0xf]
    %v271 = vld [vmem:[#allocation18 + $0xc] sm:$0xf]
    %v272 = vld [vmem:[#allocation19] sm:$0x1]
    %v273 = vld [vmem:[#allocation21] sm:$0xf]
    %v274 = vld [vmem:[#allocation21 + $0x4] sm:$0xf]
    %v275 = vld [vmem:[#allocation21 + $0x8] sm:$0xf]
    %v276 = vld [vmem:[#allocation21 + $0xc] sm:$0xf]
    %v277 = vld [vmem:[#allocation22] sm:$0xf]
    %v278 = vld [vmem:[#allocation22 + $0x4] sm:$0xf]
    %v279 = vld [vmem:[#allocation22 + $0x8] sm:$0xf]
    %v280 = vld [vmem:[#allocation22 + $0xc] sm:$0xf]
    %v281 = vld [vmem:[#allocation24] sm:$0x1]
    %v283 = vlaneseq
    %v284 = vshrl.u32 %v283, 7
    %v285 = vsub.s32 0, %v284
    %v286 = vrot.slane %v281, %v285
    %v288 = vld [vmem:[#allocation25] sm:$0xf]
    %v289 = vld [vmem:[#allocation25 + $0x4] sm:$0xf]
    %v290 = vld [vmem:[#allocation25 + $0x8] sm:$0xf]
    %v291 = vld [vmem:[#allocation25 + $0xc] sm:$0xf]
    %v292 = vld [vmem:[#allocation27] sm:$0x1]
    %v293 = vld [vmem:[#allocation4] sm:$0xff]
    %v294 = vld [vmem:[#allocation4 + $0x8] sm:$0xff]
    %v295 = vld [vmem:[#allocation4 + $0x10] sm:$0xff]
    %v296 = vld [vmem:[#allocation4 + $0x18] sm:$0xff]
    %v297 = vld [vmem:[#allocation4 + $0x20] sm:$0xff]
    %v298 = vld [vmem:[#allocation4 + $0x28] sm:$0xff]
    %v299 = vld [vmem:[#allocation4 + $0x30] sm:$0xff]
    %v300 = vld [vmem:[#allocation4 + $0x38] sm:$0xff]
    %v301 = vpack.c.bf16 %v294, %v293
    %v302 = vpack.c.bf16 %v296, %v295
    %v303 = vpack.c.bf16 %v298, %v297
    %v304 = vpack.c.bf16 %v300, %v299
    %v306 = vlaneseq
    %v307 = vshrl.u32 %v306, 7
    %v308 = vsub.s32 0, %v307
    %v309 = vrot.slane %v248, %v308
    %vm311 = vcmask 31744
    %v313 = vsel %vm311, %v301, 0
    %v316 = vsel %vm311, %v302, 0
    %v319 = vsel %vm311, %v303, 0
    %v322 = vsel %vm311, %v304, 0
    %vm324 = vcmask 1041408
    %v326 = vsel %vm324, %v243, 0
    %328 = vmatprep.subr.bf16.mxu0 0
    %329 = vmatpush1.bf16.msra.mxu0 %v326
    %330 = vmatprep.subr.bf16.mxu0 0
    %331 = vmatpush1.bf16.msra.mxu0 0
    %332 = vmatprep.subr.bf16.mxu0 0
    %333 = vmatpush1.bf16.msra.mxu0 0
    %334 = vmatprep.subr.bf16.mxu0 0
    %335 = vmatpush1.bf16.msra.mxu0 0
    %336 = vmatprep.subr.bf16.mxu0 0
    %337 = vmatpush1.bf16.msra.mxu0 0
    %338 = vmatprep.subr.bf16.mxu0 0
    %339 = vmatpush1.bf16.msra.mxu0 0
    %340 = vmatprep.subr.bf16.mxu0 0
    %341 = vmatpush1.bf16.msra.mxu0 0
    %342 = vmatprep.subr.bf16.mxu0 0
    %343 = vmatpush1.bf16.msra.mxu0 0
    %344 = vmatprep.subr.bf16.mxu0 0
    %345 = vmatpush1.bf16.msra.mxu0 0
    %346 = vmatprep.subr.bf16.mxu0 0
    %347 = vmatpush1.bf16.msra.mxu0 0
    %348 = vmatprep.subr.bf16.mxu0 0
    %349 = vmatpush1.bf16.msra.mxu0 0
    %350 = vmatprep.subr.bf16.mxu0 0
    %351 = vmatpush1.bf16.msra.mxu0 0
    %352 = vmatprep.subr.bf16.mxu0 0
    %353 = vmatpush1.bf16.msra.mxu0 0
    %354 = vmatprep.subr.bf16.mxu0 0
    %355 = vmatpush1.bf16.msra.mxu0 0
    %356 = vmatprep.subr.bf16.mxu0 0
    %357 = vmatpush1.bf16.msra.mxu0 0
    %358 = vmatprep.subr.bf16.mxu0 0
    %359 = vmatpush1.bf16.msra.mxu0 0
    %360 = vmatprep.mubr.bf16.mxu0 0
    %361 = vmatmul.mubr.bf16.gmra.mrb[0].mxu0 %v313
    %v362 = vpop.f32.mrb[0].mxu0
    %v363 = vadd.f32 %v309, %v362
    %v364 = vpop.f32.mrb[0].mxu0
    %v365 = vpop.f32.mrb[0].mxu0
    %v366 = vadd.f32 %v309, %v365
    %v367 = vpop.f32.mrb[0].mxu0
    %368 = vmatprep.mubr.bf16.mxu0 0
    %369 = vmatmul.mubr.bf16.gmra.mrb[0].mxu0 %v316
    %v370 = vpop.f32.mrb[0].mxu0
    %v371 = vadd.f32 %v309, %v370
    %v372 = vpop.f32.mrb[0].mxu0
    %v373 = vpop.f32.mrb[0].mxu0
    %v374 = vadd.f32 %v309, %v373
    %v375 = vpop.f32.mrb[0].mxu0
    %376 = vmatprep.mubr.bf16.mxu0 0
    %377 = vmatmul.mubr.bf16.gmra.mrb[0].mxu0 %v319
    %v378 = vpop.f32.mrb[0].mxu0
    %v379 = vadd.f32 %v309, %v378
    %v380 = vpop.f32.mrb[0].mxu0
    %v381 = vpop.f32.mrb[0].mxu0
    %v382 = vadd.f32 %v309, %v381
    %v383 = vpop.f32.mrb[0].mxu0
    %384 = vmatprep.mubr.bf16.mxu0 0
    %385 = vmatmul.mubr.bf16.gmra.mrb[0].mxu0 %v322
    %v386 = vpop.f32.mrb[0].mxu0
    %v387 = vadd.f32 %v309, %v386
    %v388 = vpop.f32.mrb[0].mxu0
    %v389 = vpop.f32.mrb[0].mxu0
    %v390 = vadd.f32 %v309, %v389
    %v391 = vpop.f32.mrb[0].mxu0
    %392 = vdwg.mxu0
    %393 = vst [vmem:[#allocation2] sm:$0xff] %v363
    %394 = vst [vmem:[#allocation2 + $0x8] sm:$0xff] %v366
    %395 = vst [vmem:[#allocation2 + $0x10] sm:$0xff] %v371
    %396 = vst [vmem:[#allocation2 + $0x18] sm:$0xff] %v374
    %397 = vst [vmem:[#allocation2 + $0x20] sm:$0xff] %v379
    %398 = vst [vmem:[#allocation2 + $0x28] sm:$0xff] %v382
    %399 = vst [vmem:[#allocation2 + $0x30] sm:$0xff] %v387
    %400 = vst [vmem:[#allocation2 + $0x38] sm:$0xff] %v390
    %v401 = vld [vmem:[#allocation2] sm:$0xff]
    %v406 = vunpack.c.l.b16 %v244
    %v407 = vunpack.c.l.b16 %v245
    %v408 = vunpack.c.l.b16 %v246
    %v409 = vunpack.c.l.b16 %v247
    %v410 = vpack.c.b16 %v407, %v406
    %v411 = vpack.c.b16 %v409, %v408
    %vm414 = vcmask 261120
    %v416 = vsel %vm414, 0, 0
    %418 = vmatprep.subr.bf16.mxu0 0
    %419 = vmatpush1.bf16.msra.mxu0 %v410
    %420 = vmatprep.subr.bf16.mxu0 0
    %421 = vmatpush1.bf16.msra.mxu0 %v411
    %422 = vmatprep.subr.bf16.mxu0 0
    %423 = vmatpush1.bf16.msra.mxu0 0
    %424 = vmatprep.subr.bf16.mxu0 0
    %425 = vmatpush1.bf16.msra.mxu0 0
    %426 = vmatprep.subr.bf16.mxu0 0
    %427 = vmatpush1.bf16.msra.mxu0 0
    %428 = vmatprep.subr.bf16.mxu0 0
    %429 = vmatpush1.bf16.msra.mxu0 0
    %430 = vmatprep.subr.bf16.mxu0 0
    %431 = vmatpush1.bf16.msra.mxu0 0
    %432 = vmatprep.subr.bf16.mxu0 0
    %433 = vmatpush1.bf16.msra.mxu0 0
    %434 = vmatprep.subr.bf16.mxu0 0
    %435 = vmatpush1.bf16.msra.mxu0 0
    %436 = vmatprep.subr.bf16.mxu0 0
    %437 = vmatpush1.bf16.msra.mxu0 0
    %438 = vmatprep.subr.bf16.mxu0 0
    %439 = vmatpush1.bf16.msra.mxu0 0
    %440 = vmatprep.subr.bf16.mxu0 0
    %441 = vmatpush1.bf16.msra.mxu0 0
    %442 = vmatprep.subr.bf16.mxu0 0
    %443 = vmatpush1.bf16.msra.mxu0 0
    %444 = vmatprep.subr.bf16.mxu0 0
    %445 = vmatpush1.bf16.msra.mxu0 0
    %446 = vmatprep.subr.bf16.mxu0 0
    %447 = vmatpush1.bf16.msra.mxu0 0
    %448 = vmatprep.subr.bf16.mxu0 0
    %449 = vmatpush1.bf16.msra.mxu0 0
    %450 = vmatprep.mubr.bf16.mxu0 0
    %451 = vmatmul.mubr.bf16.gmra.mrb[0].mxu0 %v416
    %v452 = vpop.f32.mrb[0].mxu0
    %v453 = vadd.f32 0.0, %v452
    %v454 = vpop.f32.mrb[0].mxu0
    %v455 = vpop.f32.mrb[0].mxu0
    %v456 = vpop.f32.mrb[0].mxu0
    %457 = vdwg.mxu0
    %v458 = vadd.f32 %v401, %v453
    %v459 = vxor.u32 %v458, 2147483648
    %v460 = vmul.f32 %v459, 1.442695
    %v461 = vpow.pop %v460
    %v462 = vadd.f32 %v461, 1.0
    %v463 = vrcp.pop %v462
    %v464 = vmul.f32 1.0, %v463
    %v465 = vtanh.pop %v458
    %v466 = vmul.f32 %v464, 0.0
    %468 = vrot.lane.b32.xlu0 %v465, 32
    %v469 = vpop.permute.xlu0 %468
    %v471 = vmul.f32 %v464, %v469
    %473 = vrot.lane.b32.xlu0 %v471, 32
    %v474 = vpop.permute.xlu0 %473
    %v476 = vadd.f32 %v466, %v474
    %v477 = vtanh.pop %v476
    %479 = vrot.lane.b32.xlu0 %v477, 32
    %v480 = vpop.permute.xlu0 %479
    %v482 = vmul.f32 %v464, %v480
    %v483 = vpack.c.bf16 %v482, %v482
    %v488 = vunpack.c.l.b16 %v253
    %v489 = vunpack.c.l.b16 %v254
    %v490 = vunpack.c.l.b16 %v255
    %v491 = vunpack.c.l.b16 %v256
    %v492 = vpack.c.b16 %v489, %v488
    %v493 = vpack.c.b16 %v491, %v490
    %496 = vmatprep.subr.bf16.mxu0 0
    %497 = vmatpush1.bf16.msra.mxu0 %v492
    %498 = vmatprep.subr.bf16.mxu0 0
    %499 = vmatpush1.bf16.msra.mxu0 %v493
    %500 = vmatprep.subr.bf16.mxu0 0
    %501 = vmatpush1.bf16.msra.mxu0 0
    %502 = vmatprep.subr.bf16.mxu0 0
    %503 = vmatpush1.bf16.msra.mxu0 0
    %504 = vmatprep.subr.bf16.mxu0 0
    %505 = vmatpush1.bf16.msra.mxu0 0
    %506 = vmatprep.subr.bf16.mxu0 0
    %507 = vmatpush1.bf16.msra.mxu0 0
    %508 = vmatprep.subr.bf16.mxu0 0
    %509 = vmatpush1.bf16.msra.mxu0 0
    %510 = vmatprep.subr.bf16.mxu0 0
    %511 = vmatpush1.bf16.msra.mxu0 0
    %512 = vmatprep.subr.bf16.mxu0 0
    %513 = vmatpush1.bf16.msra.mxu0 0
    %514 = vmatprep.subr.bf16.mxu0 0
    %515 = vmatpush1.bf16.msra.mxu0 0
    %516 = vmatprep.subr.bf16.mxu0 0
    %517 = vmatpush1.bf16.msra.mxu0 0
    %518 = vmatprep.subr.bf16.mxu0 0
    %519 = vmatpush1.bf16.msra.mxu0 0
    %520 = vmatprep.subr.bf16.mxu0 0
    %521 = vmatpush1.bf16.msra.mxu0 0
    %522 = vmatprep.subr.bf16.mxu0 0
    %523 = vmatpush1.bf16.msra.mxu0 0
    %524 = vmatprep.subr.bf16.mxu0 0
    %525 = vmatpush1.bf16.msra.mxu0 0
    %526 = vmatprep.subr.bf16.mxu0 0
    %527 = vmatpush1.bf16.msra.mxu0 0
    %528 = vmatprep.mubr.bf16.mxu0 0
    %529 = vmatmul.mubr.bf16.gmra.mrb[0].mxu0 %v416
    %v530 = vpop.f32.mrb[0].mxu0
    %v531 = vadd.f32 0.0, %v530
    %v532 = vpop.f32.mrb[0].mxu0
    %v533 = vpop.f32.mrb[0].mxu0
    %v534 = vpop.f32.mrb[0].mxu0
    %535 = vdwg.mxu0
    %537 = vrot.lane.b32.xlu0 %v483, 64
    %v538 = vpop.permute.xlu0 %537
    %v543 = vunpack.c.l.b16 %v249
    %v544 = vunpack.c.l.b16 %v250
    %v545 = vunpack.c.l.b16 %v251
    %v546 = vunpack.c.l.b16 %v252
    %v547 = vpack.c.b16 %v544, %v543
    %v548 = vpack.c.b16 %v546, %v545
    %v552 = vsel %vm414, %v538, 0
    %554 = vmatprep.subr.bf16.mxu0 0
    %555 = vmatpush1.bf16.msra.mxu0 %v547
    %556 = vmatprep.subr.bf16.mxu0 0
    %557 = vmatpush1.bf16.msra.mxu0 %v548
    %558 = vmatprep.subr.bf16.mxu0 0
    %559 = vmatpush1.bf16.msra.mxu0 0
    %560 = vmatprep.subr.bf16.mxu0 0
    %561 = vmatpush1.bf16.msra.mxu0 0
    %562 = vmatprep.subr.bf16.mxu0 0
    %563 = vmatpush1.bf16.msra.mxu0 0
    %564 = vmatprep.subr.bf16.mxu0 0
    %565 = vmatpush1.bf16.msra.mxu0 0
    %566 = vmatprep.subr.bf16.mxu0 0
    %567 = vmatpush1.bf16.msra.mxu0 0
    %568 = vmatprep.subr.bf16.mxu0 0
    %569 = vmatpush1.bf16.msra.mxu0 0
    %570 = vmatprep.subr.bf16.mxu0 0
    %571 = vmatpush1.bf16.msra.mxu0 0
    %572 = vmatprep.subr.bf16.mxu0 0
    %573 = vmatpush1.bf16.msra.mxu0 0
    %574 = vmatprep.subr.bf16.mxu0 0
    %575 = vmatpush1.bf16.msra.mxu0 0
    %576 = vmatprep.subr.bf16.mxu0 0
    %577 = vmatpush1.bf16.msra.mxu0 0
    %578 = vmatprep.subr.bf16.mxu0 0
    %579 = vmatpush1.bf16.msra.mxu0 0
    %580 = vmatprep.subr.bf16.mxu0 0
    %581 = vmatpush1.bf16.msra.mxu0 0
    %582 = vmatprep.subr.bf16.mxu0 0
    %583 = vmatpush1.bf16.msra.mxu0 0
    %584 = vmatprep.subr.bf16.mxu0 0
    %585 = vmatpush1.bf16.msra.mxu0 0
    %586 = vmatprep.mubr.bf16.mxu0 0
    %587 = vmatmul.mubr.bf16.gmra.mrb[0].mxu0 %v552
    %v588 = vpop.f32.mrb[0].mxu0
    %v589 = vadd.f32 %v531, %v588
    %v590 = vpop.f32.mrb[0].mxu0
    %v591 = vpop.f32.mrb[0].mxu0
    %v592 = vpop.f32.mrb[0].mxu0
    %593 = vdwg.mxu0
    %v594 = vadd.f32 %v589, %v262
    %v595 = vxor.u32 %v594, 2147483648
    %v596 = vmul.f32 %v595, 1.442695
    %v597 = vpow.pop %v596
    %v598 = vadd.f32 %v597, 1.0
    %v599 = vrcp.pop %v598
    %v600 = vmul.f32 1.0, %v599
    %v601 = vtanh.pop %v594
    %v602 = vmul.f32 %v600, 0.0
    %604 = vrot.lane.b32.xlu0 %v601, 32
    %v605 = vpop.permute.xlu0 %604
    %v607 = vmul.f32 %v600, %v605
    %609 = vrot.lane.b32.xlu0 %v607, 32
    %v610 = vpop.permute.xlu0 %609
    %v612 = vadd.f32 %v602, %v610
    %v613 = vtanh.pop %v612
    %615 = vrot.lane.b32.xlu0 %v613, 32
    %v616 = vpop.permute.xlu0 %615
    %v618 = vmul.f32 %v600, %v616
    %s619 = scalar_lea.vmem [#allocation2], 8
    %v620 = vld [vmem:[%s619] sm:$0xff]
    %621 = vmatprep.subr.bf16.mxu0 0
    %622 = vmatpush1.bf16.msra.mxu0 %v410
    %623 = vmatprep.subr.bf16.mxu0 0
    %624 = vmatpush1.bf16.msra.mxu0 %v411
    %625 = vmatprep.subr.bf16.mxu0 0
    %626 = vmatpush1.bf16.msra.mxu0 0
    %627 = vmatprep.subr.bf16.mxu0 0
    %628 = vmatpush1.bf16.msra.mxu0 0
    %629 = vmatprep.subr.bf16.mxu0 0
    %630 = vmatpush1.bf16.msra.mxu0 0
    %631 = vmatprep.subr.bf16.mxu0 0
    %632 = vmatpush1.bf16.msra.mxu0 0
    %633 = vmatprep.subr.bf16.mxu0 0
    %634 = vmatpush1.bf16.msra.mxu0 0
    %635 = vmatprep.subr.bf16.mxu0 0
    %636 = vmatpush1.bf16.msra.mxu0 0
    %637 = vmatprep.subr.bf16.mxu0 0
    %638 = vmatpush1.bf16.msra.mxu0 0
    %639 = vmatprep.subr.bf16.mxu0 0
    %640 = vmatpush1.bf16.msra.mxu0 0
    %641 = vmatprep.subr.bf16.mxu0 0
    %642 = vmatpush1.bf16.msra.mxu0 0
    %643 = vmatprep.subr.bf16.mxu0 0
    %644 = vmatpush1.bf16.msra.mxu0 0
    %645 = vmatprep.subr.bf16.mxu0 0
    %646 = vmatpush1.bf16.msra.mxu0 0
    %647 = vmatprep.subr.bf16.mxu0 0
    %648 = vmatpush1.bf16.msra.mxu0 0
    %649 = vmatprep.subr.bf16.mxu0 0
    %650 = vmatpush1.bf16.msra.mxu0 0
    %651 = vmatprep.subr.bf16.mxu0 0
    %652 = vmatpush1.bf16.msra.mxu0 0
    %653 = vmatprep.mubr.bf16.mxu0 0
    %654 = vmatmul.mubr.bf16.gmra.mrb[0].mxu0 %v552
    %v655 = vpop.f32.mrb[0].mxu0
    %v656 = vadd.f32 0.0, %v655
    %v657 = vpop.f32.mrb[0].mxu0
    %v658 = vpop.f32.mrb[0].mxu0
    %v659 = vpop.f32.mrb[0].mxu0
    %660 = vdwg.mxu0
    %v661 = vadd.f32 %v620, %v656
    %v662 = vxor.u32 %v661, 2147483648
    %v663 = vmul.f32 %v662, 1.442695
    %v664 = vpow.pop %v663
    %v665 = vadd.f32 %v664, 1.0
    %v666 = vrcp.pop %v665
    %v667 = vmul.f32 1.0, %v666
    %v668 = vtanh.pop %v661
    %v669 = vmul.f32 %v667, %v476
    %671 = vrot.lane.b32.xlu0 %v668, 32
    %v672 = vpop.permute.xlu0 %671
    %v674 = vmul.f32 %v667, %v672
    %676 = vrot.lane.b32.xlu0 %v674, 32
    %v677 = vpop.permute.xlu0 %676
    %v679 = vadd.f32 %v669, %v677
    %v680 = vtanh.pop %v679
    %682 = vrot.lane.b32.xlu0 %v680, 32
    %v683 = vpop.permute.xlu0 %682
    %v685 = vmul.f32 %v667, %v683
    %v686 = vpack.c.bf16 %v685, %v685
    %v687 = vpack.c.bf16 %v618, %v618
    %689 = vrot.lane.b32.xlu0 %v687, 64
    %v690 = vpop.permute.xlu0 %689
    %v692 = vsel %vm414, %v690, 0
    %694 = vmatprep.subr.bf16.mxu0 0
    %695 = vmatpush1.bf16.msra.mxu0 %v492
    %696 = vmatprep.subr.bf16.mxu0 0
    %697 = vmatpush1.bf16.msra.mxu0 %v493
    %698 = vmatprep.subr.bf16.mxu0 0
    %699 = vmatpush1.bf16.msra.mxu0 0
    %700 = vmatprep.subr.bf16.mxu0 0
    %701 = vmatpush1.bf16.msra.mxu0 0
    %702 = vmatprep.subr.bf16.mxu0 0
    %703 = vmatpush1.bf16.msra.mxu0 0
    %704 = vmatprep.subr.bf16.mxu0 0
    %705 = vmatpush1.bf16.msra.mxu0 0
    %706 = vmatprep.subr.bf16.mxu0 0
    %707 = vmatpush1.bf16.msra.mxu0 0
    %708 = vmatprep.subr.bf16.mxu0 0
    %709 = vmatpush1.bf16.msra.mxu0 0
    %710 = vmatprep.subr.bf16.mxu0 0
    %711 = vmatpush1.bf16.msra.mxu0 0
    %712 = vmatprep.subr.bf16.mxu0 0
    %713 = vmatpush1.bf16.msra.mxu0 0
    %714 = vmatprep.subr.bf16.mxu0 0
    %715 = vmatpush1.bf16.msra.mxu0 0
    %716 = vmatprep.subr.bf16.mxu0 0
    %717 = vmatpush1.bf16.msra.mxu0 0
    %718 = vmatprep.subr.bf16.mxu0 0
    %719 = vmatpush1.bf16.msra.mxu0 0
    %720 = vmatprep.subr.bf16.mxu0 0
    %721 = vmatpush1.bf16.msra.mxu0 0
    %722 = vmatprep.subr.bf16.mxu0 0
    %723 = vmatpush1.bf16.msra.mxu0 0
    %724 = vmatprep.subr.bf16.mxu0 0
    %725 = vmatpush1.bf16.msra.mxu0 0
    %726 = vmatprep.mubr.bf16.mxu0 0
    %727 = vmatmul.mubr.bf16.gmra.mrb[0].mxu0 %v692
    %v728 = vpop.f32.mrb[0].mxu0
    %v729 = vadd.f32 0.0, %v728
    %v730 = vpop.f32.mrb[0].mxu0
    %v731 = vpop.f32.mrb[0].mxu0
    %v732 = vpop.f32.mrb[0].mxu0
    %733 = vdwg.mxu0
    %735 = vrot.lane.b32.xlu0 %v686, 64
    %v736 = vpop.permute.xlu0 %735
    %v738 = vsel %vm414, %v736, 0
    %740 = vmatprep.subr.bf16.mxu0 0
    %741 = vmatpush1.bf16.msra.mxu0 %v547
    %742 = vmatprep.subr.bf16.mxu0 0
    %743 = vmatpush1.bf16.msra.mxu0 %v548
    %744 = vmatprep.subr.bf16.mxu0 0
    %745 = vmatpush1.bf16.msra.mxu0 0
    %746 = vmatprep.subr.bf16.mxu0 0
    %747 = vmatpush1.bf16.msra.mxu0 0
    %748 = vmatprep.subr.bf16.mxu0 0
    %749 = vmatpush1.bf16.msra.mxu0 0
    %750 = vmatprep.subr.bf16.mxu0 0
    %751 = vmatpush1.bf16.msra.mxu0 0
    %752 = vmatprep.subr.bf16.mxu0 0
    %753 = vmatpush1.bf16.msra.mxu0 0
    %754 = vmatprep.subr.bf16.mxu0 0
    %755 = vmatpush1.bf16.msra.mxu0 0
    %756 = vmatprep.subr.bf16.mxu0 0
    %757 = vmatpush1.bf16.msra.mxu0 0
    %758 = vmatprep.subr.bf16.mxu0 0
    %759 = vmatpush1.bf16.msra.mxu0 0
    %760 = vmatprep.subr.bf16.mxu0 0
    %761 = vmatpush1.bf16.msra.mxu0 0
    %762 = vmatprep.subr.bf16.mxu0 0
    %763 = vmatpush1.bf16.msra.mxu0 0
    %764 = vmatprep.subr.bf16.mxu0 0
    %765 = vmatpush1.bf16.msra.mxu0 0
    %766 = vmatprep.subr.bf16.mxu0 0
    %767 = vmatpush1.bf16.msra.mxu0 0
    %768 = vmatprep.subr.bf16.mxu0 0
    %769 = vmatpush1.bf16.msra.mxu0 0
    %770 = vmatprep.subr.bf16.mxu0 0
    %771 = vmatpush1.bf16.msra.mxu0 0
    %772 = vmatprep.mubr.bf16.mxu0 0
    %773 = vmatmul.mubr.bf16.gmra.mrb[0].mxu0 %v738
    %v774 = vpop.f32.mrb[0].mxu0
    %v775 = vadd.f32 %v729, %v774
    %v776 = vpop.f32.mrb[0].mxu0
    %v777 = vpop.f32.mrb[0].mxu0
    %v778 = vpop.f32.mrb[0].mxu0
    %779 = vdwg.mxu0
    %v780 = vadd.f32 %v775, %v262
    %v781 = vxor.u32 %v780, 2147483648
    %v782 = vmul.f32 %v781, 1.442695
    %v783 = vpow.pop %v782
    %v784 = vadd.f32 %v783, 1.0
    %v785 = vrcp.pop %v784
    %v786 = vmul.f32 1.0, %v785
    %v787 = vtanh.pop %v780
    %v788 = vmul.f32 %v786, %v612
    %790 = vrot.lane.b32.xlu0 %v787, 32
    %v791 = vpop.permute.xlu0 %790
    %v793 = vmul.f32 %v786, %v791
    %795 = vrot.lane.b32.xlu0 %v793, 32
    %v796 = vpop.permute.xlu0 %795
    %v798 = vadd.f32 %v788, %v796
    %v799 = vtanh.pop %v798
    %801 = vrot.lane.b32.xlu0 %v799, 32
    %v802 = vpop.permute.xlu0 %801
    %v804 = vmul.f32 %v786, %v802
    %s805 = scalar_lea.vmem [#allocation2], 16
    %v806 = vld [vmem:[%s805] sm:$0xff]
    %807 = vmatprep.subr.bf16.mxu0 0
    %808 = vmatpush1.bf16.msra.mxu0 %v410
    %809 = vmatprep.subr.bf16.mxu0 0
    %810 = vmatpush1.bf16.msra.mxu0 %v411
    %811 = vmatprep.subr.bf16.mxu0 0
    %812 = vmatpush1.bf16.msra.mxu0 0
    %813 = vmatprep.subr.bf16.mxu0 0
    %814 = vmatpush1.bf16.msra.mxu0 0
    %815 = vmatprep.subr.bf16.mxu0 0
    %816 = vmatpush1.bf16.msra.mxu0 0
    %817 = vmatprep.subr.bf16.mxu0 0
    %818 = vmatpush1.bf16.msra.mxu0 0
    %819 = vmatprep.subr.bf16.mxu0 0
    %820 = vmatpush1.bf16.msra.mxu0 0
    %821 = vmatprep.subr.bf16.mxu0 0
    %822 = vmatpush1.bf16.msra.mxu0 0
    %823 = vmatprep.subr.bf16.mxu0 0
    %824 = vmatpush1.bf16.msra.mxu0 0
    %825 = vmatprep.subr.bf16.mxu0 0
    %826 = vmatpush1.bf16.msra.mxu0 0
    %827 = vmatprep.subr.bf16.mxu0 0
    %828 = vmatpush1.bf16.msra.mxu0 0
    %829 = vmatprep.subr.bf16.mxu0 0
    %830 = vmatpush1.bf16.msra.mxu0 0
    %831 = vmatprep.subr.bf16.mxu0 0
    %832 = vmatpush1.bf16.msra.mxu0 0
    %833 = vmatprep.subr.bf16.mxu0 0
    %834 = vmatpush1.bf16.msra.mxu0 0
    %835 = vmatprep.subr.bf16.mxu0 0
    %836 = vmatpush1.bf16.msra.mxu0 0
    %837 = vmatprep.subr.bf16.mxu0 0
    %838 = vmatpush1.bf16.msra.mxu0 0
    %839 = vmatprep.mubr.bf16.mxu0 0
    %840 = vmatmul.mubr.bf16.gmra.mrb[0].mxu0 %v738
    %v841 = vpop.f32.mrb[0].mxu0
    %v842 = vadd.f32 0.0, %v841
    %v843 = vpop.f32.mrb[0].mxu0
    %v844 = vpop.f32.mrb[0].mxu0
    %v845 = vpop.f32.mrb[0].mxu0
    %846 = vdwg.mxu0
    %v847 = vadd.f32 %v806, %v842
    %v848 = vxor.u32 %v847, 2147483648
    %v849 = vmul.f32 %v848, 1.442695
    %v850 = vpow.pop %v849
    %v851 = vadd.f32 %v850, 1.0
    %v852 = vrcp.pop %v851
    %v853 = vmul.f32 1.0, %v852
    %v854 = vtanh.pop %v847
    %v855 = vmul.f32 %v853, %v679
    %857 = vrot.lane.b32.xlu0 %v854, 32
    %v858 = vpop.permute.xlu0 %857
    %v860 = vmul.f32 %v853, %v858
    %862 = vrot.lane.b32.xlu0 %v860, 32
    %v863 = vpop.permute.xlu0 %862
    %v865 = vadd.f32 %v855, %v863
    %v866 = vtanh.pop %v865
    %868 = vrot.lane.b32.xlu0 %v866, 32
    %v869 = vpop.permute.xlu0 %868
    %v871 = vmul.f32 %v853, %v869
    %v872 = vpack.c.bf16 %v871, %v871
    %v873 = vpack.c.bf16 %v804, %v804
    %875 = vrot.lane.b32.xlu0 %v873, 64
    %v876 = vpop.permute.xlu0 %875
    %v878 = vsel %vm414, %v876, 0
    %880 = vmatprep.subr.bf16.mxu0 0
    %881 = vmatpush1.bf16.msra.mxu0 %v492
    %882 = vmatprep.subr.bf16.mxu0 0
    %883 = vmatpush1.bf16.msra.mxu0 %v493
    %884 = vmatprep.subr.bf16.mxu0 0
    %885 = vmatpush1.bf16.msra.mxu0 0
    %886 = vmatprep.subr.bf16.mxu0 0
    %887 = vmatpush1.bf16.msra.mxu0 0
    %888 = vmatprep.subr.bf16.mxu0 0
    %889 = vmatpush1.bf16.msra.mxu0 0
    %890 = vmatprep.subr.bf16.mxu0 0
    %891 = vmatpush1.bf16.msra.mxu0 0
    %892 = vmatprep.subr.bf16.mxu0 0
    %893 = vmatpush1.bf16.msra.mxu0 0
    %894 = vmatprep.subr.bf16.mxu0 0
    %895 = vmatpush1.bf16.msra.mxu0 0
    %896 = vmatprep.subr.bf16.mxu0 0
    %897 = vmatpush1.bf16.msra.mxu0 0
    %898 = vmatprep.subr.bf16.mxu0 0
    %899 = vmatpush1.bf16.msra.mxu0 0
    %900 = vmatprep.subr.bf16.mxu0 0
    %901 = vmatpush1.bf16.msra.mxu0 0
    %902 = vmatprep.subr.bf16.mxu0 0
    %903 = vmatpush1.bf16.msra.mxu0 0
    %904 = vmatprep.subr.bf16.mxu0 0
    %905 = vmatpush1.bf16.msra.mxu0 0
    %906 = vmatprep.subr.bf16.mxu0 0
    %907 = vmatpush1.bf16.msra.mxu0 0
    %908 = vmatprep.subr.bf16.mxu0 0
    %909 = vmatpush1.bf16.msra.mxu0 0
    %910 = vmatprep.subr.bf16.mxu0 0
    %911 = vmatpush1.bf16.msra.mxu0 0
    %912 = vmatprep.mubr.bf16.mxu0 0
    %913 = vmatmul.mubr.bf16.gmra.mrb[0].mxu0 %v878
    %v914 = vpop.f32.mrb[0].mxu0
    %v915 = vadd.f32 0.0, %v914
    %v916 = vpop.f32.mrb[0].mxu0
    %v917 = vpop.f32.mrb[0].mxu0
    %v918 = vpop.f32.mrb[0].mxu0
    %919 = vdwg.mxu0
    %921 = vrot.lane.b32.xlu0 %v872, 64
    %v922 = vpop.permute.xlu0 %921
    %v924 = vsel %vm414, %v922, 0
    %926 = vmatprep.subr.bf16.mxu0 0
    %927 = vmatpush1.bf16.msra.mxu0 %v547
    %928 = vmatprep.subr.bf16.mxu0 0
    %929 = vmatpush1.bf16.msra.mxu0 %v548
    %930 = vmatprep.subr.bf16.mxu0 0
    %931 = vmatpush1.bf16.msra.mxu0 0
    %932 = vmatprep.subr.bf16.mxu0 0
    %933 = vmatpush1.bf16.msra.mxu0 0
    %934 = vmatprep.subr.bf16.mxu0 0
    %935 = vmatpush1.bf16.msra.mxu0 0
    %936 = vmatprep.subr.bf16.mxu0 0
    %937 = vmatpush1.bf16.msra.mxu0 0
    %938 = vmatprep.subr.bf16.mxu0 0
    %939 = vmatpush1.bf16.msra.mxu0 0
    %940 = vmatprep.subr.bf16.mxu0 0
    %941 = vmatpush1.bf16.msra.mxu0 0
    %942 = vmatprep.subr.bf16.mxu0 0
    %943 = vmatpush1.bf16.msra.mxu0 0
    %944 = vmatprep.subr.bf16.mxu0 0
    %945 = vmatpush1.bf16.msra.mxu0 0
    %946 = vmatprep.subr.bf16.mxu0 0
    %947 = vmatpush1.bf16.msra.mxu0 0
    %948 = vmatprep.subr.bf16.mxu0 0
    %949 = vmatpush1.bf16.msra.mxu0 0
    %950 = vmatprep.subr.bf16.mxu0 0
    %951 = vmatpush1.bf16.msra.mxu0 0
    %952 = vmatprep.subr.bf16.mxu0 0
    %953 = vmatpush1.bf16.msra.mxu0 0
    %954 = vmatprep.subr.bf16.mxu0 0
    %955 = vmatpush1.bf16.msra.mxu0 0
    %956 = vmatprep.subr.bf16.mxu0 0
    %957 = vmatpush1.bf16.msra.mxu0 0
    %958 = vmatprep.mubr.bf16.mxu0 0
    %959 = vmatmul.mubr.bf16.gmra.mrb[0].mxu0 %v924
    %v960 = vpop.f32.mrb[0].mxu0
    %v961 = vadd.f32 %v915, %v960
    %v962 = vpop.f32.mrb[0].mxu0
    %v963 = vpop.f32.mrb[0].mxu0
    %v964 = vpop.f32.mrb[0].mxu0
    %965 = vdwg.mxu0
    %v966 = vadd.f32 %v961, %v262
    %v967 = vxor.u32 %v966, 2147483648
    %v968 = vmul.f32 %v967, 1.442695
    %v969 = vpow.pop %v968
    %v970 = vadd.f32 %v969, 1.0
    %v971 = vrcp.pop %v970
    %v972 = vmul.f32 1.0, %v971
    %v973 = vtanh.pop %v966
    %v974 = vmul.f32 %v972, %v798
    %976 = vrot.lane.b32.xlu0 %v973, 32
    %v977 = vpop.permute.xlu0 %976
    %v979 = vmul.f32 %v972, %v977
    %981 = vrot.lane.b32.xlu0 %v979, 32
    %v982 = vpop.permute.xlu0 %981
    %v984 = vadd.f32 %v974, %v982
    %v985 = vtanh.pop %v984
    %987 = vrot.lane.b32.xlu0 %v985, 32
    %v988 = vpop.permute.xlu0 %987
    %v990 = vmul.f32 %v972, %v988
    %s991 = scalar_lea.vmem [#allocation2], 24
    %v992 = vld [vmem:[%s991] sm:$0xff]
    %993 = vmatprep.subr.bf16.mxu0 0
    %994 = vmatpush1.bf16.msra.mxu0 %v410
    %995 = vmatprep.subr.bf16.mxu0 0
    %996 = vmatpush1.bf16.msra.mxu0 %v411
    %997 = vmatprep.subr.bf16.mxu0 0
    %998 = vmatpush1.bf16.msra.mxu0 0
    %999 = vmatprep.subr.bf16.mxu0 0
    %1000 = vmatpush1.bf16.msra.mxu0 0
    %1001 = vmatprep.subr.bf16.mxu0 0
    %1002 = vmatpush1.bf16.msra.mxu0 0
    %1003 = vmatprep.subr.bf16.mxu0 0
    %1004 = vmatpush1.bf16.msra.mxu0 0
    %1005 = vmatprep.subr.bf16.mxu0 0
    %1006 = vmatpush1.bf16.msra.mxu0 0
    %1007 = vmatprep.subr.bf16.mxu0 0
    %1008 = vmatpush1.bf16.msra.mxu0 0
    %1009 = vmatprep.subr.bf16.mxu0 0
    %1010 = vmatpush1.bf16.msra.mxu0 0
    %1011 = vmatprep.subr.bf16.mxu0 0
    %1012 = vmatpush1.bf16.msra.mxu0 0
    %1013 = vmatprep.subr.bf16.mxu0 0
    %1014 = vmatpush1.bf16.msra.mxu0 0
    %1015 = vmatprep.subr.bf16.mxu0 0
    %1016 = vmatpush1.bf16.msra.mxu0 0
    %1017 = vmatprep.subr.bf16.mxu0 0
    %1018 = vmatpush1.bf16.msra.mxu0 0
    %1019 = vmatprep.subr.bf16.mxu0 0
    %1020 = vmatpush1.bf16.msra.mxu0 0
    %1021 = vmatprep.subr.bf16.mxu0 0
    %1022 = vmatpush1.bf16.msra.mxu0 0
    %1023 = vmatprep.subr.bf16.mxu0 0
    %1024 = vmatpush1.bf16.msra.mxu0 0
    %1025 = vmatprep.mubr.bf16.mxu0 0
    %1026 = vmatmul.mubr.bf16.gmra.mrb[0].mxu0 %v924
    %v1027 = vpop.f32.mrb[0].mxu0
    %v1028 = vadd.f32 0.0, %v1027
    %v1029 = vpop.f32.mrb[0].mxu0
    %v1030 = vpop.f32.mrb[0].mxu0
    %v1031 = vpop.f32.mrb[0].mxu0
    %1032 = vdwg.mxu0
    %v1033 = vadd.f32 %v992, %v1028
    %v1034 = vxor.u32 %v1033, 2147483648
    %v1035 = vmul.f32 %v1034, 1.442695
    %v1036 = vpow.pop %v1035
    %v1037 = vadd.f32 %v1036, 1.0
    %v1038 = vrcp.pop %v1037
    %v1039 = vmul.f32 1.0, %v1038
    %v1040 = vtanh.pop %v1033
    %v1041 = vmul.f32 %v1039, %v865
    %1043 = vrot.lane.b32.xlu0 %v1040, 32
    %v1044 = vpop.permute.xlu0 %1043
    %v1046 = vmul.f32 %v1039, %v1044
    %1048 = vrot.lane.b32.xlu0 %v1046, 32
    %v1049 = vpop.permute.xlu0 %1048
    %v1051 = vadd.f32 %v1041, %v1049
    %v1052 = vtanh.pop %v1051
    %1054 = vrot.lane.b32.xlu0 %v1052, 32
    %v1055 = vpop.permute.xlu0 %1054
    %v1057 = vmul.f32 %v1039, %v1055
    %v1058 = vpack.c.bf16 %v1057, %v1057
    %v1059 = vpack.c.bf16 %v990, %v990
    %1061 = vrot.lane.b32.xlu0 %v1059, 64
    %v1062 = vpop.permute.xlu0 %1061
    %v1064 = vsel %vm414, %v1062, 0
    %1066 = vmatprep.subr.bf16.mxu0 0
    %1067 = vmatpush1.bf16.msra.mxu0 %v492
    %1068 = vmatprep.subr.bf16.mxu0 0
    %1069 = vmatpush1.bf16.msra.mxu0 %v493
    %1070 = vmatprep.subr.bf16.mxu0 0
    %1071 = vmatpush1.bf16.msra.mxu0 0
    %1072 = vmatprep.subr.bf16.mxu0 0
    %1073 = vmatpush1.bf16.msra.mxu0 0
    %1074 = vmatprep.subr.bf16.mxu0 0
    %1075 = vmatpush1.bf16.msra.mxu0 0
    %1076 = vmatprep.subr.bf16.mxu0 0
    %1077 = vmatpush1.bf16.msra.mxu0 0
    %1078 = vmatprep.subr.bf16.mxu0 0
    %1079 = vmatpush1.bf16.msra.mxu0 0
    %1080 = vmatprep.subr.bf16.mxu0 0
    %1081 = vmatpush1.bf16.msra.mxu0 0
    %1082 = vmatprep.subr.bf16.mxu0 0
    %1083 = vmatpush1.bf16.msra.mxu0 0
    %1084 = vmatprep.subr.bf16.mxu0 0
    %1085 = vmatpush1.bf16.msra.mxu0 0
    %1086 = vmatprep.subr.bf16.mxu0 0
    %1087 = vmatpush1.bf16.msra.mxu0 0
    %1088 = vmatprep.subr.bf16.mxu0 0
    %1089 = vmatpush1.bf16.msra.mxu0 0
    %1090 = vmatprep.subr.bf16.mxu0 0
    %1091 = vmatpush1.bf16.msra.mxu0 0
    %1092 = vmatprep.subr.bf16.mxu0 0
    %1093 = vmatpush1.bf16.msra.mxu0 0
    %1094 = vmatprep.subr.bf16.mxu0 0
    %1095 = vmatpush1.bf16.msra.mxu0 0
    %1096 = vmatprep.subr.bf16.mxu0 0
    %1097 = vmatpush1.bf16.msra.mxu0 0
    %1098 = vmatprep.mubr.bf16.mxu0 0
    %1099 = vmatmul.mubr.bf16.gmra.mrb[0].mxu0 %v1064
    %v1100 = vpop.f32.mrb[0].mxu0
    %v1101 = vadd.f32 0.0, %v1100
    %v1102 = vpop.f32.mrb[0].mxu0
    %v1103 = vpop.f32.mrb[0].mxu0
    %v1104 = vpop.f32.mrb[0].mxu0
    %1105 = vdwg.mxu0
    %1107 = vrot.lane.b32.xlu0 %v1058, 64
    %v1108 = vpop.permute.xlu0 %1107
    %v1110 = vsel %vm414, %v1108, 0
    %1112 = vmatprep.subr.bf16.mxu0 0
    %1113 = vmatpush1.bf16.msra.mxu0 %v547
    %1114 = vmatprep.subr.bf16.mxu0 0
    %1115 = vmatpush1.bf16.msra.mxu0 %v548
    %1116 = vmatprep.subr.bf16.mxu0 0
    %1117 = vmatpush1.bf16.msra.mxu0 0
    %1118 = vmatprep.subr.bf16.mxu0 0
    %1119 = vmatpush1.bf16.msra.mxu0 0
    %1120 = vmatprep.subr.bf16.mxu0 0
    %1121 = vmatpush1.bf16.msra.mxu0 0
    %1122 = vmatprep.subr.bf16.mxu0 0
    %1123 = vmatpush1.bf16.msra.mxu0 0
    %1124 = vmatprep.subr.bf16.mxu0 0
    %1125 = vmatpush1.bf16.msra.mxu0 0
    %1126 = vmatprep.subr.bf16.mxu0 0
    %1127 = vmatpush1.bf16.msra.mxu0 0
    %1128 = vmatprep.subr.bf16.mxu0 0
    %1129 = vmatpush1.bf16.msra.mxu0 0
    %1130 = vmatprep.subr.bf16.mxu0 0
    %1131 = vmatpush1.bf16.msra.mxu0 0
    %1132 = vmatprep.subr.bf16.mxu0 0
    %1133 = vmatpush1.bf16.msra.mxu0 0
    %1134 = vmatprep.subr.bf16.mxu0 0
    %1135 = vmatpush1.bf16.msra.mxu0 0
    %1136 = vmatprep.subr.bf16.mxu0 0
    %1137 = vmatpush1.bf16.msra.mxu0 0
    %1138 = vmatprep.subr.bf16.mxu0 0
    %1139 = vmatpush1.bf16.msra.mxu0 0
    %1140 = vmatprep.subr.bf16.mxu0 0
    %1141 = vmatpush1.bf16.msra.mxu0 0
    %1142 = vmatprep.subr.bf16.mxu0 0
    %1143 = vmatpush1.bf16.msra.mxu0 0
    %1144 = vmatprep.mubr.bf16.mxu0 0
    %1145 = vmatmul.mubr.bf16.gmra.mrb[0].mxu0 %v1110
    %v1146 = vpop.f32.mrb[0].mxu0
    %v1147 = vadd.f32 %v1101, %v1146
    %v1148 = vpop.f32.mrb[0].mxu0
    %v1149 = vpop.f32.mrb[0].mxu0
    %v1150 = vpop.f32.mrb[0].mxu0
    %1151 = vdwg.mxu0
    %v1152 = vadd.f32 %v1147, %v262
    %v1153 = vxor.u32 %v1152, 2147483648
    %v1154 = vmul.f32 %v1153, 1.442695
    %v1155 = vpow.pop %v1154
    %v1156 = vadd.f32 %v1155, 1.0
    %v1157 = vrcp.pop %v1156
    %v1158 = vmul.f32 1.0, %v1157
    %v1159 = vtanh.pop %v1152
    %v1160 = vmul.f32 %v1158, %v984
    %1162 = vrot.lane.b32.xlu0 %v1159, 32
    %v1163 = vpop.permute.xlu0 %1162
    %v1165 = vmul.f32 %v1158, %v1163
    %1167 = vrot.lane.b32.xlu0 %v1165, 32
    %v1168 = vpop.permute.xlu0 %1167
    %v1170 = vadd.f32 %v1160, %v1168
    %v1171 = vtanh.pop %v1170
    %1173 = vrot.lane.b32.xlu0 %v1171, 32
    %v1174 = vpop.permute.xlu0 %1173
    %v1176 = vmul.f32 %v1158, %v1174
    %s1177 = scalar_lea.vmem [#allocation2], 32
    %v1178 = vld [vmem:[%s1177] sm:$0xff]
    %1179 = vmatprep.subr.bf16.mxu0 0
    %1180 = vmatpush1.bf16.msra.mxu0 %v410
    %1181 = vmatprep.subr.bf16.mxu0 0
    %1182 = vmatpush1.bf16.msra.mxu0 %v411
    %1183 = vmatprep.subr.bf16.mxu0 0
    %1184 = vmatpush1.bf16.msra.mxu0 0
    %1185 = vmatprep.subr.bf16.mxu0 0
    %1186 = vmatpush1.bf16.msra.mxu0 0
    %1187 = vmatprep.subr.bf16.mxu0 0
    %1188 = vmatpush1.bf16.msra.mxu0 0
    %1189 = vmatprep.subr.bf16.mxu0 0
    %1190 = vmatpush1.bf16.msra.mxu0 0
    %1191 = vmatprep.subr.bf16.mxu0 0
    %1192 = vmatpush1.bf16.msra.mxu0 0
    %1193 = vmatprep.subr.bf16.mxu0 0
    %1194 = vmatpush1.bf16.msra.mxu0 0
    %1195 = vmatprep.subr.bf16.mxu0 0
    %1196 = vmatpush1.bf16.msra.mxu0 0
    %1197 = vmatprep.subr.bf16.mxu0 0
    %1198 = vmatpush1.bf16.msra.mxu0 0
    %1199 = vmatprep.subr.bf16.mxu0 0
    %1200 = vmatpush1.bf16.msra.mxu0 0
    %1201 = vmatprep.subr.bf16.mxu0 0
    %1202 = vmatpush1.bf16.msra.mxu0 0
    %1203 = vmatprep.subr.bf16.mxu0 0
    %1204 = vmatpush1.bf16.msra.mxu0 0
    %1205 = vmatprep.subr.bf16.mxu0 0
    %1206 = vmatpush1.bf16.msra.mxu0 0
    %1207 = vmatprep.subr.bf16.mxu0 0
    %1208 = vmatpush1.bf16.msra.mxu0 0
    %1209 = vmatprep.subr.bf16.mxu0 0
    %1210 = vmatpush1.bf16.msra.mxu0 0
    %1211 = vmatprep.mubr.bf16.mxu0 0
    %1212 = vmatmul.mubr.bf16.gmra.mrb[0].mxu0 %v1110
    %v1213 = vpop.f32.mrb[0].mxu0
    %v1214 = vadd.f32 0.0, %v1213
    %v1215 = vpop.f32.mrb[0].mxu0
    %v1216 = vpop.f32.mrb[0].mxu0
    %v1217 = vpop.f32.mrb[0].mxu0
    %1218 = vdwg.mxu0
    %v1219 = vadd.f32 %v1178, %v1214
    %v1220 = vxor.u32 %v1219, 2147483648
    %v1221 = vmul.f32 %v1220, 1.442695
    %v1222 = vpow.pop %v1221
    %v1223 = vadd.f32 %v1222, 1.0
    %v1224 = vrcp.pop %v1223
    %v1225 = vmul.f32 1.0, %v1224
    %v1226 = vtanh.pop %v1219
    %v1227 = vmul.f32 %v1225, %v1051
    %1229 = vrot.lane.b32.xlu0 %v1226, 32
    %v1230 = vpop.permute.xlu0 %1229
    %v1232 = vmul.f32 %v1225, %v1230
    %1234 = vrot.lane.b32.xlu0 %v1232, 32
    %v1235 = vpop.permute.xlu0 %1234
    %v1237 = vadd.f32 %v1227, %v1235
    %v1238 = vtanh.pop %v1237
    %1240 = vrot.lane.b32.xlu0 %v1238, 32
    %v1241 = vpop.permute.xlu0 %1240
    %v1243 = vmul.f32 %v1225, %v1241
    %v1244 = vpack.c.bf16 %v1243, %v1243
    %v1245 = vpack.c.bf16 %v1176, %v1176
    %1247 = vrot.lane.b32.xlu0 %v1245, 64
    %v1248 = vpop.permute.xlu0 %1247
    %v1250 = vsel %vm414, %v1248, 0
    %1252 = vmatprep.subr.bf16.mxu0 0
    %1253 = vmatpush1.bf16.msra.mxu0 %v492
    %1254 = vmatprep.subr.bf16.mxu0 0
    %1255 = vmatpush1.bf16.msra.mxu0 %v493
    %1256 = vmatprep.subr.bf16.mxu0 0
    %1257 = vmatpush1.bf16.msra.mxu0 0
    %1258 = vmatprep.subr.bf16.mxu0 0
    %1259 = vmatpush1.bf16.msra.mxu0 0
    %1260 = vmatprep.subr.bf16.mxu0 0
    %1261 = vmatpush1.bf16.msra.mxu0 0
    %1262 = vmatprep.subr.bf16.mxu0 0
    %1263 = vmatpush1.bf16.msra.mxu0 0
    %1264 = vmatprep.subr.bf16.mxu0 0
    %1265 = vmatpush1.bf16.msra.mxu0 0
    %1266 = vmatprep.subr.bf16.mxu0 0
    %1267 = vmatpush1.bf16.msra.mxu0 0
    %1268 = vmatprep.subr.bf16.mxu0 0
    %1269 = vmatpush1.bf16.msra.mxu0 0
    %1270 = vmatprep.subr.bf16.mxu0 0
    %1271 = vmatpush1.bf16.msra.mxu0 0
    %1272 = vmatprep.subr.bf16.mxu0 0
    %1273 = vmatpush1.bf16.msra.mxu0 0
    %1274 = vmatprep.subr.bf16.mxu0 0
    %1275 = vmatpush1.bf16.msra.mxu0 0
    %1276 = vmatprep.subr.bf16.mxu0 0
    %1277 = vmatpush1.bf16.msra.mxu0 0
    %1278 = vmatprep.subr.bf16.mxu0 0
    %1279 = vmatpush1.bf16.msra.mxu0 0
    %1280 = vmatprep.subr.bf16.mxu0 0
    %1281 = vmatpush1.bf16.msra.mxu0 0
    %1282 = vmatprep.subr.bf16.mxu0 0
    %1283 = vmatpush1.bf16.msra.mxu0 0
    %1284 = vmatprep.mubr.bf16.mxu0 0
    %1285 = vmatmul.mubr.bf16.gmra.mrb[0].mxu0 %v1250
    %v1286 = vpop.f32.mrb[0].mxu0
    %v1287 = vadd.f32 0.0, %v1286
    %v1288 = vpop.f32.mrb[0].mxu0
    %v1289 = vpop.f32.mrb[0].mxu0
    %v1290 = vpop.f32.mrb[0].mxu0
    %1291 = vdwg.mxu0
    %1293 = vrot.lane.b32.xlu0 %v1244, 64
    %v1294 = vpop.permute.xlu0 %1293
    %v1296 = vsel %vm414, %v1294, 0
    %1298 = vmatprep.subr.bf16.mxu0 0
    %1299 = vmatpush1.bf16.msra.mxu0 %v547
    %1300 = vmatprep.subr.bf16.mxu0 0
    %1301 = vmatpush1.bf16.msra.mxu0 %v548
    %1302 = vmatprep.subr.bf16.mxu0 0
    %1303 = vmatpush1.bf16.msra.mxu0 0
    %1304 = vmatprep.subr.bf16.mxu0 0
    %1305 = vmatpush1.bf16.msra.mxu0 0
    %1306 = vmatprep.subr.bf16.mxu0 0
    %1307 = vmatpush1.bf16.msra.mxu0 0
    %1308 = vmatprep.subr.bf16.mxu0 0
    %1309 = vmatpush1.bf16.msra.mxu0 0
    %1310 = vmatprep.subr.bf16.mxu0 0
    %1311 = vmatpush1.bf16.msra.mxu0 0
    %1312 = vmatprep.subr.bf16.mxu0 0
    %1313 = vmatpush1.bf16.msra.mxu0 0
    %1314 = vmatprep.subr.bf16.mxu0 0
    %1315 = vmatpush1.bf16.msra.mxu0 0
    %1316 = vmatprep.subr.bf16.mxu0 0
    %1317 = vmatpush1.bf16.msra.mxu0 0
    %1318 = vmatprep.subr.bf16.mxu0 0
    %1319 = vmatpush1.bf16.msra.mxu0 0
    %1320 = vmatprep.subr.bf16.mxu0 0
    %1321 = vmatpush1.bf16.msra.mxu0 0
    %1322 = vmatprep.subr.bf16.mxu0 0
    %1323 = vmatpush1.bf16.msra.mxu0 0
    %1324 = vmatprep.subr.bf16.mxu0 0
    %1325 = vmatpush1.bf16.msra.mxu0 0
    %1326 = vmatprep.subr.bf16.mxu0 0
    %1327 = vmatpush1.bf16.msra.mxu0 0
    %1328 = vmatprep.subr.bf16.mxu0 0
    %1329 = vmatpush1.bf16.msra.mxu0 0
    %1330 = vmatprep.mubr.bf16.mxu0 0
    %1331 = vmatmul.mubr.bf16.gmra.mrb[0].mxu0 %v1296
    %v1332 = vpop.f32.mrb[0].mxu0
    %v1333 = vadd.f32 %v1287, %v1332
    %v1334 = vpop.f32.mrb[0].mxu0
    %v1335 = vpop.f32.mrb[0].mxu0
    %v1336 = vpop.f32.mrb[0].mxu0
    %1337 = vdwg.mxu0
    %v1338 = vadd.f32 %v1333, %v262
    %v1339 = vxor.u32 %v1338, 2147483648
    %v1340 = vmul.f32 %v1339, 1.442695
    %v1341 = vpow.pop %v1340
    %v1342 = vadd.f32 %v1341, 1.0
    %v1343 = vrcp.pop %v1342
    %v1344 = vmul.f32 1.0, %v1343
    %v1345 = vtanh.pop %v1338
    %v1346 = vmul.f32 %v1344, %v1170
    %1348 = vrot.lane.b32.xlu0 %v1345, 32
    %v1349 = vpop.permute.xlu0 %1348
    %v1351 = vmul.f32 %v1344, %v1349
    %1353 = vrot.lane.b32.xlu0 %v1351, 32
    %v1354 = vpop.permute.xlu0 %1353
    %v1356 = vadd.f32 %v1346, %v1354
    %v1357 = vtanh.pop %v1356
    %1359 = vrot.lane.b32.xlu0 %v1357, 32
    %v1360 = vpop.permute.xlu0 %1359
    %v1362 = vmul.f32 %v1344, %v1360
    %s1363 = scalar_lea.vmem [#allocation2], 40
    %v1364 = vld [vmem:[%s1363] sm:$0xff]
    %1365 = vmatprep.subr.bf16.mxu0 0
    %1366 = vmatpush1.bf16.msra.mxu0 %v410
    %1367 = vmatprep.subr.bf16.mxu0 0
    %1368 = vmatpush1.bf16.msra.mxu0 %v411
    %1369 = vmatprep.subr.bf16.mxu0 0
    %1370 = vmatpush1.bf16.msra.mxu0 0
    %1371 = vmatprep.subr.bf16.mxu0 0
    %1372 = vmatpush1.bf16.msra.mxu0 0
    %1373 = vmatprep.subr.bf16.mxu0 0
    %1374 = vmatpush1.bf16.msra.mxu0 0
    %1375 = vmatprep.subr.bf16.mxu0 0
    %1376 = vmatpush1.bf16.msra.mxu0 0
    %1377 = vmatprep.subr.bf16.mxu0 0
    %1378 = vmatpush1.bf16.msra.mxu0 0
    %1379 = vmatprep.subr.bf16.mxu0 0
    %1380 = vmatpush1.bf16.msra.mxu0 0
    %1381 = vmatprep.subr.bf16.mxu0 0
    %1382 = vmatpush1.bf16.msra.mxu0 0
    %1383 = vmatprep.subr.bf16.mxu0 0
    %1384 = vmatpush1.bf16.msra.mxu0 0
    %1385 = vmatprep.subr.bf16.mxu0 0
    %1386 = vmatpush1.bf16.msra.mxu0 0
    %1387 = vmatprep.subr.bf16.mxu0 0
    %1388 = vmatpush1.bf16.msra.mxu0 0
    %1389 = vmatprep.subr.bf16.mxu0 0
    %1390 = vmatpush1.bf16.msra.mxu0 0
    %1391 = vmatprep.subr.bf16.mxu0 0
    %1392 = vmatpush1.bf16.msra.mxu0 0
    %1393 = vmatprep.subr.bf16.mxu0 0
    %1394 = vmatpush1.bf16.msra.mxu0 0
    %1395 = vmatprep.subr.bf16.mxu0 0
    %1396 = vmatpush1.bf16.msra.mxu0 0
    %1397 = vmatprep.mubr.bf16.mxu0 0
    %1398 = vmatmul.mubr.bf16.gmra.mrb[0].mxu0 %v1296
    %v1399 = vpop.f32.mrb[0].mxu0
    %v1400 = vadd.f32 0.0, %v1399
    %v1401 = vpop.f32.mrb[0].mxu0
    %v1402 = vpop.f32.mrb[0].mxu0
    %v1403 = vpop.f32.mrb[0].mxu0
    %1404 = vdwg.mxu0
    %v1405 = vadd.f32 %v1364, %v1400
    %v1406 = vxor.u32 %v1405, 2147483648
    %v1407 = vmul.f32 %v1406, 1.442695
    %v1408 = vpow.pop %v1407
    %v1409 = vadd.f32 %v1408, 1.0
    %v1410 = vrcp.pop %v1409
    %v1411 = vmul.f32 1.0, %v1410
    %v1412 = vtanh.pop %v1405
    %v1413 = vmul.f32 %v1411, %v1237
    %1415 = vrot.lane.b32.xlu0 %v1412, 32
    %v1416 = vpop.permute.xlu0 %1415
    %v1418 = vmul.f32 %v1411, %v1416
    %1420 = vrot.lane.b32.xlu0 %v1418, 32
    %v1421 = vpop.permute.xlu0 %1420
    %v1423 = vadd.f32 %v1413, %v1421
    %v1424 = vtanh.pop %v1423
    %1426 = vrot.lane.b32.xlu0 %v1424, 32
    %v1427 = vpop.permute.xlu0 %1426
    %v1429 = vmul.f32 %v1411, %v1427
    %v1430 = vpack.c.bf16 %v1429, %v1429
    %v1431 = vpack.c.bf16 %v1362, %v1362
    %1433 = vrot.lane.b32.xlu0 %v1431, 64
    %v1434 = vpop.permute.xlu0 %1433
    %v1436 = vsel %vm414, %v1434, 0
    %1438 = vmatprep.subr.bf16.mxu0 0
    %1439 = vmatpush1.bf16.msra.mxu0 %v492
    %1440 = vmatprep.subr.bf16.mxu0 0
    %1441 = vmatpush1.bf16.msra.mxu0 %v493
    %1442 = vmatprep.subr.bf16.mxu0 0
    %1443 = vmatpush1.bf16.msra.mxu0 0
    %1444 = vmatprep.subr.bf16.mxu0 0
    %1445 = vmatpush1.bf16.msra.mxu0 0
    %1446 = vmatprep.subr.bf16.mxu0 0
    %1447 = vmatpush1.bf16.msra.mxu0 0
    %1448 = vmatprep.subr.bf16.mxu0 0
    %1449 = vmatpush1.bf16.msra.mxu0 0
    %1450 = vmatprep.subr.bf16.mxu0 0
    %1451 = vmatpush1.bf16.msra.mxu0 0
    %1452 = vmatprep.subr.bf16.mxu0 0
    %1453 = vmatpush1.bf16.msra.mxu0 0
    %1454 = vmatprep.subr.bf16.mxu0 0
    %1455 = vmatpush1.bf16.msra.mxu0 0
    %1456 = vmatprep.subr.bf16.mxu0 0
    %1457 = vmatpush1.bf16.msra.mxu0 0
    %1458 = vmatprep.subr.bf16.mxu0 0
    %1459 = vmatpush1.bf16.msra.mxu0 0
    %1460 = vmatprep.subr.bf16.mxu0 0
    %1461 = vmatpush1.bf16.msra.mxu0 0
    %1462 = vmatprep.subr.bf16.mxu0 0
    %1463 = vmatpush1.bf16.msra.mxu0 0
    %1464 = vmatprep.subr.bf16.mxu0 0
    %1465 = vmatpush1.bf16.msra.mxu0 0
    %1466 = vmatprep.subr.bf16.mxu0 0
    %1467 = vmatpush1.bf16.msra.mxu0 0
    %1468 = vmatprep.subr.bf16.mxu0 0
    %1469 = vmatpush1.bf16.msra.mxu0 0
    %1470 = vmatprep.mubr.bf16.mxu0 0
    %1471 = vmatmul.mubr.bf16.gmra.mrb[0].mxu0 %v1436
    %v1472 = vpop.f32.mrb[0].mxu0
    %v1473 = vadd.f32 0.0, %v1472
    %v1474 = vpop.f32.mrb[0].mxu0
    %v1475 = vpop.f32.mrb[0].mxu0
    %v1476 = vpop.f32.mrb[0].mxu0
    %1477 = vdwg.mxu0
    %1479 = vrot.lane.b32.xlu0 %v1430, 64
    %v1480 = vpop.permute.xlu0 %1479
    %v1482 = vsel %vm414, %v1480, 0
    %1484 = vmatprep.subr.bf16.mxu0 0
    %1485 = vmatpush1.bf16.msra.mxu0 %v547
    %1486 = vmatprep.subr.bf16.mxu0 0
    %1487 = vmatpush1.bf16.msra.mxu0 %v548
    %1488 = vmatprep.subr.bf16.mxu0 0
    %1489 = vmatpush1.bf16.msra.mxu0 0
    %1490 = vmatprep.subr.bf16.mxu0 0
    %1491 = vmatpush1.bf16.msra.mxu0 0
    %1492 = vmatprep.subr.bf16.mxu0 0
    %1493 = vmatpush1.bf16.msra.mxu0 0
    %1494 = vmatprep.subr.bf16.mxu0 0
    %1495 = vmatpush1.bf16.msra.mxu0 0
    %1496 = vmatprep.subr.bf16.mxu0 0
    %1497 = vmatpush1.bf16.msra.mxu0 0
    %1498 = vmatprep.subr.bf16.mxu0 0
    %1499 = vmatpush1.bf16.msra.mxu0 0
    %1500 = vmatprep.subr.bf16.mxu0 0
    %1501 = vmatpush1.bf16.msra.mxu0 0
    %1502 = vmatprep.subr.bf16.mxu0 0
    %1503 = vmatpush1.bf16.msra.mxu0 0
    %1504 = vmatprep.subr.bf16.mxu0 0
    %1505 = vmatpush1.bf16.msra.mxu0 0
    %1506 = vmatprep.subr.bf16.mxu0 0
    %1507 = vmatpush1.bf16.msra.mxu0 0
    %1508 = vmatprep.subr.bf16.mxu0 0
    %1509 = vmatpush1.bf16.msra.mxu0 0
    %1510 = vmatprep.subr.bf16.mxu0 0
    %1511 = vmatpush1.bf16.msra.mxu0 0
    %1512 = vmatprep.subr.bf16.mxu0 0
    %1513 = vmatpush1.bf16.msra.mxu0 0
    %1514 = vmatprep.subr.bf16.mxu0 0
    %1515 = vmatpush1.bf16.msra.mxu0 0
    %1516 = vmatprep.mubr.bf16.mxu0 0
    %1517 = vmatmul.mubr.bf16.gmra.mrb[0].mxu0 %v1482
    %v1518 = vpop.f32.mrb[0].mxu0
    %v1519 = vadd.f32 %v1473, %v1518
    %v1520 = vpop.f32.mrb[0].mxu0
    %v1521 = vpop.f32.mrb[0].mxu0
    %v1522 = vpop.f32.mrb[0].mxu0
    %1523 = vdwg.mxu0
    %v1524 = vadd.f32 %v1519, %v262
    %v1525 = vxor.u32 %v1524, 2147483648
    %v1526 = vmul.f32 %v1525, 1.442695
    %v1527 = vpow.pop %v1526
    %v1528 = vadd.f32 %v1527, 1.0
    %v1529 = vrcp.pop %v1528
    %v1530 = vmul.f32 1.0, %v1529
    %v1531 = vtanh.pop %v1524
    %v1532 = vmul.f32 %v1530, %v1356
    %1534 = vrot.lane.b32.xlu0 %v1531, 32
    %v1535 = vpop.permute.xlu0 %1534
    %v1537 = vmul.f32 %v1530, %v1535
    %1539 = vrot.lane.b32.xlu0 %v1537, 32
    %v1540 = vpop.permute.xlu0 %1539
    %v1542 = vadd.f32 %v1532, %v1540
    %v1543 = vtanh.pop %v1542
    %1545 = vrot.lane.b32.xlu0 %v1543, 32
    %v1546 = vpop.permute.xlu0 %1545
    %v1548 = vmul.f32 %v1530, %v1546
    %s1549 = scalar_lea.vmem [#allocation2], 48
    %v1550 = vld [vmem:[%s1549] sm:$0xff]
    %1551 = vmatprep.subr.bf16.mxu0 0
    %1552 = vmatpush1.bf16.msra.mxu0 %v410
    %1553 = vmatprep.subr.bf16.mxu0 0
    %1554 = vmatpush1.bf16.msra.mxu0 %v411
    %1555 = vmatprep.subr.bf16.mxu0 0
    %1556 = vmatpush1.bf16.msra.mxu0 0
    %1557 = vmatprep.subr.bf16.mxu0 0
    %1558 = vmatpush1.bf16.msra.mxu0 0
    %1559 = vmatprep.subr.bf16.mxu0 0
    %1560 = vmatpush1.bf16.msra.mxu0 0
    %1561 = vmatprep.subr.bf16.mxu0 0
    %1562 = vmatpush1.bf16.msra.mxu0 0
    %1563 = vmatprep.subr.bf16.mxu0 0
    %1564 = vmatpush1.bf16.msra.mxu0 0
    %1565 = vmatprep.subr.bf16.mxu0 0
    %1566 = vmatpush1.bf16.msra.mxu0 0
    %1567 = vmatprep.subr.bf16.mxu0 0
    %1568 = vmatpush1.bf16.msra.mxu0 0
    %1569 = vmatprep.subr.bf16.mxu0 0
    %1570 = vmatpush1.bf16.msra.mxu0 0
    %1571 = vmatprep.subr.bf16.mxu0 0
    %1572 = vmatpush1.bf16.msra.mxu0 0
    %1573 = vmatprep.subr.bf16.mxu0 0
    %1574 = vmatpush1.bf16.msra.mxu0 0
    %1575 = vmatprep.subr.bf16.mxu0 0
    %1576 = vmatpush1.bf16.msra.mxu0 0
    %1577 = vmatprep.subr.bf16.mxu0 0
    %1578 = vmatpush1.bf16.msra.mxu0 0
    %1579 = vmatprep.subr.bf16.mxu0 0
    %1580 = vmatpush1.bf16.msra.mxu0 0
    %1581 = vmatprep.subr.bf16.mxu0 0
    %1582 = vmatpush1.bf16.msra.mxu0 0
    %1583 = vmatprep.mubr.bf16.mxu0 0
    %1584 = vmatmul.mubr.bf16.gmra.mrb[0].mxu0 %v1482
    %v1585 = vpop.f32.mrb[0].mxu0
    %v1586 = vadd.f32 0.0, %v1585
    %v1587 = vpop.f32.mrb[0].mxu0
    %v1588 = vpop.f32.mrb[0].mxu0
    %v1589 = vpop.f32.mrb[0].mxu0
    %1590 = vdwg.mxu0
    %v1591 = vadd.f32 %v1550, %v1586
    %v1592 = vxor.u32 %v1591, 2147483648
    %v1593 = vmul.f32 %v1592, 1.442695
    %v1594 = vpow.pop %v1593
    %v1595 = vadd.f32 %v1594, 1.0
    %v1596 = vrcp.pop %v1595
    %v1597 = vmul.f32 1.0, %v1596
    %v1598 = vtanh.pop %v1591
    %v1599 = vmul.f32 %v1597, %v1423
    %1601 = vrot.lane.b32.xlu0 %v1598, 32
    %v1602 = vpop.permute.xlu0 %1601
    %v1604 = vmul.f32 %v1597, %v1602
    %1606 = vrot.lane.b32.xlu0 %v1604, 32
    %v1607 = vpop.permute.xlu0 %1606
    %v1609 = vadd.f32 %v1599, %v1607
    %v1610 = vtanh.pop %v1609
    %1612 = vrot.lane.b32.xlu0 %v1610, 32
    %v1613 = vpop.permute.xlu0 %1612
    %v1615 = vmul.f32 %v1597, %v1613
    %v1616 = vpack.c.bf16 %v1615, %v1615
    %v1617 = vpack.c.bf16 %v1548, %v1548
    %1619 = vrot.lane.b32.xlu0 %v1617, 64
    %v1620 = vpop.permute.xlu0 %1619
    %v1622 = vsel %vm414, %v1620, 0
    %1624 = vmatprep.subr.bf16.mxu0 0
    %1625 = vmatpush1.bf16.msra.mxu0 %v492
    %1626 = vmatprep.subr.bf16.mxu0 0
    %1627 = vmatpush1.bf16.msra.mxu0 %v493
    %1628 = vmatprep.subr.bf16.mxu0 0
    %1629 = vmatpush1.bf16.msra.mxu0 0
    %1630 = vmatprep.subr.bf16.mxu0 0
    %1631 = vmatpush1.bf16.msra.mxu0 0
    %1632 = vmatprep.subr.bf16.mxu0 0
    %1633 = vmatpush1.bf16.msra.mxu0 0
    %1634 = vmatprep.subr.bf16.mxu0 0
    %1635 = vmatpush1.bf16.msra.mxu0 0
    %1636 = vmatprep.subr.bf16.mxu0 0
    %1637 = vmatpush1.bf16.msra.mxu0 0
    %1638 = vmatprep.subr.bf16.mxu0 0
    %1639 = vmatpush1.bf16.msra.mxu0 0
    %1640 = vmatprep.subr.bf16.mxu0 0
    %1641 = vmatpush1.bf16.msra.mxu0 0
    %1642 = vmatprep.subr.bf16.mxu0 0
    %1643 = vmatpush1.bf16.msra.mxu0 0
    %1644 = vmatprep.subr.bf16.mxu0 0
    %1645 = vmatpush1.bf16.msra.mxu0 0
    %1646 = vmatprep.subr.bf16.mxu0 0
    %1647 = vmatpush1.bf16.msra.mxu0 0
    %1648 = vmatprep.subr.bf16.mxu0 0
    %1649 = vmatpush1.bf16.msra.mxu0 0
    %1650 = vmatprep.subr.bf16.mxu0 0
    %1651 = vmatpush1.bf16.msra.mxu0 0
    %1652 = vmatprep.subr.bf16.mxu0 0
    %1653 = vmatpush1.bf16.msra.mxu0 0
    %1654 = vmatprep.subr.bf16.mxu0 0
    %1655 = vmatpush1.bf16.msra.mxu0 0
    %1656 = vmatprep.mubr.bf16.mxu0 0
    %1657 = vmatmul.mubr.bf16.gmra.mrb[0].mxu0 %v1622
    %v1658 = vpop.f32.mrb[0].mxu0
    %v1659 = vadd.f32 0.0, %v1658
    %v1660 = vpop.f32.mrb[0].mxu0
    %v1661 = vpop.f32.mrb[0].mxu0
    %v1662 = vpop.f32.mrb[0].mxu0
    %1663 = vdwg.mxu0
    %1665 = vrot.lane.b32.xlu0 %v1616, 64
    %v1666 = vpop.permute.xlu0 %1665
    %v1668 = vsel %vm414, %v1666, 0
    %1670 = vmatprep.subr.bf16.mxu0 0
    %1671 = vmatpush1.bf16.msra.mxu0 %v547
    %1672 = vmatprep.subr.bf16.mxu0 0
    %1673 = vmatpush1.bf16.msra.mxu0 %v548
    %1674 = vmatprep.subr.bf16.mxu0 0
    %1675 = vmatpush1.bf16.msra.mxu0 0
    %1676 = vmatprep.subr.bf16.mxu0 0
    %1677 = vmatpush1.bf16.msra.mxu0 0
    %1678 = vmatprep.subr.bf16.mxu0 0
    %1679 = vmatpush1.bf16.msra.mxu0 0
    %1680 = vmatprep.subr.bf16.mxu0 0
    %1681 = vmatpush1.bf16.msra.mxu0 0
    %1682 = vmatprep.subr.bf16.mxu0 0
    %1683 = vmatpush1.bf16.msra.mxu0 0
    %1684 = vmatprep.subr.bf16.mxu0 0
    %1685 = vmatpush1.bf16.msra.mxu0 0
    %1686 = vmatprep.subr.bf16.mxu0 0
    %1687 = vmatpush1.bf16.msra.mxu0 0
    %1688 = vmatprep.subr.bf16.mxu0 0
    %1689 = vmatpush1.bf16.msra.mxu0 0
    %1690 = vmatprep.subr.bf16.mxu0 0
    %1691 = vmatpush1.bf16.msra.mxu0 0
    %1692 = vmatprep.subr.bf16.mxu0 0
    %1693 = vmatpush1.bf16.msra.mxu0 0
    %1694 = vmatprep.subr.bf16.mxu0 0
    %1695 = vmatpush1.bf16.msra.mxu0 0
    %1696 = vmatprep.subr.bf16.mxu0 0
    %1697 = vmatpush1.bf16.msra.mxu0 0
    %1698 = vmatprep.subr.bf16.mxu0 0
    %1699 = vmatpush1.bf16.msra.mxu0 0
    %1700 = vmatprep.subr.bf16.mxu0 0
    %1701 = vmatpush1.bf16.msra.mxu0 0
    %1702 = vmatprep.mubr.bf16.mxu0 0
    %1703 = vmatmul.mubr.bf16.gmra.mrb[0].mxu0 %v1668
    %v1704 = vpop.f32.mrb[0].mxu0
    %v1705 = vadd.f32 %v1659, %v1704
    %v1706 = vpop.f32.mrb[0].mxu0
    %v1707 = vpop.f32.mrb[0].mxu0
    %v1708 = vpop.f32.mrb[0].mxu0
    %1709 = vdwg.mxu0
    %v1710 = vadd.f32 %v1705, %v262
    %v1711 = vxor.u32 %v1710, 2147483648
    %v1712 = vmul.f32 %v1711, 1.442695
    %v1713 = vpow.pop %v1712
    %v1714 = vadd.f32 %v1713, 1.0
    %v1715 = vrcp.pop %v1714
    %v1716 = vmul.f32 1.0, %v1715
    %v1717 = vtanh.pop %v1710
    %v1718 = vmul.f32 %v1716, %v1542
    %1720 = vrot.lane.b32.xlu0 %v1717, 32
    %v1721 = vpop.permute.xlu0 %1720
    %v1723 = vmul.f32 %v1716, %v1721
    %1725 = vrot.lane.b32.xlu0 %v1723, 32
    %v1726 = vpop.permute.xlu0 %1725
    %v1728 = vadd.f32 %v1718, %v1726
    %v1729 = vtanh.pop %v1728
    %1731 = vrot.lane.b32.xlu0 %v1729, 32
    %v1732 = vpop.permute.xlu0 %1731
    %v1734 = vmul.f32 %v1716, %v1732
    %s1735 = scalar_lea.vmem [#allocation2], 56
    %v1736 = vld [vmem:[%s1735] sm:$0xff]
    %1737 = vmatprep.subr.bf16.mxu0 0
    %1738 = vmatpush1.bf16.msra.mxu0 %v410
    %1739 = vmatprep.subr.bf16.mxu0 0
    %1740 = vmatpush1.bf16.msra.mxu0 %v411
    %1741 = vmatprep.subr.bf16.mxu0 0
    %1742 = vmatpush1.bf16.msra.mxu0 0
    %1743 = vmatprep.subr.bf16.mxu0 0
    %1744 = vmatpush1.bf16.msra.mxu0 0
    %1745 = vmatprep.subr.bf16.mxu0 0
    %1746 = vmatpush1.bf16.msra.mxu0 0
    %1747 = vmatprep.subr.bf16.mxu0 0
    %1748 = vmatpush1.bf16.msra.mxu0 0
    %1749 = vmatprep.subr.bf16.mxu0 0
    %1750 = vmatpush1.bf16.msra.mxu0 0
    %1751 = vmatprep.subr.bf16.mxu0 0
    %1752 = vmatpush1.bf16.msra.mxu0 0
    %1753 = vmatprep.subr.bf16.mxu0 0
    %1754 = vmatpush1.bf16.msra.mxu0 0
    %1755 = vmatprep.subr.bf16.mxu0 0
    %1756 = vmatpush1.bf16.msra.mxu0 0
    %1757 = vmatprep.subr.bf16.mxu0 0
    %1758 = vmatpush1.bf16.msra.mxu0 0
    %1759 = vmatprep.subr.bf16.mxu0 0
    %1760 = vmatpush1.bf16.msra.mxu0 0
    %1761 = vmatprep.subr.bf16.mxu0 0
    %1762 = vmatpush1.bf16.msra.mxu0 0
    %1763 = vmatprep.subr.bf16.mxu0 0
    %1764 = vmatpush1.bf16.msra.mxu0 0
    %1765 = vmatprep.subr.bf16.mxu0 0
    %1766 = vmatpush1.bf16.msra.mxu0 0
    %1767 = vmatprep.subr.bf16.mxu0 0
    %1768 = vmatpush1.bf16.msra.mxu0 0
    %1769 = vmatprep.mubr.bf16.mxu0 0
    %1770 = vmatmul.mubr.bf16.gmra.mrb[0].mxu0 %v1668
    %v1771 = vpop.f32.mrb[0].mxu0
    %v1772 = vadd.f32 0.0, %v1771
    %v1773 = vpop.f32.mrb[0].mxu0
    %v1774 = vpop.f32.mrb[0].mxu0
    %v1775 = vpop.f32.mrb[0].mxu0
    %1776 = vdwg.mxu0
    %v1777 = vadd.f32 %v1736, %v1772
    %v1778 = vxor.u32 %v1777, 2147483648
    %v1779 = vmul.f32 %v1778, 1.442695
    %v1780 = vpow.pop %v1779
    %v1781 = vadd.f32 %v1780, 1.0
    %v1782 = vrcp.pop %v1781
    %v1783 = vmul.f32 1.0, %v1782
    %v1784 = vtanh.pop %v1777
    %v1785 = vmul.f32 %v1783, %v1609
    %1787 = vrot.lane.b32.xlu0 %v1784, 32
    %v1788 = vpop.permute.xlu0 %1787
    %v1790 = vmul.f32 %v1783, %v1788
    %1792 = vrot.lane.b32.xlu0 %v1790, 32
    %v1793 = vpop.permute.xlu0 %1792
    %v1795 = vadd.f32 %v1785, %v1793
    %v1796 = vtanh.pop %v1795
    %1798 = vrot.lane.b32.xlu0 %v1796, 32
    %v1799 = vpop.permute.xlu0 %1798
    %v1801 = vmul.f32 %v1783, %v1799
    %v1802 = vpack.c.bf16 %v1801, %v1801
    %v1803 = vpack.c.bf16 %v1734, %v1734
    %1805 = vrot.lane.b32.xlu0 %v1803, 64
    %v1806 = vpop.permute.xlu0 %1805
    %v1808 = vsel %vm414, %v1806, 0
    %1810 = vmatprep.subr.bf16.mxu0 0
    %1811 = vmatpush1.bf16.msra.mxu0 %v492
    %1812 = vmatprep.subr.bf16.mxu0 0
    %1813 = vmatpush1.bf16.msra.mxu0 %v493
    %1814 = vmatprep.subr.bf16.mxu0 0
    %1815 = vmatpush1.bf16.msra.mxu0 0
    %1816 = vmatprep.subr.bf16.mxu0 0
    %1817 = vmatpush1.bf16.msra.mxu0 0
    %1818 = vmatprep.subr.bf16.mxu0 0
    %1819 = vmatpush1.bf16.msra.mxu0 0
    %1820 = vmatprep.subr.bf16.mxu0 0
    %1821 = vmatpush1.bf16.msra.mxu0 0
    %1822 = vmatprep.subr.bf16.mxu0 0
    %1823 = vmatpush1.bf16.msra.mxu0 0
    %1824 = vmatprep.subr.bf16.mxu0 0
    %1825 = vmatpush1.bf16.msra.mxu0 0
    %1826 = vmatprep.subr.bf16.mxu0 0
    %1827 = vmatpush1.bf16.msra.mxu0 0
    %1828 = vmatprep.subr.bf16.mxu0 0
    %1829 = vmatpush1.bf16.msra.mxu0 0
    %1830 = vmatprep.subr.bf16.mxu0 0
    %1831 = vmatpush1.bf16.msra.mxu0 0
    %1832 = vmatprep.subr.bf16.mxu0 0
    %1833 = vmatpush1.bf16.msra.mxu0 0
    %1834 = vmatprep.subr.bf16.mxu0 0
    %1835 = vmatpush1.bf16.msra.mxu0 0
    %1836 = vmatprep.subr.bf16.mxu0 0
    %1837 = vmatpush1.bf16.msra.mxu0 0
    %1838 = vmatprep.subr.bf16.mxu0 0
    %1839 = vmatpush1.bf16.msra.mxu0 0
    %1840 = vmatprep.subr.bf16.mxu0 0
    %1841 = vmatpush1.bf16.msra.mxu0 0
    %1842 = vmatprep.mubr.bf16.mxu0 0
    %1843 = vmatmul.mubr.bf16.gmra.mrb[0].mxu0 %v1808
    %v1844 = vpop.f32.mrb[0].mxu0
    %v1845 = vadd.f32 0.0, %v1844
    %v1846 = vpop.f32.mrb[0].mxu0
    %v1847 = vpop.f32.mrb[0].mxu0
    %v1848 = vpop.f32.mrb[0].mxu0
    %1849 = vdwg.mxu0
    %1851 = vrot.lane.b32.xlu0 %v1802, 64
    %v1852 = vpop.permute.xlu0 %1851
    %v1854 = vsel %vm414, %v1852, 0
    %1856 = vmatprep.subr.bf16.mxu0 0
    %1857 = vmatpush1.bf16.msra.mxu0 %v547
    %1858 = vmatprep.subr.bf16.mxu0 0
    %1859 = vmatpush1.bf16.msra.mxu0 %v548
    %1860 = vmatprep.subr.bf16.mxu0 0
    %1861 = vmatpush1.bf16.msra.mxu0 0
    %1862 = vmatprep.subr.bf16.mxu0 0
    %1863 = vmatpush1.bf16.msra.mxu0 0
    %1864 = vmatprep.subr.bf16.mxu0 0
    %1865 = vmatpush1.bf16.msra.mxu0 0
    %1866 = vmatprep.subr.bf16.mxu0 0
    %1867 = vmatpush1.bf16.msra.mxu0 0
    %1868 = vmatprep.subr.bf16.mxu0 0
    %1869 = vmatpush1.bf16.msra.mxu0 0
    %1870 = vmatprep.subr.bf16.mxu0 0
    %1871 = vmatpush1.bf16.msra.mxu0 0
    %1872 = vmatprep.subr.bf16.mxu0 0
    %1873 = vmatpush1.bf16.msra.mxu0 0
    %1874 = vmatprep.subr.bf16.mxu0 0
    %1875 = vmatpush1.bf16.msra.mxu0 0
    %1876 = vmatprep.subr.bf16.mxu0 0
    %1877 = vmatpush1.bf16.msra.mxu0 0
    %1878 = vmatprep.subr.bf16.mxu0 0
    %1879 = vmatpush1.bf16.msra.mxu0 0
    %1880 = vmatprep.subr.bf16.mxu0 0
    %1881 = vmatpush1.bf16.msra.mxu0 0
    %1882 = vmatprep.subr.bf16.mxu0 0
    %1883 = vmatpush1.bf16.msra.mxu0 0
    %1884 = vmatprep.subr.bf16.mxu0 0
    %1885 = vmatpush1.bf16.msra.mxu0 0
    %1886 = vmatprep.subr.bf16.mxu0 0
    %1887 = vmatpush1.bf16.msra.mxu0 0
    %1888 = vmatprep.mubr.bf16.mxu0 0
    %1889 = vmatmul.mubr.bf16.gmra.mrb[0].mxu0 %v1854
    %v1890 = vpop.f32.mrb[0].mxu0
    %v1891 = vadd.f32 %v1845, %v1890
    %v1892 = vpop.f32.mrb[0].mxu0
    %v1893 = vpop.f32.mrb[0].mxu0
    %v1894 = vpop.f32.mrb[0].mxu0
    %1895 = vdwg.mxu0
    %v1896 = vadd.f32 %v1891, %v262
    %v1897 = vxor.u32 %v1896, 2147483648
    %v1898 = vmul.f32 %v1897, 1.442695
    %v1899 = vpow.pop %v1898
    %v1900 = vadd.f32 %v1899, 1.0
    %v1901 = vrcp.pop %v1900
    %v1902 = vmul.f32 1.0, %v1901
    %v1903 = vtanh.pop %v1896
    %v1904 = vmul.f32 %v1902, %v1728
    %1906 = vrot.lane.b32.xlu0 %v1903, 32
    %v1907 = vpop.permute.xlu0 %1906
    %v1909 = vmul.f32 %v1902, %v1907
    %1911 = vrot.lane.b32.xlu0 %v1909, 32
    %v1912 = vpop.permute.xlu0 %1911
    %v1914 = vadd.f32 %v1904, %v1912
    %v1915 = vtanh.pop %v1914
    %1917 = vrot.lane.b32.xlu0 %v1915, 32
    %v1918 = vpop.permute.xlu0 %1917
    %v1920 = vmul.f32 %v1902, %v1918
    %v1921 = vpack.c.bf16 %v1920, %v1920
    %v1923 = vlaneseq
    %v1924 = vshrl.u32 %v1923, 7
    %v1925 = vsub.s32 0, %v1924
    %v1926 = vrot.slane %v272, %v1925
    %1929 = vrot.lane.b32.xlu0 %v1921, 64
    %v1930 = vpop.permute.xlu0 %1929
    %v1935 = vunpack.c.l.b16 %v264
    %v1936 = vunpack.c.l.b16 %v265
    %v1937 = vunpack.c.l.b16 %v266
    %v1938 = vunpack.c.l.b16 %v267
    %v1939 = vpack.c.b16 %v1936, %v1935
    %v1940 = vpack.c.b16 %v1938, %v1937
    %v1944 = vsel %vm414, %v1930, 0
    %1946 = vmatprep.subr.bf16.mxu0 0
    %1947 = vmatpush1.bf16.msra.mxu0 %v1939
    %1948 = vmatprep.subr.bf16.mxu0 0
    %1949 = vmatpush1.bf16.msra.mxu0 %v1940
    %1950 = vmatprep.subr.bf16.mxu0 0
    %1951 = vmatpush1.bf16.msra.mxu0 0
    %1952 = vmatprep.subr.bf16.mxu0 0
    %1953 = vmatpush1.bf16.msra.mxu0 0
    %1954 = vmatprep.subr.bf16.mxu0 0
    %1955 = vmatpush1.bf16.msra.mxu0 0
    %1956 = vmatprep.subr.bf16.mxu0 0
    %1957 = vmatpush1.bf16.msra.mxu0 0
    %1958 = vmatprep.subr.bf16.mxu0 0
    %1959 = vmatpush1.bf16.msra.mxu0 0
    %1960 = vmatprep.subr.bf16.mxu0 0
    %1961 = vmatpush1.bf16.msra.mxu0 0
    %1962 = vmatprep.subr.bf16.mxu0 0
    %1963 = vmatpush1.bf16.msra.mxu0 0
    %1964 = vmatprep.subr.bf16.mxu0 0
    %1965 = vmatpush1.bf16.msra.mxu0 0
    %1966 = vmatprep.subr.bf16.mxu0 0
    %1967 = vmatpush1.bf16.msra.mxu0 0
    %1968 = vmatprep.subr.bf16.mxu0 0
    %1969 = vmatpush1.bf16.msra.mxu0 0
    %1970 = vmatprep.subr.bf16.mxu0 0
    %1971 = vmatpush1.bf16.msra.mxu0 0
    %1972 = vmatprep.subr.bf16.mxu0 0
    %1973 = vmatpush1.bf16.msra.mxu0 0
    %1974 = vmatprep.subr.bf16.mxu0 0
    %1975 = vmatpush1.bf16.msra.mxu0 0
    %1976 = vmatprep.subr.bf16.mxu0 0
    %1977 = vmatpush1.bf16.msra.mxu0 0
    %1978 = vmatprep.mubr.bf16.mxu0 0
    %1979 = vmatmul.mubr.bf16.gmra.mrb[0].mxu0 %v1944
    %v1980 = vpop.f32.mrb[0].mxu0
    %v1981 = vadd.f32 %v1926, %v1980
    %v1982 = vpop.f32.mrb[0].mxu0
    %v1983 = vpop.f32.mrb[0].mxu0
    %v1984 = vpop.f32.mrb[0].mxu0
    %1985 = vdwg.mxu0
    %v1990 = vunpack.c.l.b16 %v268
    %v1991 = vunpack.c.l.b16 %v269
    %v1992 = vunpack.c.l.b16 %v270
    %v1993 = vunpack.c.l.b16 %v271
    %v1994 = vpack.c.b16 %v1991, %v1990
    %v1995 = vpack.c.b16 %v1993, %v1992
    %1998 = vmatprep.subr.bf16.mxu0 0
    %1999 = vmatpush1.bf16.msra.mxu0 %v1994
    %2000 = vmatprep.subr.bf16.mxu0 0
    %2001 = vmatpush1.bf16.msra.mxu0 %v1995
    %2002 = vmatprep.subr.bf16.mxu0 0
    %2003 = vmatpush1.bf16.msra.mxu0 0
    %2004 = vmatprep.subr.bf16.mxu0 0
    %2005 = vmatpush1.bf16.msra.mxu0 0
    %2006 = vmatprep.subr.bf16.mxu0 0
    %2007 = vmatpush1.bf16.msra.mxu0 0
    %2008 = vmatprep.subr.bf16.mxu0 0
    %2009 = vmatpush1.bf16.msra.mxu0 0
    %2010 = vmatprep.subr.bf16.mxu0 0
    %2011 = vmatpush1.bf16.msra.mxu0 0
    %2012 = vmatprep.subr.bf16.mxu0 0
    %2013 = vmatpush1.bf16.msra.mxu0 0
    %2014 = vmatprep.subr.bf16.mxu0 0
    %2015 = vmatpush1.bf16.msra.mxu0 0
    %2016 = vmatprep.subr.bf16.mxu0 0
    %2017 = vmatpush1.bf16.msra.mxu0 0
    %2018 = vmatprep.subr.bf16.mxu0 0
    %2019 = vmatpush1.bf16.msra.mxu0 0
    %2020 = vmatprep.subr.bf16.mxu0 0
    %2021 = vmatpush1.bf16.msra.mxu0 0
    %2022 = vmatprep.subr.bf16.mxu0 0
    %2023 = vmatpush1.bf16.msra.mxu0 0
    %2024 = vmatprep.subr.bf16.mxu0 0
    %2025 = vmatpush1.bf16.msra.mxu0 0
    %2026 = vmatprep.subr.bf16.mxu0 0
    %2027 = vmatpush1.bf16.msra.mxu0 0
    %2028 = vmatprep.subr.bf16.mxu0 0
    %2029 = vmatpush1.bf16.msra.mxu0 0
    %2030 = vmatprep.mubr.bf16.mxu0 0
    %2031 = vmatmul.mubr.bf16.gmra.mrb[0].mxu0 %v1944
    %v2032 = vpop.f32.mrb[0].mxu0
    %v2033 = vadd.f32 0.0, %v2032
    %v2034 = vpop.f32.mrb[0].mxu0
    %v2035 = vpop.f32.mrb[0].mxu0
    %v2036 = vpop.f32.mrb[0].mxu0
    %2037 = vdwg.mxu0
    %v2038 = vadd.f32 %v1981, %v2033
    %v2039 = vxor.u32 %v2038, 2147483648
    %v2040 = vmul.f32 %v2039, 1.442695
    %v2041 = vpow.pop %v2040
    %v2042 = vadd.f32 %v2041, 1.0
    %v2043 = vrcp.pop %v2042
    %v2044 = vmul.f32 1.0, %v2043
    %v2045 = vtanh.pop %v2038
    %v2046 = vmul.f32 %v2044, %v1914
    %2048 = vrot.lane.b32.xlu0 %v2045, 32
    %v2049 = vpop.permute.xlu0 %2048
    %v2051 = vmul.f32 %v2044, %v2049
    %2053 = vrot.lane.b32.xlu0 %v2051, 32
    %v2054 = vpop.permute.xlu0 %2053
    %v2056 = vadd.f32 %v2046, %v2054
    %v2057 = vtanh.pop %v2056
    %2059 = vrot.lane.b32.xlu0 %v2057, 32
    %v2060 = vpop.permute.xlu0 %2059
    %v2062 = vmul.f32 %v2044, %v2060
    %v2063 = vpack.c.bf16 %v2062, %v2062
    %v2068 = vunpack.c.l.b16 %v277
    %v2069 = vunpack.c.l.b16 %v278
    %v2070 = vunpack.c.l.b16 %v279
    %v2071 = vunpack.c.l.b16 %v280
    %v2072 = vpack.c.b16 %v2069, %v2068
    %v2073 = vpack.c.b16 %v2071, %v2070
    %2076 = vmatprep.subr.bf16.mxu0 0
    %2077 = vmatpush1.bf16.msra.mxu0 %v2072
    %2078 = vmatprep.subr.bf16.mxu0 0
    %2079 = vmatpush1.bf16.msra.mxu0 %v2073
    %2080 = vmatprep.subr.bf16.mxu0 0
    %2081 = vmatpush1.bf16.msra.mxu0 0
    %2082 = vmatprep.subr.bf16.mxu0 0
    %2083 = vmatpush1.bf16.msra.mxu0 0
    %2084 = vmatprep.subr.bf16.mxu0 0
    %2085 = vmatpush1.bf16.msra.mxu0 0
    %2086 = vmatprep.subr.bf16.mxu0 0
    %2087 = vmatpush1.bf16.msra.mxu0 0
    %2088 = vmatprep.subr.bf16.mxu0 0
    %2089 = vmatpush1.bf16.msra.mxu0 0
    %2090 = vmatprep.subr.bf16.mxu0 0
    %2091 = vmatpush1.bf16.msra.mxu0 0
    %2092 = vmatprep.subr.bf16.mxu0 0
    %2093 = vmatpush1.bf16.msra.mxu0 0
    %2094 = vmatprep.subr.bf16.mxu0 0
    %2095 = vmatpush1.bf16.msra.mxu0 0
    %2096 = vmatprep.subr.bf16.mxu0 0
    %2097 = vmatpush1.bf16.msra.mxu0 0
    %2098 = vmatprep.subr.bf16.mxu0 0
    %2099 = vmatpush1.bf16.msra.mxu0 0
    %2100 = vmatprep.subr.bf16.mxu0 0
    %2101 = vmatpush1.bf16.msra.mxu0 0
    %2102 = vmatprep.subr.bf16.mxu0 0
    %2103 = vmatpush1.bf16.msra.mxu0 0
    %2104 = vmatprep.subr.bf16.mxu0 0
    %2105 = vmatpush1.bf16.msra.mxu0 0
    %2106 = vmatprep.subr.bf16.mxu0 0
    %2107 = vmatpush1.bf16.msra.mxu0 0
    %2108 = vmatprep.mubr.bf16.mxu0 0
    %2109 = vmatmul.mubr.bf16.gmra.mrb[0].mxu0 %v1944
    %v2110 = vpop.f32.mrb[0].mxu0
    %v2111 = vadd.f32 0.0, %v2110
    %v2112 = vpop.f32.mrb[0].mxu0
    %v2113 = vpop.f32.mrb[0].mxu0
    %v2114 = vpop.f32.mrb[0].mxu0
    %2115 = vdwg.mxu0
    %2117 = vrot.lane.b32.xlu0 %v2063, 64
    %v2118 = vpop.permute.xlu0 %2117
    %v2123 = vunpack.c.l.b16 %v273
    %v2124 = vunpack.c.l.b16 %v274
    %v2125 = vunpack.c.l.b16 %v275
    %v2126 = vunpack.c.l.b16 %v276
    %v2127 = vpack.c.b16 %v2124, %v2123
    %v2128 = vpack.c.b16 %v2126, %v2125
    %v2132 = vsel %vm414, %v2118, 0
    %2134 = vmatprep.subr.bf16.mxu0 0
    %2135 = vmatpush1.bf16.msra.mxu0 %v2127
    %2136 = vmatprep.subr.bf16.mxu0 0
    %2137 = vmatpush1.bf16.msra.mxu0 %v2128
    %2138 = vmatprep.subr.bf16.mxu0 0
    %2139 = vmatpush1.bf16.msra.mxu0 0
    %2140 = vmatprep.subr.bf16.mxu0 0
    %2141 = vmatpush1.bf16.msra.mxu0 0
    %2142 = vmatprep.subr.bf16.mxu0 0
    %2143 = vmatpush1.bf16.msra.mxu0 0
    %2144 = vmatprep.subr.bf16.mxu0 0
    %2145 = vmatpush1.bf16.msra.mxu0 0
    %2146 = vmatprep.subr.bf16.mxu0 0
    %2147 = vmatpush1.bf16.msra.mxu0 0
    %2148 = vmatprep.subr.bf16.mxu0 0
    %2149 = vmatpush1.bf16.msra.mxu0 0
    %2150 = vmatprep.subr.bf16.mxu0 0
    %2151 = vmatpush1.bf16.msra.mxu0 0
    %2152 = vmatprep.subr.bf16.mxu0 0
    %2153 = vmatpush1.bf16.msra.mxu0 0
    %2154 = vmatprep.subr.bf16.mxu0 0
    %2155 = vmatpush1.bf16.msra.mxu0 0
    %2156 = vmatprep.subr.bf16.mxu0 0
    %2157 = vmatpush1.bf16.msra.mxu0 0
    %2158 = vmatprep.subr.bf16.mxu0 0
    %2159 = vmatpush1.bf16.msra.mxu0 0
    %2160 = vmatprep.subr.bf16.mxu0 0
    %2161 = vmatpush1.bf16.msra.mxu0 0
    %2162 = vmatprep.subr.bf16.mxu0 0
    %2163 = vmatpush1.bf16.msra.mxu0 0
    %2164 = vmatprep.subr.bf16.mxu0 0
    %2165 = vmatpush1.bf16.msra.mxu0 0
    %2166 = vmatprep.mubr.bf16.mxu0 0
    %2167 = vmatmul.mubr.bf16.gmra.mrb[0].mxu0 %v2132
    %v2168 = vpop.f32.mrb[0].mxu0
    %v2169 = vadd.f32 %v2111, %v2168
    %v2170 = vpop.f32.mrb[0].mxu0
    %v2171 = vpop.f32.mrb[0].mxu0
    %v2172 = vpop.f32.mrb[0].mxu0
    %2173 = vdwg.mxu0
    %v2174 = vadd.f32 %v2169, %v286
    %v2175 = vxor.u32 %v2174, 2147483648
    %v2176 = vmul.f32 %v2175, 1.442695
    %v2177 = vpow.pop %v2176
    %v2178 = vadd.f32 %v2177, 1.0
    %v2179 = vrcp.pop %v2178
    %v2180 = vmul.f32 1.0, %v2179
    %v2181 = vtanh.pop %v2174
    %v2182 = vmul.f32 %v2180, %v1914
    %2184 = vrot.lane.b32.xlu0 %v2181, 32
    %v2185 = vpop.permute.xlu0 %2184
    %v2187 = vmul.f32 %v2180, %v2185
    %2189 = vrot.lane.b32.xlu0 %v2187, 32
    %v2190 = vpop.permute.xlu0 %2189
    %v2192 = vadd.f32 %v2182, %v2190
    %v2193 = vtanh.pop %v2192
    %2195 = vrot.lane.b32.xlu0 %v2193, 32
    %v2196 = vpop.permute.xlu0 %2195
    %v2198 = vmul.f32 %v2180, %v2196
    %2200 = vrot.lane.b32.xlu0 %v2198, 64
    %v2201 = vpop.permute.xlu0 %2200
    %2203 = vst.msk [vmem:[#allocation3] sm:$0xff] %vm414, %v2201
    %2204 = vmatprep.subr.bf16.mxu0 0
    %2205 = vmatpush1.bf16.msra.mxu0 %v1994
    %2206 = vmatprep.subr.bf16.mxu0 0
    %2207 = vmatpush1.bf16.msra.mxu0 %v1995
    %2208 = vmatprep.subr.bf16.mxu0 0
    %2209 = vmatpush1.bf16.msra.mxu0 0
    %2210 = vmatprep.subr.bf16.mxu0 0
    %2211 = vmatpush1.bf16.msra.mxu0 0
    %2212 = vmatprep.subr.bf16.mxu0 0
    %2213 = vmatpush1.bf16.msra.mxu0 0
    %2214 = vmatprep.subr.bf16.mxu0 0
    %2215 = vmatpush1.bf16.msra.mxu0 0
    %2216 = vmatprep.subr.bf16.mxu0 0
    %2217 = vmatpush1.bf16.msra.mxu0 0
    %2218 = vmatprep.subr.bf16.mxu0 0
    %2219 = vmatpush1.bf16.msra.mxu0 0
    %2220 = vmatprep.subr.bf16.mxu0 0
    %2221 = vmatpush1.bf16.msra.mxu0 0
    %2222 = vmatprep.subr.bf16.mxu0 0
    %2223 = vmatpush1.bf16.msra.mxu0 0
    %2224 = vmatprep.subr.bf16.mxu0 0
    %2225 = vmatpush1.bf16.msra.mxu0 0
    %2226 = vmatprep.subr.bf16.mxu0 0
    %2227 = vmatpush1.bf16.msra.mxu0 0
    %2228 = vmatprep.subr.bf16.mxu0 0
    %2229 = vmatpush1.bf16.msra.mxu0 0
    %2230 = vmatprep.subr.bf16.mxu0 0
    %2231 = vmatpush1.bf16.msra.mxu0 0
    %2232 = vmatprep.subr.bf16.mxu0 0
    %2233 = vmatpush1.bf16.msra.mxu0 0
    %2234 = vmatprep.subr.bf16.mxu0 0
    %2235 = vmatpush1.bf16.msra.mxu0 0
    %2236 = vmatprep.mubr.bf16.mxu0 0
    %2237 = vmatmul.mubr.bf16.gmra.mrb[0].mxu0 %v2132
    %v2238 = vpop.f32.mrb[0].mxu0
    %v2239 = vadd.f32 0.0, %v2238
    %v2240 = vpop.f32.mrb[0].mxu0
    %v2241 = vpop.f32.mrb[0].mxu0
    %v2242 = vpop.f32.mrb[0].mxu0
    %2243 = vdwg.mxu0
    %v2244 = vadd.f32 %v1981, %v2239
    %v2245 = vxor.u32 %v2244, 2147483648
    %v2246 = vmul.f32 %v2245, 1.442695
    %v2247 = vpow.pop %v2246
    %v2248 = vadd.f32 %v2247, 1.0
    %v2249 = vrcp.pop %v2248
    %v2250 = vmul.f32 1.0, %v2249
    %v2251 = vtanh.pop %v2244
    %v2252 = vmul.f32 %v2250, %v2056
    %2254 = vrot.lane.b32.xlu0 %v2251, 32
    %v2255 = vpop.permute.xlu0 %2254
    %v2257 = vmul.f32 %v2250, %v2255
    %2259 = vrot.lane.b32.xlu0 %v2257, 32
    %v2260 = vpop.permute.xlu0 %2259
    %v2262 = vadd.f32 %v2252, %v2260
    %v2263 = vtanh.pop %v2262
    %2265 = vrot.lane.b32.xlu0 %v2263, 32
    %v2266 = vpop.permute.xlu0 %2265
    %v2268 = vmul.f32 %v2250, %v2266
    %v2269 = vpack.c.bf16 %v2268, %v2268
    %v2270 = vpack.c.bf16 %v2198, %v2198
    %2272 = vrot.lane.b32.xlu0 %v2270, 64
    %v2273 = vpop.permute.xlu0 %2272
    %v2275 = vsel %vm414, %v2273, 0
    %2277 = vmatprep.subr.bf16.mxu0 0
    %2278 = vmatpush1.bf16.msra.mxu0 %v2072
    %2279 = vmatprep.subr.bf16.mxu0 0
    %2280 = vmatpush1.bf16.msra.mxu0 %v2073
    %2281 = vmatprep.subr.bf16.mxu0 0
    %2282 = vmatpush1.bf16.msra.mxu0 0
    %2283 = vmatprep.subr.bf16.mxu0 0
    %2284 = vmatpush1.bf16.msra.mxu0 0
    %2285 = vmatprep.subr.bf16.mxu0 0
    %2286 = vmatpush1.bf16.msra.mxu0 0
    %2287 = vmatprep.subr.bf16.mxu0 0
    %2288 = vmatpush1.bf16.msra.mxu0 0
    %2289 = vmatprep.subr.bf16.mxu0 0
    %2290 = vmatpush1.bf16.msra.mxu0 0
    %2291 = vmatprep.subr.bf16.mxu0 0
    %2292 = vmatpush1.bf16.msra.mxu0 0
    %2293 = vmatprep.subr.bf16.mxu0 0
    %2294 = vmatpush1.bf16.msra.mxu0 0
    %2295 = vmatprep.subr.bf16.mxu0 0
    %2296 = vmatpush1.bf16.msra.mxu0 0
    %2297 = vmatprep.subr.bf16.mxu0 0
    %2298 = vmatpush1.bf16.msra.mxu0 0
    %2299 = vmatprep.subr.bf16.mxu0 0
    %2300 = vmatpush1.bf16.msra.mxu0 0
    %2301 = vmatprep.subr.bf16.mxu0 0
    %2302 = vmatpush1.bf16.msra.mxu0 0
    %2303 = vmatprep.subr.bf16.mxu0 0
    %2304 = vmatpush1.bf16.msra.mxu0 0
    %2305 = vmatprep.subr.bf16.mxu0 0
    %2306 = vmatpush1.bf16.msra.mxu0 0
    %2307 = vmatprep.subr.bf16.mxu0 0
    %2308 = vmatpush1.bf16.msra.mxu0 0
    %2309 = vmatprep.mubr.bf16.mxu0 0
    %2310 = vmatmul.mubr.bf16.gmra.mrb[0].mxu0 %v2275
    %v2311 = vpop.f32.mrb[0].mxu0
    %v2312 = vadd.f32 0.0, %v2311
    %v2313 = vpop.f32.mrb[0].mxu0
    %v2314 = vpop.f32.mrb[0].mxu0
    %v2315 = vpop.f32.mrb[0].mxu0
    %2316 = vdwg.mxu0
    %2318 = vrot.lane.b32.xlu0 %v2269, 64
    %v2319 = vpop.permute.xlu0 %2318
    %v2321 = vsel %vm414, %v2319, 0
    %2323 = vmatprep.subr.bf16.mxu0 0
    %2324 = vmatpush1.bf16.msra.mxu0 %v2127
    %2325 = vmatprep.subr.bf16.mxu0 0
    %2326 = vmatpush1.bf16.msra.mxu0 %v2128
    %2327 = vmatprep.subr.bf16.mxu0 0
    %2328 = vmatpush1.bf16.msra.mxu0 0
    %2329 = vmatprep.subr.bf16.mxu0 0
    %2330 = vmatpush1.bf16.msra.mxu0 0
    %2331 = vmatprep.subr.bf16.mxu0 0
    %2332 = vmatpush1.bf16.msra.mxu0 0
    %2333 = vmatprep.subr.bf16.mxu0 0
    %2334 = vmatpush1.bf16.msra.mxu0 0
    %2335 = vmatprep.subr.bf16.mxu0 0
    %2336 = vmatpush1.bf16.msra.mxu0 0
    %2337 = vmatprep.subr.bf16.mxu0 0
    %2338 = vmatpush1.bf16.msra.mxu0 0
    %2339 = vmatprep.subr.bf16.mxu0 0
    %2340 = vmatpush1.bf16.msra.mxu0 0
    %2341 = vmatprep.subr.bf16.mxu0 0
    %2342 = vmatpush1.bf16.msra.mxu0 0
    %2343 = vmatprep.subr.bf16.mxu0 0
    %2344 = vmatpush1.bf16.msra.mxu0 0
    %2345 = vmatprep.subr.bf16.mxu0 0
    %2346 = vmatpush1.bf16.msra.mxu0 0
    %2347 = vmatprep.subr.bf16.mxu0 0
    %2348 = vmatpush1.bf16.msra.mxu0 0
    %2349 = vmatprep.subr.bf16.mxu0 0
    %2350 = vmatpush1.bf16.msra.mxu0 0
    %2351 = vmatprep.subr.bf16.mxu0 0
    %2352 = vmatpush1.bf16.msra.mxu0 0
    %2353 = vmatprep.subr.bf16.mxu0 0
    %2354 = vmatpush1.bf16.msra.mxu0 0
    %2355 = vmatprep.mubr.bf16.mxu0 0
    %2356 = vmatmul.mubr.bf16.gmra.mrb[0].mxu0 %v2321
    %v2357 = vpop.f32.mrb[0].mxu0
    %v2358 = vadd.f32 %v2312, %v2357
    %v2359 = vpop.f32.mrb[0].mxu0
    %v2360 = vpop.f32.mrb[0].mxu0
    %v2361 = vpop.f32.mrb[0].mxu0
    %2362 = vdwg.mxu0
    %v2363 = vadd.f32 %v2358, %v286
    %v2364 = vxor.u32 %v2363, 2147483648
    %v2365 = vmul.f32 %v2364, 1.442695
    %v2366 = vpow.pop %v2365
    %v2367 = vadd.f32 %v2366, 1.0
    %v2368 = vrcp.pop %v2367
    %v2369 = vmul.f32 1.0, %v2368
    %v2370 = vtanh.pop %v2363
    %v2371 = vmul.f32 %v2369, %v2192
    %2373 = vrot.lane.b32.xlu0 %v2370, 32
    %v2374 = vpop.permute.xlu0 %2373
    %v2376 = vmul.f32 %v2369, %v2374
    %2378 = vrot.lane.b32.xlu0 %v2376, 32
    %v2379 = vpop.permute.xlu0 %2378
    %v2381 = vadd.f32 %v2371, %v2379
    %v2382 = vtanh.pop %v2381
    %2384 = vrot.lane.b32.xlu0 %v2382, 32
    %v2385 = vpop.permute.xlu0 %2384
    %v2387 = vmul.f32 %v2369, %v2385
    %2389 = vrot.lane.b32.xlu0 %v2387, 64
    %v2390 = vpop.permute.xlu0 %2389
    %s2392 = scalar_lea.vmem [#allocation3], 8
    %2393 = vst.msk [vmem:[%s2392] sm:$0xff] %vm414, %v2390
    %2394 = vmatprep.subr.bf16.mxu0 0
    %2395 = vmatpush1.bf16.msra.mxu0 %v1994
    %2396 = vmatprep.subr.bf16.mxu0 0
    %2397 = vmatpush1.bf16.msra.mxu0 %v1995
    %2398 = vmatprep.subr.bf16.mxu0 0
    %2399 = vmatpush1.bf16.msra.mxu0 0
    %2400 = vmatprep.subr.bf16.mxu0 0
    %2401 = vmatpush1.bf16.msra.mxu0 0
    %2402 = vmatprep.subr.bf16.mxu0 0
    %2403 = vmatpush1.bf16.msra.mxu0 0
    %2404 = vmatprep.subr.bf16.mxu0 0
    %2405 = vmatpush1.bf16.msra.mxu0 0
    %2406 = vmatprep.subr.bf16.mxu0 0
    %2407 = vmatpush1.bf16.msra.mxu0 0
    %2408 = vmatprep.subr.bf16.mxu0 0
    %2409 = vmatpush1.bf16.msra.mxu0 0
    %2410 = vmatprep.subr.bf16.mxu0 0
    %2411 = vmatpush1.bf16.msra.mxu0 0
    %2412 = vmatprep.subr.bf16.mxu0 0
    %2413 = vmatpush1.bf16.msra.mxu0 0
    %2414 = vmatprep.subr.bf16.mxu0 0
    %2415 = vmatpush1.bf16.msra.mxu0 0
    %2416 = vmatprep.subr.bf16.mxu0 0
    %2417 = vmatpush1.bf16.msra.mxu0 0
    %2418 = vmatprep.subr.bf16.mxu0 0
    %2419 = vmatpush1.bf16.msra.mxu0 0
    %2420 = vmatprep.subr.bf16.mxu0 0
    %2421 = vmatpush1.bf16.msra.mxu0 0
    %2422 = vmatprep.subr.bf16.mxu0 0
    %2423 = vmatpush1.bf16.msra.mxu0 0
    %2424 = vmatprep.subr.bf16.mxu0 0
    %2425 = vmatpush1.bf16.msra.mxu0 0
    %2426 = vmatprep.mubr.bf16.mxu0 0
    %2427 = vmatmul.mubr.bf16.gmra.mrb[0].mxu0 %v2321
    %v2428 = vpop.f32.mrb[0].mxu0
    %v2429 = vadd.f32 0.0, %v2428
    %v2430 = vpop.f32.mrb[0].mxu0
    %v2431 = vpop.f32.mrb[0].mxu0
    %v2432 = vpop.f32.mrb[0].mxu0
    %2433 = vdwg.mxu0
    %v2434 = vadd.f32 %v1981, %v2429
    %v2435 = vxor.u32 %v2434, 2147483648
    %v2436 = vmul.f32 %v2435, 1.442695
    %v2437 = vpow.pop %v2436
    %v2438 = vadd.f32 %v2437, 1.0
    %v2439 = vrcp.pop %v2438
    %v2440 = vmul.f32 1.0, %v2439
    %v2441 = vtanh.pop %v2434
    %v2442 = vmul.f32 %v2440, %v2262
    %2444 = vrot.lane.b32.xlu0 %v2441, 32
    %v2445 = vpop.permute.xlu0 %2444
    %v2447 = vmul.f32 %v2440, %v2445
    %2449 = vrot.lane.b32.xlu0 %v2447, 32
    %v2450 = vpop.permute.xlu0 %2449
    %v2452 = vadd.f32 %v2442, %v2450
    %v2453 = vtanh.pop %v2452
    %2455 = vrot.lane.b32.xlu0 %v2453, 32
    %v2456 = vpop.permute.xlu0 %2455
    %v2458 = vmul.f32 %v2440, %v2456
    %v2459 = vpack.c.bf16 %v2458, %v2458
    %v2460 = vpack.c.bf16 %v2387, %v2387
    %2462 = vrot.lane.b32.xlu0 %v2460, 64
    %v2463 = vpop.permute.xlu0 %2462
    %v2465 = vsel %vm414, %v2463, 0
    %2467 = vmatprep.subr.bf16.mxu0 0
    %2468 = vmatpush1.bf16.msra.mxu0 %v2072
    %2469 = vmatprep.subr.bf16.mxu0 0
    %2470 = vmatpush1.bf16.msra.mxu0 %v2073
    %2471 = vmatprep.subr.bf16.mxu0 0
    %2472 = vmatpush1.bf16.msra.mxu0 0
    %2473 = vmatprep.subr.bf16.mxu0 0
    %2474 = vmatpush1.bf16.msra.mxu0 0
    %2475 = vmatprep.subr.bf16.mxu0 0
    %2476 = vmatpush1.bf16.msra.mxu0 0
    %2477 = vmatprep.subr.bf16.mxu0 0
    %2478 = vmatpush1.bf16.msra.mxu0 0
    %2479 = vmatprep.subr.bf16.mxu0 0
    %2480 = vmatpush1.bf16.msra.mxu0 0
    %2481 = vmatprep.subr.bf16.mxu0 0
    %2482 = vmatpush1.bf16.msra.mxu0 0
    %2483 = vmatprep.subr.bf16.mxu0 0
    %2484 = vmatpush1.bf16.msra.mxu0 0
    %2485 = vmatprep.subr.bf16.mxu0 0
    %2486 = vmatpush1.bf16.msra.mxu0 0
    %2487 = vmatprep.subr.bf16.mxu0 0
    %2488 = vmatpush1.bf16.msra.mxu0 0
    %2489 = vmatprep.subr.bf16.mxu0 0
    %2490 = vmatpush1.bf16.msra.mxu0 0
    %2491 = vmatprep.subr.bf16.mxu0 0
    %2492 = vmatpush1.bf16.msra.mxu0 0
    %2493 = vmatprep.subr.bf16.mxu0 0
    %2494 = vmatpush1.bf16.msra.mxu0 0
    %2495 = vmatprep.subr.bf16.mxu0 0
    %2496 = vmatpush1.bf16.msra.mxu0 0
    %2497 = vmatprep.subr.bf16.mxu0 0
    %2498 = vmatpush1.bf16.msra.mxu0 0
    %2499 = vmatprep.mubr.bf16.mxu0 0
    %2500 = vmatmul.mubr.bf16.gmra.mrb[0].mxu0 %v2465
    %v2501 = vpop.f32.mrb[0].mxu0
    %v2502 = vadd.f32 0.0, %v2501
    %v2503 = vpop.f32.mrb[0].mxu0
    %v2504 = vpop.f32.mrb[0].mxu0
    %v2505 = vpop.f32.mrb[0].mxu0
    %2506 = vdwg.mxu0
    %2508 = vrot.lane.b32.xlu0 %v2459, 64
    %v2509 = vpop.permute.xlu0 %2508
    %v2511 = vsel %vm414, %v2509, 0
    %2513 = vmatprep.subr.bf16.mxu0 0
    %2514 = vmatpush1.bf16.msra.mxu0 %v2127
    %2515 = vmatprep.subr.bf16.mxu0 0
    %2516 = vmatpush1.bf16.msra.mxu0 %v2128
    %2517 = vmatprep.subr.bf16.mxu0 0
    %2518 = vmatpush1.bf16.msra.mxu0 0
    %2519 = vmatprep.subr.bf16.mxu0 0
    %2520 = vmatpush1.bf16.msra.mxu0 0
    %2521 = vmatprep.subr.bf16.mxu0 0
    %2522 = vmatpush1.bf16.msra.mxu0 0
    %2523 = vmatprep.subr.bf16.mxu0 0
    %2524 = vmatpush1.bf16.msra.mxu0 0
    %2525 = vmatprep.subr.bf16.mxu0 0
    %2526 = vmatpush1.bf16.msra.mxu0 0
    %2527 = vmatprep.subr.bf16.mxu0 0
    %2528 = vmatpush1.bf16.msra.mxu0 0
    %2529 = vmatprep.subr.bf16.mxu0 0
    %2530 = vmatpush1.bf16.msra.mxu0 0
    %2531 = vmatprep.subr.bf16.mxu0 0
    %2532 = vmatpush1.bf16.msra.mxu0 0
    %2533 = vmatprep.subr.bf16.mxu0 0
    %2534 = vmatpush1.bf16.msra.mxu0 0
    %2535 = vmatprep.subr.bf16.mxu0 0
    %2536 = vmatpush1.bf16.msra.mxu0 0
    %2537 = vmatprep.subr.bf16.mxu0 0
    %2538 = vmatpush1.bf16.msra.mxu0 0
    %2539 = vmatprep.subr.bf16.mxu0 0
    %2540 = vmatpush1.bf16.msra.mxu0 0
    %2541 = vmatprep.subr.bf16.mxu0 0
    %2542 = vmatpush1.bf16.msra.mxu0 0
    %2543 = vmatprep.subr.bf16.mxu0 0
    %2544 = vmatpush1.bf16.msra.mxu0 0
    %2545 = vmatprep.mubr.bf16.mxu0 0
    %2546 = vmatmul.mubr.bf16.gmra.mrb[0].mxu0 %v2511
    %v2547 = vpop.f32.mrb[0].mxu0
    %v2548 = vadd.f32 %v2502, %v2547
    %v2549 = vpop.f32.mrb[0].mxu0
    %v2550 = vpop.f32.mrb[0].mxu0
    %v2551 = vpop.f32.mrb[0].mxu0
    %2552 = vdwg.mxu0
    %v2553 = vadd.f32 %v2548, %v286
    %v2554 = vxor.u32 %v2553, 2147483648
    %v2555 = vmul.f32 %v2554, 1.442695
    %v2556 = vpow.pop %v2555
    %v2557 = vadd.f32 %v2556, 1.0
    %v2558 = vrcp.pop %v2557
    %v2559 = vmul.f32 1.0, %v2558
    %v2560 = vtanh.pop %v2553
    %v2561 = vmul.f32 %v2559, %v2381
    %2563 = vrot.lane.b32.xlu0 %v2560, 32
    %v2564 = vpop.permute.xlu0 %2563
    %v2566 = vmul.f32 %v2559, %v2564
    %2568 = vrot.lane.b32.xlu0 %v2566, 32
    %v2569 = vpop.permute.xlu0 %2568
    %v2571 = vadd.f32 %v2561, %v2569
    %v2572 = vtanh.pop %v2571
    %2574 = vrot.lane.b32.xlu0 %v2572, 32
    %v2575 = vpop.permute.xlu0 %2574
    %v2577 = vmul.f32 %v2559, %v2575
    %2579 = vrot.lane.b32.xlu0 %v2577, 64
    %v2580 = vpop.permute.xlu0 %2579
    %s2582 = scalar_lea.vmem [#allocation3], 16
    %2583 = vst.msk [vmem:[%s2582] sm:$0xff] %vm414, %v2580
    %2584 = vmatprep.subr.bf16.mxu0 0
    %2585 = vmatpush1.bf16.msra.mxu0 %v1994
    %2586 = vmatprep.subr.bf16.mxu0 0
    %2587 = vmatpush1.bf16.msra.mxu0 %v1995
    %2588 = vmatprep.subr.bf16.mxu0 0
    %2589 = vmatpush1.bf16.msra.mxu0 0
    %2590 = vmatprep.subr.bf16.mxu0 0
    %2591 = vmatpush1.bf16.msra.mxu0 0
    %2592 = vmatprep.subr.bf16.mxu0 0
    %2593 = vmatpush1.bf16.msra.mxu0 0
    %2594 = vmatprep.subr.bf16.mxu0 0
    %2595 = vmatpush1.bf16.msra.mxu0 0
    %2596 = vmatprep.subr.bf16.mxu0 0
    %2597 = vmatpush1.bf16.msra.mxu0 0
    %2598 = vmatprep.subr.bf16.mxu0 0
    %2599 = vmatpush1.bf16.msra.mxu0 0
    %2600 = vmatprep.subr.bf16.mxu0 0
    %2601 = vmatpush1.bf16.msra.mxu0 0
    %2602 = vmatprep.subr.bf16.mxu0 0
    %2603 = vmatpush1.bf16.msra.mxu0 0
    %2604 = vmatprep.subr.bf16.mxu0 0
    %2605 = vmatpush1.bf16.msra.mxu0 0
    %2606 = vmatprep.subr.bf16.mxu0 0
    %2607 = vmatpush1.bf16.msra.mxu0 0
    %2608 = vmatprep.subr.bf16.mxu0 0
    %2609 = vmatpush1.bf16.msra.mxu0 0
    %2610 = vmatprep.subr.bf16.mxu0 0
    %2611 = vmatpush1.bf16.msra.mxu0 0
    %2612 = vmatprep.subr.bf16.mxu0 0
    %2613 = vmatpush1.bf16.msra.mxu0 0
    %2614 = vmatprep.subr.bf16.mxu0 0
    %2615 = vmatpush1.bf16.msra.mxu0 0
    %2616 = vmatprep.mubr.bf16.mxu0 0
    %2617 = vmatmul.mubr.bf16.gmra.mrb[0].mxu0 %v2511
    %v2618 = vpop.f32.mrb[0].mxu0
    %v2619 = vadd.f32 0.0, %v2618
    %v2620 = vpop.f32.mrb[0].mxu0
    %v2621 = vpop.f32.mrb[0].mxu0
    %v2622 = vpop.f32.mrb[0].mxu0
    %2623 = vdwg.mxu0
    %v2624 = vadd.f32 %v1981, %v2619
    %v2625 = vxor.u32 %v2624, 2147483648
    %v2626 = vmul.f32 %v2625, 1.442695
    %v2627 = vpow.pop %v2626
    %v2628 = vadd.f32 %v2627, 1.0
    %v2629 = vrcp.pop %v2628
    %v2630 = vmul.f32 1.0, %v2629
    %v2631 = vtanh.pop %v2624
    %v2632 = vmul.f32 %v2630, %v2452
    %2634 = vrot.lane.b32.xlu0 %v2631, 32
    %v2635 = vpop.permute.xlu0 %2634
    %v2637 = vmul.f32 %v2630, %v2635
    %2639 = vrot.lane.b32.xlu0 %v2637, 32
    %v2640 = vpop.permute.xlu0 %2639
    %v2642 = vadd.f32 %v2632, %v2640
    %v2643 = vtanh.pop %v2642
    %2645 = vrot.lane.b32.xlu0 %v2643, 32
    %v2646 = vpop.permute.xlu0 %2645
    %v2648 = vmul.f32 %v2630, %v2646
    %v2649 = vpack.c.bf16 %v2648, %v2648
    %v2650 = vpack.c.bf16 %v2577, %v2577
    %2652 = vrot.lane.b32.xlu0 %v2650, 64
    %v2653 = vpop.permute.xlu0 %2652
    %v2655 = vsel %vm414, %v2653, 0
    %2657 = vmatprep.subr.bf16.mxu0 0
    %2658 = vmatpush1.bf16.msra.mxu0 %v2072
    %2659 = vmatprep.subr.bf16.mxu0 0
    %2660 = vmatpush1.bf16.msra.mxu0 %v2073
    %2661 = vmatprep.subr.bf16.mxu0 0
    %2662 = vmatpush1.bf16.msra.mxu0 0
    %2663 = vmatprep.subr.bf16.mxu0 0
    %2664 = vmatpush1.bf16.msra.mxu0 0
    %2665 = vmatprep.subr.bf16.mxu0 0
    %2666 = vmatpush1.bf16.msra.mxu0 0
    %2667 = vmatprep.subr.bf16.mxu0 0
    %2668 = vmatpush1.bf16.msra.mxu0 0
    %2669 = vmatprep.subr.bf16.mxu0 0
    %2670 = vmatpush1.bf16.msra.mxu0 0
    %2671 = vmatprep.subr.bf16.mxu0 0
    %2672 = vmatpush1.bf16.msra.mxu0 0
    %2673 = vmatprep.subr.bf16.mxu0 0
    %2674 = vmatpush1.bf16.msra.mxu0 0
    %2675 = vmatprep.subr.bf16.mxu0 0
    %2676 = vmatpush1.bf16.msra.mxu0 0
    %2677 = vmatprep.subr.bf16.mxu0 0
    %2678 = vmatpush1.bf16.msra.mxu0 0
    %2679 = vmatprep.subr.bf16.mxu0 0
    %2680 = vmatpush1.bf16.msra.mxu0 0
    %2681 = vmatprep.subr.bf16.mxu0 0
    %2682 = vmatpush1.bf16.msra.mxu0 0
    %2683 = vmatprep.subr.bf16.mxu0 0
    %2684 = vmatpush1.bf16.msra.mxu0 0
    %2685 = vmatprep.subr.bf16.mxu0 0
    %2686 = vmatpush1.bf16.msra.mxu0 0
    %2687 = vmatprep.subr.bf16.mxu0 0
    %2688 = vmatpush1.bf16.msra.mxu0 0
    %2689 = vmatprep.mubr.bf16.mxu0 0
    %2690 = vmatmul.mubr.bf16.gmra.mrb[0].mxu0 %v2655
    %v2691 = vpop.f32.mrb[0].mxu0
    %v2692 = vadd.f32 0.0, %v2691
    %v2693 = vpop.f32.mrb[0].mxu0
    %v2694 = vpop.f32.mrb[0].mxu0
    %v2695 = vpop.f32.mrb[0].mxu0
    %2696 = vdwg.mxu0
    %2698 = vrot.lane.b32.xlu0 %v2649, 64
    %v2699 = vpop.permute.xlu0 %2698
    %v2701 = vsel %vm414, %v2699, 0
    %2703 = vmatprep.subr.bf16.mxu0 0
    %2704 = vmatpush1.bf16.msra.mxu0 %v2127
    %2705 = vmatprep.subr.bf16.mxu0 0
    %2706 = vmatpush1.bf16.msra.mxu0 %v2128
    %2707 = vmatprep.subr.bf16.mxu0 0
    %2708 = vmatpush1.bf16.msra.mxu0 0
    %2709 = vmatprep.subr.bf16.mxu0 0
    %2710 = vmatpush1.bf16.msra.mxu0 0
    %2711 = vmatprep.subr.bf16.mxu0 0
    %2712 = vmatpush1.bf16.msra.mxu0 0
    %2713 = vmatprep.subr.bf16.mxu0 0
    %2714 = vmatpush1.bf16.msra.mxu0 0
    %2715 = vmatprep.subr.bf16.mxu0 0
    %2716 = vmatpush1.bf16.msra.mxu0 0
    %2717 = vmatprep.subr.bf16.mxu0 0
    %2718 = vmatpush1.bf16.msra.mxu0 0
    %2719 = vmatprep.subr.bf16.mxu0 0
    %2720 = vmatpush1.bf16.msra.mxu0 0
    %2721 = vmatprep.subr.bf16.mxu0 0
    %2722 = vmatpush1.bf16.msra.mxu0 0
    %2723 = vmatprep.subr.bf16.mxu0 0
    %2724 = vmatpush1.bf16.msra.mxu0 0
    %2725 = vmatprep.subr.bf16.mxu0 0
    %2726 = vmatpush1.bf16.msra.mxu0 0
    %2727 = vmatprep.subr.bf16.mxu0 0
    %2728 = vmatpush1.bf16.msra.mxu0 0
    %2729 = vmatprep.subr.bf16.mxu0 0
    %2730 = vmatpush1.bf16.msra.mxu0 0
    %2731 = vmatprep.subr.bf16.mxu0 0
    %2732 = vmatpush1.bf16.msra.mxu0 0
    %2733 = vmatprep.subr.bf16.mxu0 0
    %2734 = vmatpush1.bf16.msra.mxu0 0
    %2735 = vmatprep.mubr.bf16.mxu0 0
    %2736 = vmatmul.mubr.bf16.gmra.mrb[0].mxu0 %v2701
    %v2737 = vpop.f32.mrb[0].mxu0
    %v2738 = vadd.f32 %v2692, %v2737
    %v2739 = vpop.f32.mrb[0].mxu0
    %v2740 = vpop.f32.mrb[0].mxu0
    %v2741 = vpop.f32.mrb[0].mxu0
    %2742 = vdwg.mxu0
    %v2743 = vadd.f32 %v2738, %v286
    %v2744 = vxor.u32 %v2743, 2147483648
    %v2745 = vmul.f32 %v2744, 1.442695
    %v2746 = vpow.pop %v2745
    %v2747 = vadd.f32 %v2746, 1.0
    %v2748 = vrcp.pop %v2747
    %v2749 = vmul.f32 1.0, %v2748
    %v2750 = vtanh.pop %v2743
    %v2751 = vmul.f32 %v2749, %v2571
    %2753 = vrot.lane.b32.xlu0 %v2750, 32
    %v2754 = vpop.permute.xlu0 %2753
    %v2756 = vmul.f32 %v2749, %v2754
    %2758 = vrot.lane.b32.xlu0 %v2756, 32
    %v2759 = vpop.permute.xlu0 %2758
    %v2761 = vadd.f32 %v2751, %v2759
    %v2762 = vtanh.pop %v2761
    %2764 = vrot.lane.b32.xlu0 %v2762, 32
    %v2765 = vpop.permute.xlu0 %2764
    %v2767 = vmul.f32 %v2749, %v2765
    %2769 = vrot.lane.b32.xlu0 %v2767, 64
    %v2770 = vpop.permute.xlu0 %2769
    %s2772 = scalar_lea.vmem [#allocation3], 24
    %2773 = vst.msk [vmem:[%s2772] sm:$0xff] %vm414, %v2770
    %2774 = vmatprep.subr.bf16.mxu0 0
    %2775 = vmatpush1.bf16.msra.mxu0 %v1994
    %2776 = vmatprep.subr.bf16.mxu0 0
    %2777 = vmatpush1.bf16.msra.mxu0 %v1995
    %2778 = vmatprep.subr.bf16.mxu0 0
    %2779 = vmatpush1.bf16.msra.mxu0 0
    %2780 = vmatprep.subr.bf16.mxu0 0
    %2781 = vmatpush1.bf16.msra.mxu0 0
    %2782 = vmatprep.subr.bf16.mxu0 0
    %2783 = vmatpush1.bf16.msra.mxu0 0
    %2784 = vmatprep.subr.bf16.mxu0 0
    %2785 = vmatpush1.bf16.msra.mxu0 0
    %2786 = vmatprep.subr.bf16.mxu0 0
    %2787 = vmatpush1.bf16.msra.mxu0 0
    %2788 = vmatprep.subr.bf16.mxu0 0
    %2789 = vmatpush1.bf16.msra.mxu0 0
    %2790 = vmatprep.subr.bf16.mxu0 0
    %2791 = vmatpush1.bf16.msra.mxu0 0
    %2792 = vmatprep.subr.bf16.mxu0 0
    %2793 = vmatpush1.bf16.msra.mxu0 0
    %2794 = vmatprep.subr.bf16.mxu0 0
    %2795 = vmatpush1.bf16.msra.mxu0 0
    %2796 = vmatprep.subr.bf16.mxu0 0
    %2797 = vmatpush1.bf16.msra.mxu0 0
    %2798 = vmatprep.subr.bf16.mxu0 0
    %2799 = vmatpush1.bf16.msra.mxu0 0
    %2800 = vmatprep.subr.bf16.mxu0 0
    %2801 = vmatpush1.bf16.msra.mxu0 0
    %2802 = vmatprep.subr.bf16.mxu0 0
    %2803 = vmatpush1.bf16.msra.mxu0 0
    %2804 = vmatprep.subr.bf16.mxu0 0
    %2805 = vmatpush1.bf16.msra.mxu0 0
    %2806 = vmatprep.mubr.bf16.mxu0 0
    %2807 = vmatmul.mubr.bf16.gmra.mrb[0].mxu0 %v2701
    %v2808 = vpop.f32.mrb[0].mxu0
    %v2809 = vadd.f32 0.0, %v2808
    %v2810 = vpop.f32.mrb[0].mxu0
    %v2811 = vpop.f32.mrb[0].mxu0
    %v2812 = vpop.f32.mrb[0].mxu0
    %2813 = vdwg.mxu0
    %v2814 = vadd.f32 %v1981, %v2809
    %v2815 = vxor.u32 %v2814, 2147483648
    %v2816 = vmul.f32 %v2815, 1.442695
    %v2817 = vpow.pop %v2816
    %v2818 = vadd.f32 %v2817, 1.0
    %v2819 = vrcp.pop %v2818
    %v2820 = vmul.f32 1.0, %v2819
    %v2821 = vtanh.pop %v2814
    %v2822 = vmul.f32 %v2820, %v2642
    %2824 = vrot.lane.b32.xlu0 %v2821, 32
    %v2825 = vpop.permute.xlu0 %2824
    %v2827 = vmul.f32 %v2820, %v2825
    %2829 = vrot.lane.b32.xlu0 %v2827, 32
    %v2830 = vpop.permute.xlu0 %2829
    %v2832 = vadd.f32 %v2822, %v2830
    %v2833 = vtanh.pop %v2832
    %2835 = vrot.lane.b32.xlu0 %v2833, 32
    %v2836 = vpop.permute.xlu0 %2835
    %v2838 = vmul.f32 %v2820, %v2836
    %v2839 = vpack.c.bf16 %v2838, %v2838
    %v2840 = vpack.c.bf16 %v2767, %v2767
    %2842 = vrot.lane.b32.xlu0 %v2840, 64
    %v2843 = vpop.permute.xlu0 %2842
    %v2845 = vsel %vm414, %v2843, 0
    %2847 = vmatprep.subr.bf16.mxu0 0
    %2848 = vmatpush1.bf16.msra.mxu0 %v2072
    %2849 = vmatprep.subr.bf16.mxu0 0
    %2850 = vmatpush1.bf16.msra.mxu0 %v2073
    %2851 = vmatprep.subr.bf16.mxu0 0
    %2852 = vmatpush1.bf16.msra.mxu0 0
    %2853 = vmatprep.subr.bf16.mxu0 0
    %2854 = vmatpush1.bf16.msra.mxu0 0
    %2855 = vmatprep.subr.bf16.mxu0 0
    %2856 = vmatpush1.bf16.msra.mxu0 0
    %2857 = vmatprep.subr.bf16.mxu0 0
    %2858 = vmatpush1.bf16.msra.mxu0 0
    %2859 = vmatprep.subr.bf16.mxu0 0
    %2860 = vmatpush1.bf16.msra.mxu0 0
    %2861 = vmatprep.subr.bf16.mxu0 0
    %2862 = vmatpush1.bf16.msra.mxu0 0
    %2863 = vmatprep.subr.bf16.mxu0 0
    %2864 = vmatpush1.bf16.msra.mxu0 0
    %2865 = vmatprep.subr.bf16.mxu0 0
    %2866 = vmatpush1.bf16.msra.mxu0 0
    %2867 = vmatprep.subr.bf16.mxu0 0
    %2868 = vmatpush1.bf16.msra.mxu0 0
    %2869 = vmatprep.subr.bf16.mxu0 0
    %2870 = vmatpush1.bf16.msra.mxu0 0
    %2871 = vmatprep.subr.bf16.mxu0 0
    %2872 = vmatpush1.bf16.msra.mxu0 0
    %2873 = vmatprep.subr.bf16.mxu0 0
    %2874 = vmatpush1.bf16.msra.mxu0 0
    %2875 = vmatprep.subr.bf16.mxu0 0
    %2876 = vmatpush1.bf16.msra.mxu0 0
    %2877 = vmatprep.subr.bf16.mxu0 0
    %2878 = vmatpush1.bf16.msra.mxu0 0
    %2879 = vmatprep.mubr.bf16.mxu0 0
    %2880 = vmatmul.mubr.bf16.gmra.mrb[0].mxu0 %v2845
    %v2881 = vpop.f32.mrb[0].mxu0
    %v2882 = vadd.f32 0.0, %v2881
    %v2883 = vpop.f32.mrb[0].mxu0
    %v2884 = vpop.f32.mrb[0].mxu0
    %v2885 = vpop.f32.mrb[0].mxu0
    %2886 = vdwg.mxu0
    %2888 = vrot.lane.b32.xlu0 %v2839, 64
    %v2889 = vpop.permute.xlu0 %2888
    %v2891 = vsel %vm414, %v2889, 0
    %2893 = vmatprep.subr.bf16.mxu0 0
    %2894 = vmatpush1.bf16.msra.mxu0 %v2127
    %2895 = vmatprep.subr.bf16.mxu0 0
    %2896 = vmatpush1.bf16.msra.mxu0 %v2128
    %2897 = vmatprep.subr.bf16.mxu0 0
    %2898 = vmatpush1.bf16.msra.mxu0 0
    %2899 = vmatprep.subr.bf16.mxu0 0
    %2900 = vmatpush1.bf16.msra.mxu0 0
    %2901 = vmatprep.subr.bf16.mxu0 0
    %2902 = vmatpush1.bf16.msra.mxu0 0
    %2903 = vmatprep.subr.bf16.mxu0 0
    %2904 = vmatpush1.bf16.msra.mxu0 0
    %2905 = vmatprep.subr.bf16.mxu0 0
    %2906 = vmatpush1.bf16.msra.mxu0 0
    %2907 = vmatprep.subr.bf16.mxu0 0
    %2908 = vmatpush1.bf16.msra.mxu0 0
    %2909 = vmatprep.subr.bf16.mxu0 0
    %2910 = vmatpush1.bf16.msra.mxu0 0
    %2911 = vmatprep.subr.bf16.mxu0 0
    %2912 = vmatpush1.bf16.msra.mxu0 0
    %2913 = vmatprep.subr.bf16.mxu0 0
    %2914 = vmatpush1.bf16.msra.mxu0 0
    %2915 = vmatprep.subr.bf16.mxu0 0
    %2916 = vmatpush1.bf16.msra.mxu0 0
    %2917 = vmatprep.subr.bf16.mxu0 0
    %2918 = vmatpush1.bf16.msra.mxu0 0
    %2919 = vmatprep.subr.bf16.mxu0 0
    %2920 = vmatpush1.bf16.msra.mxu0 0
    %2921 = vmatprep.subr.bf16.mxu0 0
    %2922 = vmatpush1.bf16.msra.mxu0 0
    %2923 = vmatprep.subr.bf16.mxu0 0
    %2924 = vmatpush1.bf16.msra.mxu0 0
    %2925 = vmatprep.mubr.bf16.mxu0 0
    %2926 = vmatmul.mubr.bf16.gmra.mrb[0].mxu0 %v2891
    %v2927 = vpop.f32.mrb[0].mxu0
    %v2928 = vadd.f32 %v2882, %v2927
    %v2929 = vpop.f32.mrb[0].mxu0
    %v2930 = vpop.f32.mrb[0].mxu0
    %v2931 = vpop.f32.mrb[0].mxu0
    %2932 = vdwg.mxu0
    %v2933 = vadd.f32 %v2928, %v286
    %v2934 = vxor.u32 %v2933, 2147483648
    %v2935 = vmul.f32 %v2934, 1.442695
    %v2936 = vpow.pop %v2935
    %v2937 = vadd.f32 %v2936, 1.0
    %v2938 = vrcp.pop %v2937
    %v2939 = vmul.f32 1.0, %v2938
    %v2940 = vtanh.pop %v2933
    %v2941 = vmul.f32 %v2939, %v2761
    %2943 = vrot.lane.b32.xlu0 %v2940, 32
    %v2944 = vpop.permute.xlu0 %2943
    %v2946 = vmul.f32 %v2939, %v2944
    %2948 = vrot.lane.b32.xlu0 %v2946, 32
    %v2949 = vpop.permute.xlu0 %2948
    %v2951 = vadd.f32 %v2941, %v2949
    %v2952 = vtanh.pop %v2951
    %2954 = vrot.lane.b32.xlu0 %v2952, 32
    %v2955 = vpop.permute.xlu0 %2954
    %v2957 = vmul.f32 %v2939, %v2955
    %2959 = vrot.lane.b32.xlu0 %v2957, 64
    %v2960 = vpop.permute.xlu0 %2959
    %s2962 = scalar_lea.vmem [#allocation3], 32
    %2963 = vst.msk [vmem:[%s2962] sm:$0xff] %vm414, %v2960
    %2964 = vmatprep.subr.bf16.mxu0 0
    %2965 = vmatpush1.bf16.msra.mxu0 %v1994
    %2966 = vmatprep.subr.bf16.mxu0 0
    %2967 = vmatpush1.bf16.msra.mxu0 %v1995
    %2968 = vmatprep.subr.bf16.mxu0 0
    %2969 = vmatpush1.bf16.msra.mxu0 0
    %2970 = vmatprep.subr.bf16.mxu0 0
    %2971 = vmatpush1.bf16.msra.mxu0 0
    %2972 = vmatprep.subr.bf16.mxu0 0
    %2973 = vmatpush1.bf16.msra.mxu0 0
    %2974 = vmatprep.subr.bf16.mxu0 0
    %2975 = vmatpush1.bf16.msra.mxu0 0
    %2976 = vmatprep.subr.bf16.mxu0 0
    %2977 = vmatpush1.bf16.msra.mxu0 0
    %2978 = vmatprep.subr.bf16.mxu0 0
    %2979 = vmatpush1.bf16.msra.mxu0 0
    %2980 = vmatprep.subr.bf16.mxu0 0
    %2981 = vmatpush1.bf16.msra.mxu0 0
    %2982 = vmatprep.subr.bf16.mxu0 0
    %2983 = vmatpush1.bf16.msra.mxu0 0
    %2984 = vmatprep.subr.bf16.mxu0 0
    %2985 = vmatpush1.bf16.msra.mxu0 0
    %2986 = vmatprep.subr.bf16.mxu0 0
    %2987 = vmatpush1.bf16.msra.mxu0 0
    %2988 = vmatprep.subr.bf16.mxu0 0
    %2989 = vmatpush1.bf16.msra.mxu0 0
    %2990 = vmatprep.subr.bf16.mxu0 0
    %2991 = vmatpush1.bf16.msra.mxu0 0
    %2992 = vmatprep.subr.bf16.mxu0 0
    %2993 = vmatpush1.bf16.msra.mxu0 0
    %2994 = vmatprep.subr.bf16.mxu0 0
    %2995 = vmatpush1.bf16.msra.mxu0 0
    %2996 = vmatprep.mubr.bf16.mxu0 0
    %2997 = vmatmul.mubr.bf16.gmra.mrb[0].mxu0 %v2891
    %v2998 = vpop.f32.mrb[0].mxu0
    %v2999 = vadd.f32 0.0, %v2998
    %v3000 = vpop.f32.mrb[0].mxu0
    %v3001 = vpop.f32.mrb[0].mxu0
    %v3002 = vpop.f32.mrb[0].mxu0
    %3003 = vdwg.mxu0
    %v3004 = vadd.f32 %v1981, %v2999
    %v3005 = vxor.u32 %v3004, 2147483648
    %v3006 = vmul.f32 %v3005, 1.442695
    %v3007 = vpow.pop %v3006
    %v3008 = vadd.f32 %v3007, 1.0
    %v3009 = vrcp.pop %v3008
    %v3010 = vmul.f32 1.0, %v3009
    %v3011 = vtanh.pop %v3004
    %v3012 = vmul.f32 %v3010, %v2832
    %3014 = vrot.lane.b32.xlu0 %v3011, 32
    %v3015 = vpop.permute.xlu0 %3014
    %v3017 = vmul.f32 %v3010, %v3015
    %3019 = vrot.lane.b32.xlu0 %v3017, 32
    %v3020 = vpop.permute.xlu0 %3019
    %v3022 = vadd.f32 %v3012, %v3020
    %v3023 = vtanh.pop %v3022
    %3025 = vrot.lane.b32.xlu0 %v3023, 32
    %v3026 = vpop.permute.xlu0 %3025
    %v3028 = vmul.f32 %v3010, %v3026
    %v3029 = vpack.c.bf16 %v3028, %v3028
    %v3030 = vpack.c.bf16 %v2957, %v2957
    %3032 = vrot.lane.b32.xlu0 %v3030, 64
    %v3033 = vpop.permute.xlu0 %3032
    %v3035 = vsel %vm414, %v3033, 0
    %3037 = vmatprep.subr.bf16.mxu0 0
    %3038 = vmatpush1.bf16.msra.mxu0 %v2072
    %3039 = vmatprep.subr.bf16.mxu0 0
    %3040 = vmatpush1.bf16.msra.mxu0 %v2073
    %3041 = vmatprep.subr.bf16.mxu0 0
    %3042 = vmatpush1.bf16.msra.mxu0 0
    %3043 = vmatprep.subr.bf16.mxu0 0
    %3044 = vmatpush1.bf16.msra.mxu0 0
    %3045 = vmatprep.subr.bf16.mxu0 0
    %3046 = vmatpush1.bf16.msra.mxu0 0
    %3047 = vmatprep.subr.bf16.mxu0 0
    %3048 = vmatpush1.bf16.msra.mxu0 0
    %3049 = vmatprep.subr.bf16.mxu0 0
    %3050 = vmatpush1.bf16.msra.mxu0 0
    %3051 = vmatprep.subr.bf16.mxu0 0
    %3052 = vmatpush1.bf16.msra.mxu0 0
    %3053 = vmatprep.subr.bf16.mxu0 0
    %3054 = vmatpush1.bf16.msra.mxu0 0
    %3055 = vmatprep.subr.bf16.mxu0 0
    %3056 = vmatpush1.bf16.msra.mxu0 0
    %3057 = vmatprep.subr.bf16.mxu0 0
    %3058 = vmatpush1.bf16.msra.mxu0 0
    %3059 = vmatprep.subr.bf16.mxu0 0
    %3060 = vmatpush1.bf16.msra.mxu0 0
    %3061 = vmatprep.subr.bf16.mxu0 0
    %3062 = vmatpush1.bf16.msra.mxu0 0
    %3063 = vmatprep.subr.bf16.mxu0 0
    %3064 = vmatpush1.bf16.msra.mxu0 0
    %3065 = vmatprep.subr.bf16.mxu0 0
    %3066 = vmatpush1.bf16.msra.mxu0 0
    %3067 = vmatprep.subr.bf16.mxu0 0
    %3068 = vmatpush1.bf16.msra.mxu0 0
    %3069 = vmatprep.mubr.bf16.mxu0 0
    %3070 = vmatmul.mubr.bf16.gmra.mrb[0].mxu0 %v3035
    %v3071 = vpop.f32.mrb[0].mxu0
    %v3072 = vadd.f32 0.0, %v3071
    %v3073 = vpop.f32.mrb[0].mxu0
    %v3074 = vpop.f32.mrb[0].mxu0
    %v3075 = vpop.f32.mrb[0].mxu0
    %3076 = vdwg.mxu0
    %3078 = vrot.lane.b32.xlu0 %v3029, 64
    %v3079 = vpop.permute.xlu0 %3078
    %v3081 = vsel %vm414, %v3079, 0
    %3083 = vmatprep.subr.bf16.mxu0 0
    %3084 = vmatpush1.bf16.msra.mxu0 %v2127
    %3085 = vmatprep.subr.bf16.mxu0 0
    %3086 = vmatpush1.bf16.msra.mxu0 %v2128
    %3087 = vmatprep.subr.bf16.mxu0 0
    %3088 = vmatpush1.bf16.msra.mxu0 0
    %3089 = vmatprep.subr.bf16.mxu0 0
    %3090 = vmatpush1.bf16.msra.mxu0 0
    %3091 = vmatprep.subr.bf16.mxu0 0
    %3092 = vmatpush1.bf16.msra.mxu0 0
    %3093 = vmatprep.subr.bf16.mxu0 0
    %3094 = vmatpush1.bf16.msra.mxu0 0
    %3095 = vmatprep.subr.bf16.mxu0 0
    %3096 = vmatpush1.bf16.msra.mxu0 0
    %3097 = vmatprep.subr.bf16.mxu0 0
    %3098 = vmatpush1.bf16.msra.mxu0 0
    %3099 = vmatprep.subr.bf16.mxu0 0
    %3100 = vmatpush1.bf16.msra.mxu0 0
    %3101 = vmatprep.subr.bf16.mxu0 0
    %3102 = vmatpush1.bf16.msra.mxu0 0
    %3103 = vmatprep.subr.bf16.mxu0 0
    %3104 = vmatpush1.bf16.msra.mxu0 0
    %3105 = vmatprep.subr.bf16.mxu0 0
    %3106 = vmatpush1.bf16.msra.mxu0 0
    %3107 = vmatprep.subr.bf16.mxu0 0
    %3108 = vmatpush1.bf16.msra.mxu0 0
    %3109 = vmatprep.subr.bf16.mxu0 0
    %3110 = vmatpush1.bf16.msra.mxu0 0
    %3111 = vmatprep.subr.bf16.mxu0 0
    %3112 = vmatpush1.bf16.msra.mxu0 0
    %3113 = vmatprep.subr.bf16.mxu0 0
    %3114 = vmatpush1.bf16.msra.mxu0 0
    %3115 = vmatprep.mubr.bf16.mxu0 0
    %3116 = vmatmul.mubr.bf16.gmra.mrb[0].mxu0 %v3081
    %v3117 = vpop.f32.mrb[0].mxu0
    %v3118 = vadd.f32 %v3072, %v3117
    %v3119 = vpop.f32.mrb[0].mxu0
    %v3120 = vpop.f32.mrb[0].mxu0
    %v3121 = vpop.f32.mrb[0].mxu0
    %3122 = vdwg.mxu0
    %v3123 = vadd.f32 %v3118, %v286
    %v3124 = vxor.u32 %v3123, 2147483648
    %v3125 = vmul.f32 %v3124, 1.442695
    %v3126 = vpow.pop %v3125
    %v3127 = vadd.f32 %v3126, 1.0
    %v3128 = vrcp.pop %v3127
    %v3129 = vmul.f32 1.0, %v3128
    %v3130 = vtanh.pop %v3123
    %v3131 = vmul.f32 %v3129, %v2951
    %3133 = vrot.lane.b32.xlu0 %v3130, 32
    %v3134 = vpop.permute.xlu0 %3133
    %v3136 = vmul.f32 %v3129, %v3134
    %3138 = vrot.lane.b32.xlu0 %v3136, 32
    %v3139 = vpop.permute.xlu0 %3138
    %v3141 = vadd.f32 %v3131, %v3139
    %v3142 = vtanh.pop %v3141
    %3144 = vrot.lane.b32.xlu0 %v3142, 32
    %v3145 = vpop.permute.xlu0 %3144
    %v3147 = vmul.f32 %v3129, %v3145
    %3149 = vrot.lane.b32.xlu0 %v3147, 64
    %v3150 = vpop.permute.xlu0 %3149
    %s3152 = scalar_lea.vmem [#allocation3], 40
    %3153 = vst.msk [vmem:[%s3152] sm:$0xff] %vm414, %v3150
    %3154 = vmatprep.subr.bf16.mxu0 0
    %3155 = vmatpush1.bf16.msra.mxu0 %v1994
    %3156 = vmatprep.subr.bf16.mxu0 0
    %3157 = vmatpush1.bf16.msra.mxu0 %v1995
    %3158 = vmatprep.subr.bf16.mxu0 0
    %3159 = vmatpush1.bf16.msra.mxu0 0
    %3160 = vmatprep.subr.bf16.mxu0 0
    %3161 = vmatpush1.bf16.msra.mxu0 0
    %3162 = vmatprep.subr.bf16.mxu0 0
    %3163 = vmatpush1.bf16.msra.mxu0 0
    %3164 = vmatprep.subr.bf16.mxu0 0
    %3165 = vmatpush1.bf16.msra.mxu0 0
    %3166 = vmatprep.subr.bf16.mxu0 0
    %3167 = vmatpush1.bf16.msra.mxu0 0
    %3168 = vmatprep.subr.bf16.mxu0 0
    %3169 = vmatpush1.bf16.msra.mxu0 0
    %3170 = vmatprep.subr.bf16.mxu0 0
    %3171 = vmatpush1.bf16.msra.mxu0 0
    %3172 = vmatprep.subr.bf16.mxu0 0
    %3173 = vmatpush1.bf16.msra.mxu0 0
    %3174 = vmatprep.subr.bf16.mxu0 0
    %3175 = vmatpush1.bf16.msra.mxu0 0
    %3176 = vmatprep.subr.bf16.mxu0 0
    %3177 = vmatpush1.bf16.msra.mxu0 0
    %3178 = vmatprep.subr.bf16.mxu0 0
    %3179 = vmatpush1.bf16.msra.mxu0 0
    %3180 = vmatprep.subr.bf16.mxu0 0
    %3181 = vmatpush1.bf16.msra.mxu0 0
    %3182 = vmatprep.subr.bf16.mxu0 0
    %3183 = vmatpush1.bf16.msra.mxu0 0
    %3184 = vmatprep.subr.bf16.mxu0 0
    %3185 = vmatpush1.bf16.msra.mxu0 0
    %3186 = vmatprep.mubr.bf16.mxu0 0
    %3187 = vmatmul.mubr.bf16.gmra.mrb[0].mxu0 %v3081
    %v3188 = vpop.f32.mrb[0].mxu0
    %v3189 = vadd.f32 0.0, %v3188
    %v3190 = vpop.f32.mrb[0].mxu0
    %v3191 = vpop.f32.mrb[0].mxu0
    %v3192 = vpop.f32.mrb[0].mxu0
    %3193 = vdwg.mxu0
    %v3194 = vadd.f32 %v1981, %v3189
    %v3195 = vxor.u32 %v3194, 2147483648
    %v3196 = vmul.f32 %v3195, 1.442695
    %v3197 = vpow.pop %v3196
    %v3198 = vadd.f32 %v3197, 1.0
    %v3199 = vrcp.pop %v3198
    %v3200 = vmul.f32 1.0, %v3199
    %v3201 = vtanh.pop %v3194
    %v3202 = vmul.f32 %v3200, %v3022
    %3204 = vrot.lane.b32.xlu0 %v3201, 32
    %v3205 = vpop.permute.xlu0 %3204
    %v3207 = vmul.f32 %v3200, %v3205
    %3209 = vrot.lane.b32.xlu0 %v3207, 32
    %v3210 = vpop.permute.xlu0 %3209
    %v3212 = vadd.f32 %v3202, %v3210
    %v3213 = vtanh.pop %v3212
    %3215 = vrot.lane.b32.xlu0 %v3213, 32
    %v3216 = vpop.permute.xlu0 %3215
    %v3218 = vmul.f32 %v3200, %v3216
    %v3219 = vpack.c.bf16 %v3218, %v3218
    %v3220 = vpack.c.bf16 %v3147, %v3147
    %3222 = vrot.lane.b32.xlu0 %v3220, 64
    %v3223 = vpop.permute.xlu0 %3222
    %v3225 = vsel %vm414, %v3223, 0
    %3227 = vmatprep.subr.bf16.mxu0 0
    %3228 = vmatpush1.bf16.msra.mxu0 %v2072
    %3229 = vmatprep.subr.bf16.mxu0 0
    %3230 = vmatpush1.bf16.msra.mxu0 %v2073
    %3231 = vmatprep.subr.bf16.mxu0 0
    %3232 = vmatpush1.bf16.msra.mxu0 0
    %3233 = vmatprep.subr.bf16.mxu0 0
    %3234 = vmatpush1.bf16.msra.mxu0 0
    %3235 = vmatprep.subr.bf16.mxu0 0
    %3236 = vmatpush1.bf16.msra.mxu0 0
    %3237 = vmatprep.subr.bf16.mxu0 0
    %3238 = vmatpush1.bf16.msra.mxu0 0
    %3239 = vmatprep.subr.bf16.mxu0 0
    %3240 = vmatpush1.bf16.msra.mxu0 0
    %3241 = vmatprep.subr.bf16.mxu0 0
    %3242 = vmatpush1.bf16.msra.mxu0 0
    %3243 = vmatprep.subr.bf16.mxu0 0
    %3244 = vmatpush1.bf16.msra.mxu0 0
    %3245 = vmatprep.subr.bf16.mxu0 0
    %3246 = vmatpush1.bf16.msra.mxu0 0
    %3247 = vmatprep.subr.bf16.mxu0 0
    %3248 = vmatpush1.bf16.msra.mxu0 0
    %3249 = vmatprep.subr.bf16.mxu0 0
    %3250 = vmatpush1.bf16.msra.mxu0 0
    %3251 = vmatprep.subr.bf16.mxu0 0
    %3252 = vmatpush1.bf16.msra.mxu0 0
    %3253 = vmatprep.subr.bf16.mxu0 0
    %3254 = vmatpush1.bf16.msra.mxu0 0
    %3255 = vmatprep.subr.bf16.mxu0 0
    %3256 = vmatpush1.bf16.msra.mxu0 0
    %3257 = vmatprep.subr.bf16.mxu0 0
    %3258 = vmatpush1.bf16.msra.mxu0 0
    %3259 = vmatprep.mubr.bf16.mxu0 0
    %3260 = vmatmul.mubr.bf16.gmra.mrb[0].mxu0 %v3225
    %v3261 = vpop.f32.mrb[0].mxu0
    %v3262 = vadd.f32 0.0, %v3261
    %v3263 = vpop.f32.mrb[0].mxu0
    %v3264 = vpop.f32.mrb[0].mxu0
    %v3265 = vpop.f32.mrb[0].mxu0
    %3266 = vdwg.mxu0
    %3268 = vrot.lane.b32.xlu0 %v3219, 64
    %v3269 = vpop.permute.xlu0 %3268
    %v3271 = vsel %vm414, %v3269, 0
    %3273 = vmatprep.subr.bf16.mxu0 0
    %3274 = vmatpush1.bf16.msra.mxu0 %v2127
    %3275 = vmatprep.subr.bf16.mxu0 0
    %3276 = vmatpush1.bf16.msra.mxu0 %v2128
    %3277 = vmatprep.subr.bf16.mxu0 0
    %3278 = vmatpush1.bf16.msra.mxu0 0
    %3279 = vmatprep.subr.bf16.mxu0 0
    %3280 = vmatpush1.bf16.msra.mxu0 0
    %3281 = vmatprep.subr.bf16.mxu0 0
    %3282 = vmatpush1.bf16.msra.mxu0 0
    %3283 = vmatprep.subr.bf16.mxu0 0
    %3284 = vmatpush1.bf16.msra.mxu0 0
    %3285 = vmatprep.subr.bf16.mxu0 0
    %3286 = vmatpush1.bf16.msra.mxu0 0
    %3287 = vmatprep.subr.bf16.mxu0 0
    %3288 = vmatpush1.bf16.msra.mxu0 0
    %3289 = vmatprep.subr.bf16.mxu0 0
    %3290 = vmatpush1.bf16.msra.mxu0 0
    %3291 = vmatprep.subr.bf16.mxu0 0
    %3292 = vmatpush1.bf16.msra.mxu0 0
    %3293 = vmatprep.subr.bf16.mxu0 0
    %3294 = vmatpush1.bf16.msra.mxu0 0
    %3295 = vmatprep.subr.bf16.mxu0 0
    %3296 = vmatpush1.bf16.msra.mxu0 0
    %3297 = vmatprep.subr.bf16.mxu0 0
    %3298 = vmatpush1.bf16.msra.mxu0 0
    %3299 = vmatprep.subr.bf16.mxu0 0
    %3300 = vmatpush1.bf16.msra.mxu0 0
    %3301 = vmatprep.subr.bf16.mxu0 0
    %3302 = vmatpush1.bf16.msra.mxu0 0
    %3303 = vmatprep.subr.bf16.mxu0 0
    %3304 = vmatpush1.bf16.msra.mxu0 0
    %3305 = vmatprep.mubr.bf16.mxu0 0
    %3306 = vmatmul.mubr.bf16.gmra.mrb[0].mxu0 %v3271
    %v3307 = vpop.f32.mrb[0].mxu0
    %v3308 = vadd.f32 %v3262, %v3307
    %v3309 = vpop.f32.mrb[0].mxu0
    %v3310 = vpop.f32.mrb[0].mxu0
    %v3311 = vpop.f32.mrb[0].mxu0
    %3312 = vdwg.mxu0
    %v3313 = vadd.f32 %v3308, %v286
    %v3314 = vxor.u32 %v3313, 2147483648
    %v3315 = vmul.f32 %v3314, 1.442695
    %v3316 = vpow.pop %v3315
    %v3317 = vadd.f32 %v3316, 1.0
    %v3318 = vrcp.pop %v3317
    %v3319 = vmul.f32 1.0, %v3318
    %v3320 = vtanh.pop %v3313
    %v3321 = vmul.f32 %v3319, %v3141
    %3323 = vrot.lane.b32.xlu0 %v3320, 32
    %v3324 = vpop.permute.xlu0 %3323
    %v3326 = vmul.f32 %v3319, %v3324
    %3328 = vrot.lane.b32.xlu0 %v3326, 32
    %v3329 = vpop.permute.xlu0 %3328
    %v3331 = vadd.f32 %v3321, %v3329
    %v3332 = vtanh.pop %v3331
    %3334 = vrot.lane.b32.xlu0 %v3332, 32
    %v3335 = vpop.permute.xlu0 %3334
    %v3337 = vmul.f32 %v3319, %v3335
    %3339 = vrot.lane.b32.xlu0 %v3337, 64
    %v3340 = vpop.permute.xlu0 %3339
    %s3342 = scalar_lea.vmem [#allocation3], 48
    %3343 = vst.msk [vmem:[%s3342] sm:$0xff] %vm414, %v3340
    %3344 = vmatprep.subr.bf16.mxu0 0
    %3345 = vmatpush1.bf16.msra.mxu0 %v1994
    %3346 = vmatprep.subr.bf16.mxu0 0
    %3347 = vmatpush1.bf16.msra.mxu0 %v1995
    %3348 = vmatprep.subr.bf16.mxu0 0
    %3349 = vmatpush1.bf16.msra.mxu0 0
    %3350 = vmatprep.subr.bf16.mxu0 0
    %3351 = vmatpush1.bf16.msra.mxu0 0
    %3352 = vmatprep.subr.bf16.mxu0 0
    %3353 = vmatpush1.bf16.msra.mxu0 0
    %3354 = vmatprep.subr.bf16.mxu0 0
    %3355 = vmatpush1.bf16.msra.mxu0 0
    %3356 = vmatprep.subr.bf16.mxu0 0
    %3357 = vmatpush1.bf16.msra.mxu0 0
    %3358 = vmatprep.subr.bf16.mxu0 0
    %3359 = vmatpush1.bf16.msra.mxu0 0
    %3360 = vmatprep.subr.bf16.mxu0 0
    %3361 = vmatpush1.bf16.msra.mxu0 0
    %3362 = vmatprep.subr.bf16.mxu0 0
    %3363 = vmatpush1.bf16.msra.mxu0 0
    %3364 = vmatprep.subr.bf16.mxu0 0
    %3365 = vmatpush1.bf16.msra.mxu0 0
    %3366 = vmatprep.subr.bf16.mxu0 0
    %3367 = vmatpush1.bf16.msra.mxu0 0
    %3368 = vmatprep.subr.bf16.mxu0 0
    %3369 = vmatpush1.bf16.msra.mxu0 0
    %3370 = vmatprep.subr.bf16.mxu0 0
    %3371 = vmatpush1.bf16.msra.mxu0 0
    %3372 = vmatprep.subr.bf16.mxu0 0
    %3373 = vmatpush1.bf16.msra.mxu0 0
    %3374 = vmatprep.subr.bf16.mxu0 0
    %3375 = vmatpush1.bf16.msra.mxu0 0
    %3376 = vmatprep.mubr.bf16.mxu0 0
    %3377 = vmatmul.mubr.bf16.gmra.mrb[0].mxu0 %v3271
    %v3378 = vpop.f32.mrb[0].mxu0
    %v3379 = vadd.f32 0.0, %v3378
    %v3380 = vpop.f32.mrb[0].mxu0
    %v3381 = vpop.f32.mrb[0].mxu0
    %v3382 = vpop.f32.mrb[0].mxu0
    %3383 = vdwg.mxu0
    %v3384 = vadd.f32 %v1981, %v3379
    %v3385 = vxor.u32 %v3384, 2147483648
    %v3386 = vmul.f32 %v3385, 1.442695
    %v3387 = vpow.pop %v3386
    %v3388 = vadd.f32 %v3387, 1.0
    %v3389 = vrcp.pop %v3388
    %v3390 = vmul.f32 1.0, %v3389
    %v3391 = vtanh.pop %v3384
    %v3392 = vmul.f32 %v3390, %v3212
    %3394 = vrot.lane.b32.xlu0 %v3391, 32
    %v3395 = vpop.permute.xlu0 %3394
    %v3397 = vmul.f32 %v3390, %v3395
    %3399 = vrot.lane.b32.xlu0 %v3397, 32
    %v3400 = vpop.permute.xlu0 %3399
    %v3402 = vadd.f32 %v3392, %v3400
    %v3403 = vtanh.pop %v3402
    %3405 = vrot.lane.b32.xlu0 %v3403, 32
    %v3406 = vpop.permute.xlu0 %3405
    %v3408 = vmul.f32 %v3390, %v3406
    %v3409 = vpack.c.bf16 %v3408, %v3408
    %v3410 = vpack.c.bf16 %v3337, %v3337
    %3412 = vrot.lane.b32.xlu0 %v3410, 64
    %v3413 = vpop.permute.xlu0 %3412
    %v3415 = vsel %vm414, %v3413, 0
    %3417 = vmatprep.subr.bf16.mxu0 0
    %3418 = vmatpush1.bf16.msra.mxu0 %v2072
    %3419 = vmatprep.subr.bf16.mxu0 0
    %3420 = vmatpush1.bf16.msra.mxu0 %v2073
    %3421 = vmatprep.subr.bf16.mxu0 0
    %3422 = vmatpush1.bf16.msra.mxu0 0
    %3423 = vmatprep.subr.bf16.mxu0 0
    %3424 = vmatpush1.bf16.msra.mxu0 0
    %3425 = vmatprep.subr.bf16.mxu0 0
    %3426 = vmatpush1.bf16.msra.mxu0 0
    %3427 = vmatprep.subr.bf16.mxu0 0
    %3428 = vmatpush1.bf16.msra.mxu0 0
    %3429 = vmatprep.subr.bf16.mxu0 0
    %3430 = vmatpush1.bf16.msra.mxu0 0
    %3431 = vmatprep.subr.bf16.mxu0 0
    %3432 = vmatpush1.bf16.msra.mxu0 0
    %3433 = vmatprep.subr.bf16.mxu0 0
    %3434 = vmatpush1.bf16.msra.mxu0 0
    %3435 = vmatprep.subr.bf16.mxu0 0
    %3436 = vmatpush1.bf16.msra.mxu0 0
    %3437 = vmatprep.subr.bf16.mxu0 0
    %3438 = vmatpush1.bf16.msra.mxu0 0
    %3439 = vmatprep.subr.bf16.mxu0 0
    %3440 = vmatpush1.bf16.msra.mxu0 0
    %3441 = vmatprep.subr.bf16.mxu0 0
    %3442 = vmatpush1.bf16.msra.mxu0 0
    %3443 = vmatprep.subr.bf16.mxu0 0
    %3444 = vmatpush1.bf16.msra.mxu0 0
    %3445 = vmatprep.subr.bf16.mxu0 0
    %3446 = vmatpush1.bf16.msra.mxu0 0
    %3447 = vmatprep.subr.bf16.mxu0 0
    %3448 = vmatpush1.bf16.msra.mxu0 0
    %3449 = vmatprep.mubr.bf16.mxu0 0
    %3450 = vmatmul.mubr.bf16.gmra.mrb[0].mxu0 %v3415
    %v3451 = vpop.f32.mrb[0].mxu0
    %v3452 = vadd.f32 0.0, %v3451
    %v3453 = vpop.f32.mrb[0].mxu0
    %v3454 = vpop.f32.mrb[0].mxu0
    %v3455 = vpop.f32.mrb[0].mxu0
    %3456 = vdwg.mxu0
    %3458 = vrot.lane.b32.xlu0 %v3409, 64
    %v3459 = vpop.permute.xlu0 %3458
    %v3461 = vsel %vm414, %v3459, 0
    %3463 = vmatprep.subr.bf16.mxu0 0
    %3464 = vmatpush1.bf16.msra.mxu0 %v2127
    %3465 = vmatprep.subr.bf16.mxu0 0
    %3466 = vmatpush1.bf16.msra.mxu0 %v2128
    %3467 = vmatprep.subr.bf16.mxu0 0
    %3468 = vmatpush1.bf16.msra.mxu0 0
    %3469 = vmatprep.subr.bf16.mxu0 0
    %3470 = vmatpush1.bf16.msra.mxu0 0
    %3471 = vmatprep.subr.bf16.mxu0 0
    %3472 = vmatpush1.bf16.msra.mxu0 0
    %3473 = vmatprep.subr.bf16.mxu0 0
    %3474 = vmatpush1.bf16.msra.mxu0 0
    %3475 = vmatprep.subr.bf16.mxu0 0
    %3476 = vmatpush1.bf16.msra.mxu0 0
    %3477 = vmatprep.subr.bf16.mxu0 0
    %3478 = vmatpush1.bf16.msra.mxu0 0
    %3479 = vmatprep.subr.bf16.mxu0 0
    %3480 = vmatpush1.bf16.msra.mxu0 0
    %3481 = vmatprep.subr.bf16.mxu0 0
    %3482 = vmatpush1.bf16.msra.mxu0 0
    %3483 = vmatprep.subr.bf16.mxu0 0
    %3484 = vmatpush1.bf16.msra.mxu0 0
    %3485 = vmatprep.subr.bf16.mxu0 0
    %3486 = vmatpush1.bf16.msra.mxu0 0
    %3487 = vmatprep.subr.bf16.mxu0 0
    %3488 = vmatpush1.bf16.msra.mxu0 0
    %3489 = vmatprep.subr.bf16.mxu0 0
    %3490 = vmatpush1.bf16.msra.mxu0 0
    %3491 = vmatprep.subr.bf16.mxu0 0
    %3492 = vmatpush1.bf16.msra.mxu0 0
    %3493 = vmatprep.subr.bf16.mxu0 0
    %3494 = vmatpush1.bf16.msra.mxu0 0
    %3495 = vmatprep.mubr.bf16.mxu0 0
    %3496 = vmatmul.mubr.bf16.gmra.mrb[0].mxu0 %v3461
    %v3497 = vpop.f32.mrb[0].mxu0
    %v3498 = vadd.f32 %v3452, %v3497
    %v3499 = vpop.f32.mrb[0].mxu0
    %v3500 = vpop.f32.mrb[0].mxu0
    %v3501 = vpop.f32.mrb[0].mxu0
    %3502 = vdwg.mxu0
    %v3503 = vadd.f32 %v3498, %v286
    %v3504 = vxor.u32 %v3503, 2147483648
    %v3505 = vmul.f32 %v3504, 1.442695
    %v3506 = vpow.pop %v3505
    %v3507 = vadd.f32 %v3506, 1.0
    %v3508 = vrcp.pop %v3507
    %v3509 = vmul.f32 1.0, %v3508
    %v3510 = vtanh.pop %v3503
    %v3511 = vmul.f32 %v3509, %v3331
    %3513 = vrot.lane.b32.xlu0 %v3510, 32
    %v3514 = vpop.permute.xlu0 %3513
    %v3516 = vmul.f32 %v3509, %v3514
    %3518 = vrot.lane.b32.xlu0 %v3516, 32
    %v3519 = vpop.permute.xlu0 %3518
    %v3521 = vadd.f32 %v3511, %v3519
    %v3522 = vtanh.pop %v3521
    %3524 = vrot.lane.b32.xlu0 %v3522, 32
    %v3525 = vpop.permute.xlu0 %3524
    %v3527 = vmul.f32 %v3509, %v3525
    %3529 = vrot.lane.b32.xlu0 %v3527, 64
    %v3530 = vpop.permute.xlu0 %3529
    %s3532 = scalar_lea.vmem [#allocation3], 56
    %3533 = vst.msk [vmem:[%s3532] sm:$0xff] %vm414, %v3530
    %v3534 = vld [vmem:[#allocation3] sm:$0xff]
    %v3535 = vld [vmem:[#allocation3 + $0x8] sm:$0xff]
    %v3536 = vld [vmem:[#allocation3 + $0x10] sm:$0xff]
    %v3537 = vld [vmem:[#allocation3 + $0x18] sm:$0xff]
    %v3538 = vld [vmem:[#allocation3 + $0x20] sm:$0xff]
    %v3539 = vld [vmem:[#allocation3 + $0x28] sm:$0xff]
    %v3540 = vld [vmem:[#allocation3 + $0x30] sm:$0xff]
    %v3541 = vld [vmem:[#allocation3 + $0x38] sm:$0xff]
    %v3542 = vpack.c.bf16 %v3535, %v3534
    %v3543 = vpack.c.bf16 %v3537, %v3536
    %v3544 = vpack.c.bf16 %v3539, %v3538
    %v3545 = vpack.c.bf16 %v3541, %v3540
    %v3547 = vlaneseq
    %v3548 = vshrl.u32 %v3547, 7
    %v3549 = vsub.s32 0, %v3548
    %v3550 = vrot.slane %v292, %v3549
    %v3556 = vunpack.c.l.b16 %v288
    %v3557 = vunpack.c.l.b16 %v289
    %v3558 = vunpack.c.l.b16 %v290
    %v3559 = vunpack.c.l.b16 %v291
    %v3560 = vpack.c.b16 %v3557, %v3556
    %v3561 = vpack.c.b16 %v3559, %v3558
    %v3565 = vsel %vm414, %v3542, 0
    %v3568 = vsel %vm414, %v3543, 0
    %v3571 = vsel %vm414, %v3544, 0
    %v3574 = vsel %vm414, %v3545, 0
    %3576 = vmatprep.subr.bf16.mxu0 0
    %3577 = vmatpush1.bf16.msra.mxu0 %v3560
    %3578 = vmatprep.subr.bf16.mxu0 0
    %3579 = vmatpush1.bf16.msra.mxu0 %v3561
    %3580 = vmatprep.subr.bf16.mxu0 0
    %3581 = vmatpush1.bf16.msra.mxu0 0
    %3582 = vmatprep.subr.bf16.mxu0 0
    %3583 = vmatpush1.bf16.msra.mxu0 0
    %3584 = vmatprep.subr.bf16.mxu0 0
    %3585 = vmatpush1.bf16.msra.mxu0 0
    %3586 = vmatprep.subr.bf16.mxu0 0
    %3587 = vmatpush1.bf16.msra.mxu0 0
    %3588 = vmatprep.subr.bf16.mxu0 0
    %3589 = vmatpush1.bf16.msra.mxu0 0
    %3590 = vmatprep.subr.bf16.mxu0 0
    %3591 = vmatpush1.bf16.msra.mxu0 0
    %3592 = vmatprep.subr.bf16.mxu0 0
    %3593 = vmatpush1.bf16.msra.mxu0 0
    %3594 = vmatprep.subr.bf16.mxu0 0
    %3595 = vmatpush1.bf16.msra.mxu0 0
    %3596 = vmatprep.subr.bf16.mxu0 0
    %3597 = vmatpush1.bf16.msra.mxu0 0
    %3598 = vmatprep.subr.bf16.mxu0 0
    %3599 = vmatpush1.bf16.msra.mxu0 0
    %3600 = vmatprep.subr.bf16.mxu0 0
    %3601 = vmatpush1.bf16.msra.mxu0 0
    %3602 = vmatprep.subr.bf16.mxu0 0
    %3603 = vmatpush1.bf16.msra.mxu0 0
    %3604 = vmatprep.subr.bf16.mxu0 0
    %3605 = vmatpush1.bf16.msra.mxu0 0
    %3606 = vmatprep.subr.bf16.mxu0 0
    %3607 = vmatpush1.bf16.msra.mxu0 0
    %3608 = vmatprep.mubr.bf16.mxu0 0
    %3609 = vmatmul.mubr.bf16.gmra.mrb[0].mxu0 %v3565
    %v3610 = vpop.f32.mrb[0].mxu0
    %v3611 = vadd.f32 %v3550, %v3610
    %v3612 = vpop.f32.mrb[0].mxu0
    %v3613 = vpop.f32.mrb[0].mxu0
    %v3614 = vadd.f32 %v3550, %v3613
    %v3615 = vpop.f32.mrb[0].mxu0
    %3616 = vmatprep.mubr.bf16.mxu0 0
    %3617 = vmatmul.mubr.bf16.gmra.mrb[0].mxu0 %v3568
    %v3618 = vpop.f32.mrb[0].mxu0
    %v3619 = vadd.f32 %v3550, %v3618
    %v3620 = vpop.f32.mrb[0].mxu0
    %v3621 = vpop.f32.mrb[0].mxu0
    %v3622 = vadd.f32 %v3550, %v3621
    %v3623 = vpop.f32.mrb[0].mxu0
    %3624 = vmatprep.mubr.bf16.mxu0 0
    %3625 = vmatmul.mubr.bf16.gmra.mrb[0].mxu0 %v3571
    %v3626 = vpop.f32.mrb[0].mxu0
    %v3627 = vadd.f32 %v3550, %v3626
    %v3628 = vpop.f32.mrb[0].mxu0
    %v3629 = vpop.f32.mrb[0].mxu0
    %v3630 = vadd.f32 %v3550, %v3629
    %v3631 = vpop.f32.mrb[0].mxu0
    %3632 = vmatprep.mubr.bf16.mxu0 0
    %3633 = vmatmul.mubr.bf16.gmra.mrb[0].mxu0 %v3574
    %v3634 = vpop.f32.mrb[0].mxu0
    %v3635 = vadd.f32 %v3550, %v3634
    %v3636 = vpop.f32.mrb[0].mxu0
    %v3637 = vpop.f32.mrb[0].mxu0
    %v3638 = vadd.f32 %v3550, %v3637
    %v3639 = vpop.f32.mrb[0].mxu0
    %3640 = vdwg.mxu0
    %3641 = vst.msk [vmem:[#allocation28] sm:$0xff] %vm311, %v3611
    %3642 = vst.msk [vmem:[#allocation28 + $0x8] sm:$0xff] %vm311, %v3614
    %3643 = vst.msk [vmem:[#allocation28 + $0x10] sm:$0xff] %vm311, %v3619
    %3644 = vst.msk [vmem:[#allocation28 + $0x18] sm:$0xff] %vm311, %v3622
    %3645 = vst.msk [vmem:[#allocation28 + $0x20] sm:$0xff] %vm311, %v3627
    %3646 = vst.msk [vmem:[#allocation28 + $0x28] sm:$0xff] %vm311, %v3630
    %3647 = vst.msk [vmem:[#allocation28 + $0x30] sm:$0xff] %vm311, %v3635
    %3648 = vst.msk [vmem:[#allocation28 + $0x38] sm:$0xff] %vm311, %v3638
    // Predicated region
    $region122: #{tpu_custom_call.1} parent=1 // pred_check
      _
    $region123: #{tpu_custom_call.1} parent=1 // pred_check_branch
      %3650 = sbr.rel (0) target = $region125
    $region124: #{tpu_custom_call.1} parent=1 // pred_region
      %s3652 = ssub.s32 1024, 1024
      %3653 = vsyncadd [#allocation6], %s3652
      %s3654 = sshll.u32 [#allocation28], 4
      %s3655 = int_to_ptr.vmem [resolvable:$true] %s3654
      %3660 = dma.vmem_to_hbm [thread:$0]  %s3655, 1024, %s15, [#allocation6], 128, 128, 8
    $region125: #{tpu_custom_call.1} parent=1 // pred_fallthru
      _
    // Predicated region
    $region126: #{tpu_custom_call.1} parent=1 // pred_check
      _
    $region127: #{tpu_custom_call.1} parent=1 // pred_check_branch
      %3662 = sbr.rel (0) target = $region129
    $region128: #{tpu_custom_call.1} parent=1 // pred_region
      %3663 = dma.done [#allocation6], 1024
    $region129: #{tpu_custom_call.1} parent=1 // pred_fallthru
      _
    %3664 = vsyncpa [#allocation5], 1
    %3665 = vsyncpa [#allocation8], 1
    %3666 = vsyncpa [#allocation11], 1
    %3667 = vsyncpa [#allocation14], 1
    %3668 = vsyncpa [#allocation17], 1
    %3669 = vsyncpa [#allocation20], 1
    %3670 = vsyncpa [#allocation23], 1
    %3671 = vsyncpa [#allocation26], 1
    %3672 = vsyncpa [#allocation6], 1

</llo_original>
